<compile_context>
chip_gen: v7x
topology: tpu7x:2x2x1
jax: 0.10.0
libtpu: 0.0.40
codegen_flags: <defaults>
</compile_context>

<pallas_src>
import functools
import math

import jax
import jax.numpy as jnp
from jax import lax
from jax.experimental import pallas as pl
from jax.experimental.pallas import tpu as pltpu


# ------------------------------------------------------------------ #
# Fused STSGCL kernel (the hot path).                                #
# grid = (num_windows,).  For window i:                              #
#   h0 = x[i*N : (i+3)*N]                 (3N, B*C)                  #
#   for k in range(num_gcn):              (static unroll)            #
#     h = h0                                                         #
#     repeat 3x: h = leaky_relu((adj_k @ h) @ kron(I_B, W_k.T) + b)  #
#       keep running max of the middle N-node slice                  #
#     acc += running_max                                             #
#   o[i] = acc                            (N, B*C)                   #
# ------------------------------------------------------------------ #
def _stsgcl_kernel(x_ref, adj_ref, w_ref, b_ref, o_ref, *, n, strides, num_gcn):
    i = pl.program_id(0)
    bc = x_ref.shape[1]                       # B * C (folded batch in lanes)
    sn = strides * n

    start = pl.multiple_of(i * n, n)          # window rows are N-aligned
    h0 = x_ref[pl.ds(start, sn), :]           # (3N, B*C)

    acc = None
    for k in range(num_gcn):                  # static unroll (num_gcn == 3)
        adj = adj_ref[k]                      # (3N, 3N)
        wbig = w_ref[k]                       # (B*C, B*C) = kron(I_B, W_k.T)
        bias = jnp.broadcast_to(b_ref[k], (sn, bc))   # hoisted broadcast

        h = h0
        best = None
        # The PyTorch STSGCM hard-codes 3 stacked gcn_operations.
        for _ in range(3):
            y = jnp.dot(adj, h, preferred_element_type=jnp.float32)     # (3N, B*C)
            z = jnp.dot(y, wbig, preferred_element_type=jnp.float32) + bias
            h = jnp.where(z > 0.0, z, 0.01 * z)                         # leaky_relu
            mid = h[n:2 * n, :]                                         # middle slice
            best = mid if best is None else jnp.maximum(best, mid)
        acc = best if acc is None else acc + best

    o_ref[0] = acc                            # (N, B*C), lane-dense when B*C%128==0


# ------------------------------------------------------------------ #
# Fused output-layer attention kernel: qkv projection (one           #
# concatenated matmul) + per-batch softmax attention, single call.   #
# ------------------------------------------------------------------ #
def _attn_output_kernel(yf_ref, wqkv_ref, bqkv_ref, att_ref, *, batch, n, hidden):
    yf = yf_ref[...]                                          # (B*N, F_in)
    qkv = lax.dot_general(yf, wqkv_ref[...], (((1,), (1,)), ((), ())),
                          preferred_element_type=jnp.float32) + bqkv_ref[...]
    scale = 1.0 / math.sqrt(hidden)
    for b in range(batch):                                    # static unroll (B small)
        blk = qkv[b * n:(b + 1) * n, :]                       # (N, 3*hidden)
        q = blk[:, 0:hidden]
        k = blk[:, hidden:2 * hidden]
        v = blk[:, 2 * hidden:3 * hidden]
        s = lax.dot_general(q, k, (((1,), (1,)), ((), ())),
                            preferred_element_type=jnp.float32) * scale   # (N, N)
        s = s - jnp.max(s, axis=-1, keepdims=True)
        p = jnp.exp(s)
        p = p / jnp.sum(p, axis=-1, keepdims=True)
        att_ref[b * n:(b + 1) * n, :] = jnp.dot(p, v,
                                                preferred_element_type=jnp.float32)


# ------------------------------------------------------------------ #
# Plain-JAX glue: BlockMatrix assembly, BatchNorm.                   #
# ------------------------------------------------------------------ #
def build_block_adj(A, wct, wct2, N, strides):
    adj = jnp.zeros((N * strides, N * strides), jnp.float32)
    for i in range(strides):
        adj = adj.at[i * N:(i + 1) * N, i * N:(i + 1) * N].set(A)
    for kk in range(strides - 1):
        adj = adj.at[kk * N:(kk + 1) * N, (kk + 1) * N:(kk + 2) * N].set(wct[kk])
        adj = adj.at[(kk + 1) * N:(kk + 2) * N, kk * N:(kk + 1) * N].set(wct[kk].T)
    for j in range(strides - 2):
        adj = adj.at[j * N:(j + 1) * N, (j + 2) * N:(j + 3) * N].set(wct2)
        adj = adj.at[(j + 2) * N:(j + 3) * N, j * N:(j + 1) * N].set(wct2.T)
    return adj


def batchnorm2d_train(x, gamma, beta, eps=1e-5):
    # PyTorch BatchNorm2d in train mode: batch stats over (B, H, W) per channel.
    # Here x is (B, T, N, C) with T the channel axis.
    # TODO(synk): running-statistics buffer update (stateful) is not modeled.
    mean = jnp.mean(x, axis=(0, 2, 3), keepdims=True)
    var = jnp.mean(jnp.square(x - mean), axis=(0, 2, 3), keepdims=True)
    xn = (x - mean) * lax.rsqrt(var + eps)
    return xn * gamma.reshape(1, -1, 1, 1) + beta.reshape(1, -1, 1, 1)


# ------------------------------------------------------------------ #
# One STSGCL layer.                                                  #
# ------------------------------------------------------------------ #
def stsgcl_forward(x, layer, *, strides, num_gcn):
    B, T, N, C = x.shape
    x = x + layer["temporal_emb"] + layer["spatial_emb"]
    Tw = T - (strides - 1)
    BC = B * C
    SN = strides * N

    # (B,T,N,C) -> (T*N, B*C): node rows time-major, batch folded into lanes.
    xr = jnp.transpose(x, (1, 2, 0, 3)).reshape(T * N, BC)

    adjs = jnp.stack([build_block_adj(layer["A"][g], layer["wct"][g],
                                      layer["wct2"][g], N, strides)
                      for g in range(num_gcn)])                      # (G, 3N, 3N)
    eye_b = jnp.eye(B, dtype=jnp.float32)
    wbig = jnp.stack([jnp.kron(eye_b, layer["fc_w"][g].T)
                      for g in range(num_gcn)])                      # (G, B*C, B*C)
    bbig = jnp.stack([jnp.tile(layer["fc_b"][g], B)
                      for g in range(num_gcn)]).reshape(num_gcn, 1, BC)

    out = pl.pallas_call(
        functools.partial(_stsgcl_kernel, n=N, strides=strides, num_gcn=num_gcn),
        out_shape=jax.ShapeDtypeStruct((Tw, N, BC), jnp.float32),
        grid_spec=pltpu.PrefetchScalarGridSpec(
            num_scalar_prefetch=0,
            grid=(Tw,),
            in_specs=[
                pl.BlockSpec((T * N, BC), lambda i: (0, 0)),          # resident x
                pl.BlockSpec((num_gcn, SN, SN), lambda i: (0, 0, 0)),
                pl.BlockSpec((num_gcn, BC, BC), lambda i: (0, 0, 0)),
                pl.BlockSpec((num_gcn, 1, BC), lambda i: (0, 0, 0)),
            ],
            out_specs=pl.BlockSpec((1, N, BC), lambda i: (i, 0, 0)),
        ),
        compiler_params=pltpu.CompilerParams(
            dimension_semantics=("parallel",)),
    )(xr, adjs, wbig, bbig)

    out = out.reshape(Tw, N, B, C)
    return jnp.transpose(out, (2, 0, 1, 3))                          # (B, Tw, N, C)


# ------------------------------------------------------------------ #
# Full model forward                                                  #
# ------------------------------------------------------------------ #
def stsgcn_forward(params, x, *, strides, num_gcn, hidden):
    B, T, N, Cin = x.shape

    # First_FC (K=3 -> trivial) + relu, then BatchNorm2d(num_features=T): plain XLA.
    h = jnp.einsum("btnc,ec->btne", x, params["first_fc_w"]) + params["first_fc_b"]
    h = jnp.maximum(h, 0.0)
    h = batchnorm2d_train(h, params["bn_gamma"], params["bn_beta"])

    # Stacked STSGCL layers (one fused Pallas kernel each).
    for layer in params["layers"]:
        h = stsgcl_forward(h, layer, strides=strides, num_gcn=num_gcn)

    # Output layer.
    B_, Tf, Nv, C = h.shape
    yf = jnp.transpose(h, (0, 2, 1, 3)).reshape(B_ * Nv, Tf * C)     # (B*N, Tf*C)

    wqkv = jnp.concatenate([params["attn_wq"], params["attn_wk"],
                            params["attn_wv"]], axis=0)              # (3*hidden, F_in)
    bqkv = jnp.concatenate([params["attn_bq"], params["attn_bk"],
                            params["attn_bv"]]).reshape(1, -1)

    att = pl.pallas_call(
        functools.partial(_attn_output_kernel, batch=B_, n=Nv, hidden=hidden),
        out_shape=jax.ShapeDtypeStruct((B_ * Nv, hidden), jnp.float32),
    )(yf, wqkv, bqkv)

    # FC1 / FC2 are tiny (M = B rows): plain jnp so XLA fuses them.
    out1 = att.reshape(B_, Nv * hidden) @ params["fc1_w"].T + params["fc1_b"]
    out1 = jnp.where(out1 > 0, out1, 0.01 * out1)                    # leaky_relu
    out2 = out1 @ params["fc2_w"].T + params["fc2_b"]
    return jnp.squeeze(out2)


# ------------------------------------------------------------------ #
# Deterministic parameter init (shapes follow the torch __init__).    #
# ------------------------------------------------------------------ #
def init_params(key, *, history, N, in_dim, E, num_layers, hidden, strides, num_gcn):
    keys = iter(jax.random.split(key, 128))

    def nrm(shape, scale=0.05):
        return (scale * jax.random.normal(next(keys), shape)).astype(jnp.float32)

    params = {}
    params["first_fc_w"] = nrm((E, in_dim))
    params["first_fc_b"] = nrm((E,))
    params["bn_gamma"] = jnp.ones((history,), jnp.float32)   # torch default init
    params["bn_beta"] = jnp.zeros((history,), jnp.float32)

    layers = []
    T = history
    for _ in range(num_layers):
        layers.append({
            "temporal_emb": nrm((1, T, 1, E), 0.0003),
            "spatial_emb": nrm((1, 1, N, E), 0.0003),
            "A": nrm((num_gcn, N, N)),
            "wct": nrm((num_gcn, strides - 1, N, N)),
            "wct2": nrm((num_gcn, N, N)),
            "fc_w": nrm((num_gcn, E, E)),
            "fc_b": nrm((num_gcn, E)),
        })
        T -= strides - 1
    params["layers"] = layers

    Tf = T
    F_in = Tf * E
    params["attn_wq"] = nrm((hidden, F_in)); params["attn_bq"] = nrm((hidden,))
    params["attn_wk"] = nrm((hidden, F_in)); params["attn_bk"] = nrm((hidden,))
    params["attn_wv"] = nrm((hidden, F_in)); params["attn_bv"] = nrm((hidden,))
    params["fc1_w"] = nrm((hidden, N * hidden)); params["fc1_b"] = nrm((hidden,))
    params["fc2_w"] = nrm((2, hidden)); params["fc2_b"] = nrm((2,))
    return params, Tf


if __name__ == "__main__":
    # bn1 = BatchNorm2d(num_features=9)  =>  history must be 9.
    # E=64 with B=2 makes the folded lane dim B*C = 128 (lane-dense stores),
    # hidden=128 is the torch default and keeps q/k/v lane slices tile-aligned.
    B, history, N, in_dim = 2, 9, 8, 3
    E, num_layers, hidden = 64, 2, 128
    strides, num_gcn = 3, 3

    key = jax.random.PRNGKey(0)
    pkey, xkey = jax.random.split(key)
    params, Tf = init_params(pkey, history=history, N=N, in_dim=in_dim, E=E,
                             num_layers=num_layers, hidden=hidden,
                             strides=strides, num_gcn=num_gcn)
    x = jax.random.normal(xkey, (B, history, N, in_dim), dtype=jnp.float32)

    fwd = jax.jit(functools.partial(stsgcn_forward, strides=strides,
                                    num_gcn=num_gcn, hidden=hidden))
    out = jax.block_until_ready(fwd(params, x))

    assert out.shape == (B, 2), out.shape
    assert bool(jnp.all(jnp.isfinite(out)))
    print("KERNEL_OK")
</pallas_src>

<mosaic_0001>
module attributes {stable_mosaic.version = 11 : i64} {
  func.func @_stsgcl_kernel(%arg0: i32, %arg1: memref<72x128xf32, #tpu.memory_space<vmem>>, %arg2: memref<3x24x24xf32, #tpu.memory_space<vmem>>, %arg3: memref<3x128x128xf32, #tpu.memory_space<vmem>>, %arg4: memref<3x1x128xf32, #tpu.memory_space<vmem>>, %arg5: memref<1x8x128xf32, #tpu.memory_space<vmem>>) attributes {dimension_semantics = [#tpu.dimension_semantics<parallel>], iteration_bounds = array<i64: 7>, scalar_prefetch = 0 : i64, scratch_operands = 0 : i64, tpu.core_type = #tpu.core_type<tc>, window_params = [{pipeline_mode = #tpu.pipeline_mode<synchronous>, transform_indices = @transform_0, window_bounds = array<i64: 72, 128>}, {pipeline_mode = #tpu.pipeline_mode<synchronous>, transform_indices = @transform_1, window_bounds = array<i64: 3, 24, 24>}, {pipeline_mode = #tpu.pipeline_mode<synchronous>, transform_indices = @transform_2, window_bounds = array<i64: 3, 128, 128>}, {pipeline_mode = #tpu.pipeline_mode<synchronous>, transform_indices = @transform_3, window_bounds = array<i64: 3, 1, 128>}, {transform_indices = @transform_4, window_bounds = array<i64: 1, 8, 128>}]} {
    %c8_i32 = arith.constant 8 : i32
    %0 = arith.muli %arg0, %c8_i32 : i32
    %1 = tpu.assume_multiple %0, 8 : i32
    %2 = arith.index_cast %1 : i32 to index
    %c0 = arith.constant 0 : index
    %3 = vector.load %arg1[%2, %c0] : memref<72x128xf32, #tpu.memory_space<vmem>>, vector<24x128xf32>
    %c0_0 = arith.constant 0 : index
    %c0_1 = arith.constant 0 : index
    %c0_2 = arith.constant 0 : index
    %4 = vector.load %arg2[%c0_0, %c0_1, %c0_2] : memref<3x24x24xf32, #tpu.memory_space<vmem>>, vector<1x24x24xf32>
    %5 = vector.shape_cast %4 : vector<1x24x24xf32> to vector<24x24xf32>
    %c0_3 = arith.constant 0 : index
    %c0_4 = arith.constant 0 : index
    %c0_5 = arith.constant 0 : index
    %6 = vector.load %arg3[%c0_3, %c0_4, %c0_5] : memref<3x128x128xf32, #tpu.memory_space<vmem>>, vector<1x128x128xf32>
    %7 = vector.shape_cast %6 : vector<1x128x128xf32> to vector<128x128xf32>
    %c0_6 = arith.constant 0 : index
    %c0_7 = arith.constant 0 : index
    %c0_8 = arith.constant 0 : index
    %8 = vector.load %arg4[%c0_6, %c0_7, %c0_8] : memref<3x1x128xf32, #tpu.memory_space<vmem>>, vector<1x1x128xf32>
    %9 = vector.shape_cast %8 : vector<1x1x128xf32> to vector<1x128xf32>
    %10 = vector.shape_cast %9 : vector<1x128xf32> to vector<1x128xf32>
    %11 = vector.broadcast %10 : vector<1x128xf32> to vector<24x128xf32>
    %cst = arith.constant dense<0.000000e+00> : vector<24x128xf32>
    %12 = tpu.matmul %5, %3, %cst {dimension_numbers = #tpu.dot_dimension_numbers<[1], [0], [0], [1], [0, 0, 1, 1], [], []>} : vector<24x24xf32>, vector<24x128xf32>, vector<24x128xf32> -> vector<24x128xf32>
    %cst_9 = arith.constant dense<0.000000e+00> : vector<24x128xf32>
    %13 = tpu.matmul %12, %7, %cst_9 {dimension_numbers = #tpu.dot_dimension_numbers<[1], [0], [0], [1], [0, 0, 1, 1], [], []>} : vector<24x128xf32>, vector<128x128xf32>, vector<24x128xf32> -> vector<24x128xf32>
    %14 = arith.addf %13, %11 : vector<24x128xf32>
    %cst_10 = arith.constant 0.000000e+00 : f32
    %15 = vector.broadcast %cst_10 : f32 to vector<24x128xf32>
    %16 = arith.cmpf ogt, %14, %15 : vector<24x128xf32>
    %cst_11 = arith.constant 0.00999999977 : f32
    %17 = vector.broadcast %cst_11 : f32 to vector<24x128xf32>
    %18 = arith.mulf %17, %14 : vector<24x128xf32>
    %19 = arith.select %16, %14, %18 : vector<24x128xi1>, vector<24x128xf32>
    %20 = vector.extract_strided_slice %19 {offsets = [8, 0], sizes = [8, 128], strides = [1, 1]} : vector<24x128xf32> to vector<8x128xf32>
    %cst_12 = arith.constant dense<0.000000e+00> : vector<24x128xf32>
    %21 = tpu.matmul %5, %19, %cst_12 {dimension_numbers = #tpu.dot_dimension_numbers<[1], [0], [0], [1], [0, 0, 1, 1], [], []>} : vector<24x24xf32>, vector<24x128xf32>, vector<24x128xf32> -> vector<24x128xf32>
    %cst_13 = arith.constant dense<0.000000e+00> : vector<24x128xf32>
    %22 = tpu.matmul %21, %7, %cst_13 {dimension_numbers = #tpu.dot_dimension_numbers<[1], [0], [0], [1], [0, 0, 1, 1], [], []>} : vector<24x128xf32>, vector<128x128xf32>, vector<24x128xf32> -> vector<24x128xf32>
    %23 = arith.addf %22, %11 : vector<24x128xf32>
    %cst_14 = arith.constant 0.000000e+00 : f32
    %24 = vector.broadcast %cst_14 : f32 to vector<24x128xf32>
    %25 = arith.cmpf ogt, %23, %24 : vector<24x128xf32>
    %cst_15 = arith.constant 0.00999999977 : f32
    %26 = vector.broadcast %cst_15 : f32 to vector<24x128xf32>
    %27 = arith.mulf %26, %23 : vector<24x128xf32>
    %28 = arith.select %25, %23, %27 : vector<24x128xi1>, vector<24x128xf32>
    %29 = vector.extract_strided_slice %28 {offsets = [8, 0], sizes = [8, 128], strides = [1, 1]} : vector<24x128xf32> to vector<8x128xf32>
    %30 = arith.maximumf %20, %29 : vector<8x128xf32>
    %cst_16 = arith.constant dense<0.000000e+00> : vector<24x128xf32>
    %31 = tpu.matmul %5, %28, %cst_16 {dimension_numbers = #tpu.dot_dimension_numbers<[1], [0], [0], [1], [0, 0, 1, 1], [], []>} : vector<24x24xf32>, vector<24x128xf32>, vector<24x128xf32> -> vector<24x128xf32>
    %cst_17 = arith.constant dense<0.000000e+00> : vector<24x128xf32>
    %32 = tpu.matmul %31, %7, %cst_17 {dimension_numbers = #tpu.dot_dimension_numbers<[1], [0], [0], [1], [0, 0, 1, 1], [], []>} : vector<24x128xf32>, vector<128x128xf32>, vector<24x128xf32> -> vector<24x128xf32>
    %33 = arith.addf %32, %11 : vector<24x128xf32>
    %cst_18 = arith.constant 0.000000e+00 : f32
    %34 = vector.broadcast %cst_18 : f32 to vector<24x128xf32>
    %35 = arith.cmpf ogt, %33, %34 : vector<24x128xf32>
    %cst_19 = arith.constant 0.00999999977 : f32
    %36 = vector.broadcast %cst_19 : f32 to vector<24x128xf32>
    %37 = arith.mulf %36, %33 : vector<24x128xf32>
    %38 = arith.select %35, %33, %37 : vector<24x128xi1>, vector<24x128xf32>
    %39 = vector.extract_strided_slice %38 {offsets = [8, 0], sizes = [8, 128], strides = [1, 1]} : vector<24x128xf32> to vector<8x128xf32>
    %40 = arith.maximumf %30, %39 : vector<8x128xf32>
    %c1 = arith.constant 1 : index
    %c0_20 = arith.constant 0 : index
    %c0_21 = arith.constant 0 : index
    %41 = vector.load %arg2[%c1, %c0_20, %c0_21] : memref<3x24x24xf32, #tpu.memory_space<vmem>>, vector<1x24x24xf32>
    %42 = vector.shape_cast %41 : vector<1x24x24xf32> to vector<24x24xf32>
    %c1_22 = arith.constant 1 : index
    %c0_23 = arith.constant 0 : index
    %c0_24 = arith.constant 0 : index
    %43 = vector.load %arg3[%c1_22, %c0_23, %c0_24] : memref<3x128x128xf32, #tpu.memory_space<vmem>>, vector<1x128x128xf32>
    %44 = vector.shape_cast %43 : vector<1x128x128xf32> to vector<128x128xf32>
    %c1_25 = arith.constant 1 : index
    %c0_26 = arith.constant 0 : index
    %c0_27 = arith.constant 0 : index
    %45 = vector.load %arg4[%c1_25, %c0_26, %c0_27] : memref<3x1x128xf32, #tpu.memory_space<vmem>>, vector<1x1x128xf32>
    %46 = vector.shape_cast %45 : vector<1x1x128xf32> to vector<1x128xf32>
    %47 = vector.shape_cast %46 : vector<1x128xf32> to vector<1x128xf32>
    %48 = vector.broadcast %47 : vector<1x128xf32> to vector<24x128xf32>
    %cst_28 = arith.constant dense<0.000000e+00> : vector<24x128xf32>
    %49 = tpu.matmul %42, %3, %cst_28 {dimension_numbers = #tpu.dot_dimension_numbers<[1], [0], [0], [1], [0, 0, 1, 1], [], []>} : vector<24x24xf32>, vector<24x128xf32>, vector<24x128xf32> -> vector<24x128xf32>
    %cst_29 = arith.constant dense<0.000000e+00> : vector<24x128xf32>
    %50 = tpu.matmul %49, %44, %cst_29 {dimension_numbers = #tpu.dot_dimension_numbers<[1], [0], [0], [1], [0, 0, 1, 1], [], []>} : vector<24x128xf32>, vector<128x128xf32>, vector<24x128xf32> -> vector<24x128xf32>
    %51 = arith.addf %50, %48 : vector<24x128xf32>
    %cst_30 = arith.constant 0.000000e+00 : f32
    %52 = vector.broadcast %cst_30 : f32 to vector<24x128xf32>
    %53 = arith.cmpf ogt, %51, %52 : vector<24x128xf32>
    %cst_31 = arith.constant 0.00999999977 : f32
    %54 = vector.broadcast %cst_31 : f32 to vector<24x128xf32>
    %55 = arith.mulf %54, %51 : vector<24x128xf32>
    %56 = arith.select %53, %51, %55 : vector<24x128xi1>, vector<24x128xf32>
    %57 = vector.extract_strided_slice %56 {offsets = [8, 0], sizes = [8, 128], strides = [1, 1]} : vector<24x128xf32> to vector<8x128xf32>
    %cst_32 = arith.constant dense<0.000000e+00> : vector<24x128xf32>
    %58 = tpu.matmul %42, %56, %cst_32 {dimension_numbers = #tpu.dot_dimension_numbers<[1], [0], [0], [1], [0, 0, 1, 1], [], []>} : vector<24x24xf32>, vector<24x128xf32>, vector<24x128xf32> -> vector<24x128xf32>
    %cst_33 = arith.constant dense<0.000000e+00> : vector<24x128xf32>
    %59 = tpu.matmul %58, %44, %cst_33 {dimension_numbers = #tpu.dot_dimension_numbers<[1], [0], [0], [1], [0, 0, 1, 1], [], []>} : vector<24x128xf32>, vector<128x128xf32>, vector<24x128xf32> -> vector<24x128xf32>
    %60 = arith.addf %59, %48 : vector<24x128xf32>
    %cst_34 = arith.constant 0.000000e+00 : f32
    %61 = vector.broadcast %cst_34 : f32 to vector<24x128xf32>
    %62 = arith.cmpf ogt, %60, %61 : vector<24x128xf32>
    %cst_35 = arith.constant 0.00999999977 : f32
    %63 = vector.broadcast %cst_35 : f32 to vector<24x128xf32>
    %64 = arith.mulf %63, %60 : vector<24x128xf32>
    %65 = arith.select %62, %60, %64 : vector<24x128xi1>, vector<24x128xf32>
    %66 = vector.extract_strided_slice %65 {offsets = [8, 0], sizes = [8, 128], strides = [1, 1]} : vector<24x128xf32> to vector<8x128xf32>
    %67 = arith.maximumf %57, %66 : vector<8x128xf32>
    %cst_36 = arith.constant dense<0.000000e+00> : vector<24x128xf32>
    %68 = tpu.matmul %42, %65, %cst_36 {dimension_numbers = #tpu.dot_dimension_numbers<[1], [0], [0], [1], [0, 0, 1, 1], [], []>} : vector<24x24xf32>, vector<24x128xf32>, vector<24x128xf32> -> vector<24x128xf32>
    %cst_37 = arith.constant dense<0.000000e+00> : vector<24x128xf32>
    %69 = tpu.matmul %68, %44, %cst_37 {dimension_numbers = #tpu.dot_dimension_numbers<[1], [0], [0], [1], [0, 0, 1, 1], [], []>} : vector<24x128xf32>, vector<128x128xf32>, vector<24x128xf32> -> vector<24x128xf32>
    %70 = arith.addf %69, %48 : vector<24x128xf32>
    %cst_38 = arith.constant 0.000000e+00 : f32
    %71 = vector.broadcast %cst_38 : f32 to vector<24x128xf32>
    %72 = arith.cmpf ogt, %70, %71 : vector<24x128xf32>
    %cst_39 = arith.constant 0.00999999977 : f32
    %73 = vector.broadcast %cst_39 : f32 to vector<24x128xf32>
    %74 = arith.mulf %73, %70 : vector<24x128xf32>
    %75 = arith.select %72, %70, %74 : vector<24x128xi1>, vector<24x128xf32>
    %76 = vector.extract_strided_slice %75 {offsets = [8, 0], sizes = [8, 128], strides = [1, 1]} : vector<24x128xf32> to vector<8x128xf32>
    %77 = arith.maximumf %67, %76 : vector<8x128xf32>
    %78 = arith.addf %40, %77 : vector<8x128xf32>
    %c2 = arith.constant 2 : index
    %c0_40 = arith.constant 0 : index
    %c0_41 = arith.constant 0 : index
    %79 = vector.load %arg2[%c2, %c0_40, %c0_41] : memref<3x24x24xf32, #tpu.memory_space<vmem>>, vector<1x24x24xf32>
    %80 = vector.shape_cast %79 : vector<1x24x24xf32> to vector<24x24xf32>
    %c2_42 = arith.constant 2 : index
    %c0_43 = arith.constant 0 : index
    %c0_44 = arith.constant 0 : index
    %81 = vector.load %arg3[%c2_42, %c0_43, %c0_44] : memref<3x128x128xf32, #tpu.memory_space<vmem>>, vector<1x128x128xf32>
    %82 = vector.shape_cast %81 : vector<1x128x128xf32> to vector<128x128xf32>
    %c2_45 = arith.constant 2 : index
    %c0_46 = arith.constant 0 : index
    %c0_47 = arith.constant 0 : index
    %83 = vector.load %arg4[%c2_45, %c0_46, %c0_47] : memref<3x1x128xf32, #tpu.memory_space<vmem>>, vector<1x1x128xf32>
    %84 = vector.shape_cast %83 : vector<1x1x128xf32> to vector<1x128xf32>
    %85 = vector.shape_cast %84 : vector<1x128xf32> to vector<1x128xf32>
    %86 = vector.broadcast %85 : vector<1x128xf32> to vector<24x128xf32>
    %cst_48 = arith.constant dense<0.000000e+00> : vector<24x128xf32>
    %87 = tpu.matmul %80, %3, %cst_48 {dimension_numbers = #tpu.dot_dimension_numbers<[1], [0], [0], [1], [0, 0, 1, 1], [], []>} : vector<24x24xf32>, vector<24x128xf32>, vector<24x128xf32> -> vector<24x128xf32>
    %cst_49 = arith.constant dense<0.000000e+00> : vector<24x128xf32>
    %88 = tpu.matmul %87, %82, %cst_49 {dimension_numbers = #tpu.dot_dimension_numbers<[1], [0], [0], [1], [0, 0, 1, 1], [], []>} : vector<24x128xf32>, vector<128x128xf32>, vector<24x128xf32> -> vector<24x128xf32>
    %89 = arith.addf %88, %86 : vector<24x128xf32>
    %cst_50 = arith.constant 0.000000e+00 : f32
    %90 = vector.broadcast %cst_50 : f32 to vector<24x128xf32>
    %91 = arith.cmpf ogt, %89, %90 : vector<24x128xf32>
    %cst_51 = arith.constant 0.00999999977 : f32
    %92 = vector.broadcast %cst_51 : f32 to vector<24x128xf32>
    %93 = arith.mulf %92, %89 : vector<24x128xf32>
    %94 = arith.select %91, %89, %93 : vector<24x128xi1>, vector<24x128xf32>
    %95 = vector.extract_strided_slice %94 {offsets = [8, 0], sizes = [8, 128], strides = [1, 1]} : vector<24x128xf32> to vector<8x128xf32>
    %cst_52 = arith.constant dense<0.000000e+00> : vector<24x128xf32>
    %96 = tpu.matmul %80, %94, %cst_52 {dimension_numbers = #tpu.dot_dimension_numbers<[1], [0], [0], [1], [0, 0, 1, 1], [], []>} : vector<24x24xf32>, vector<24x128xf32>, vector<24x128xf32> -> vector<24x128xf32>
    %cst_53 = arith.constant dense<0.000000e+00> : vector<24x128xf32>
    %97 = tpu.matmul %96, %82, %cst_53 {dimension_numbers = #tpu.dot_dimension_numbers<[1], [0], [0], [1], [0, 0, 1, 1], [], []>} : vector<24x128xf32>, vector<128x128xf32>, vector<24x128xf32> -> vector<24x128xf32>
    %98 = arith.addf %97, %86 : vector<24x128xf32>
    %cst_54 = arith.constant 0.000000e+00 : f32
    %99 = vector.broadcast %cst_54 : f32 to vector<24x128xf32>
    %100 = arith.cmpf ogt, %98, %99 : vector<24x128xf32>
    %cst_55 = arith.constant 0.00999999977 : f32
    %101 = vector.broadcast %cst_55 : f32 to vector<24x128xf32>
    %102 = arith.mulf %101, %98 : vector<24x128xf32>
    %103 = arith.select %100, %98, %102 : vector<24x128xi1>, vector<24x128xf32>
    %104 = vector.extract_strided_slice %103 {offsets = [8, 0], sizes = [8, 128], strides = [1, 1]} : vector<24x128xf32> to vector<8x128xf32>
    %105 = arith.maximumf %95, %104 : vector<8x128xf32>
    %cst_56 = arith.constant dense<0.000000e+00> : vector<24x128xf32>
    %106 = tpu.matmul %80, %103, %cst_56 {dimension_numbers = #tpu.dot_dimension_numbers<[1], [0], [0], [1], [0, 0, 1, 1], [], []>} : vector<24x24xf32>, vector<24x128xf32>, vector<24x128xf32> -> vector<24x128xf32>
    %cst_57 = arith.constant dense<0.000000e+00> : vector<24x128xf32>
    %107 = tpu.matmul %106, %82, %cst_57 {dimension_numbers = #tpu.dot_dimension_numbers<[1], [0], [0], [1], [0, 0, 1, 1], [], []>} : vector<24x128xf32>, vector<128x128xf32>, vector<24x128xf32> -> vector<24x128xf32>
    %108 = arith.addf %107, %86 : vector<24x128xf32>
    %cst_58 = arith.constant 0.000000e+00 : f32
    %109 = vector.broadcast %cst_58 : f32 to vector<24x128xf32>
    %110 = arith.cmpf ogt, %108, %109 : vector<24x128xf32>
    %cst_59 = arith.constant 0.00999999977 : f32
    %111 = vector.broadcast %cst_59 : f32 to vector<24x128xf32>
    %112 = arith.mulf %111, %108 : vector<24x128xf32>
    %113 = arith.select %110, %108, %112 : vector<24x128xi1>, vector<24x128xf32>
    %114 = vector.extract_strided_slice %113 {offsets = [8, 0], sizes = [8, 128], strides = [1, 1]} : vector<24x128xf32> to vector<8x128xf32>
    %115 = arith.maximumf %105, %114 : vector<8x128xf32>
    %116 = arith.addf %78, %115 : vector<8x128xf32>
    %c0_60 = arith.constant 0 : index
    %c0_61 = arith.constant 0 : index
    %c0_62 = arith.constant 0 : index
    %117 = vector.load %arg5[%c0_60, %c0_61, %c0_62] : memref<1x8x128xf32, #tpu.memory_space<vmem>>, vector<1x8x128xf32>
    %118 = vector.shape_cast %117 : vector<1x8x128xf32> to vector<8x128xf32>
    %119 = vector.shape_cast %116 : vector<8x128xf32> to vector<1x8x128xf32>
    tpu.vector_store %arg5[%c0_60, %c0_61, %c0_62], %119 {strides = array<i32>} : memref<1x8x128xf32, #tpu.memory_space<vmem>>, vector<1x8x128xf32>,
    return
  }
  func.func @transform_0(%arg0: i32) -> (i32, i32) {
    %c0_i32 = arith.constant 0 : i32
    %c0_i32_0 = arith.constant 0 : i32
    %c0_i32_1 = arith.constant 0 : i32
    return %c0_i32, %c0_i32_0 : i32, i32
  }
  func.func @transform_1(%arg0: i32) -> (i32, i32, i32) {
    %c0_i32 = arith.constant 0 : i32
    %c0_i32_0 = arith.constant 0 : i32
    %c0_i32_1 = arith.constant 0 : i32
    %c0_i32_2 = arith.constant 0 : i32
    return %c0_i32, %c0_i32_0, %c0_i32_1 : i32, i32, i32
  }
  func.func @transform_2(%arg0: i32) -> (i32, i32, i32) {
    %c0_i32 = arith.constant 0 : i32
    %c0_i32_0 = arith.constant 0 : i32
    %c0_i32_1 = arith.constant 0 : i32
    %c0_i32_2 = arith.constant 0 : i32
    return %c0_i32, %c0_i32_0, %c0_i32_1 : i32, i32, i32
  }
  func.func @transform_3(%arg0: i32) -> (i32, i32, i32) {
    %c0_i32 = arith.constant 0 : i32
    %c0_i32_0 = arith.constant 0 : i32
    %c0_i32_1 = arith.constant 0 : i32
    %c0_i32_2 = arith.constant 0 : i32
    return %c0_i32, %c0_i32_0, %c0_i32_1 : i32, i32, i32
  }
  func.func @transform_4(%arg0: i32) -> (i32, i32, i32) {
    %c0_i32 = arith.constant 0 : i32
    %c0_i32_0 = arith.constant 0 : i32
    %c0_i32_1 = arith.constant 0 : i32
    return %arg0, %c0_i32, %c0_i32_0 : i32, i32, i32
  }
}

module attributes {stable_mosaic.version = 11 : i64} {
  func.func @_stsgcl_kernel(%arg0: i32, %arg1: memref<56x128xf32, #tpu.memory_space<vmem>>, %arg2: memref<3x24x24xf32, #tpu.memory_space<vmem>>, %arg3: memref<3x128x128xf32, #tpu.memory_space<vmem>>, %arg4: memref<3x1x128xf32, #tpu.memory_space<vmem>>, %arg5: memref<1x8x128xf32, #tpu.memory_space<vmem>>) attributes {dimension_semantics = [#tpu.dimension_semantics<parallel>], iteration_bounds = array<i64: 5>, scalar_prefetch = 0 : i64, scratch_operands = 0 : i64, tpu.core_type = #tpu.core_type<tc>, window_params = [{pipeline_mode = #tpu.pipeline_mode<synchronous>, transform_indices = @transform_0, window_bounds = array<i64: 56, 128>}, {pipeline_mode = #tpu.pipeline_mode<synchronous>, transform_indices = @transform_1, window_bounds = array<i64: 3, 24, 24>}, {pipeline_mode = #tpu.pipeline_mode<synchronous>, transform_indices = @transform_2, window_bounds = array<i64: 3, 128, 128>}, {pipeline_mode = #tpu.pipeline_mode<synchronous>, transform_indices = @transform_3, window_bounds = array<i64: 3, 1, 128>}, {transform_indices = @transform_4, window_bounds = array<i64: 1, 8, 128>}]} {
    %c8_i32 = arith.constant 8 : i32
    %0 = arith.muli %arg0, %c8_i32 : i32
    %1 = tpu.assume_multiple %0, 8 : i32
    %2 = arith.index_cast %1 : i32 to index
    %c0 = arith.constant 0 : index
    %3 = vector.load %arg1[%2, %c0] : memref<56x128xf32, #tpu.memory_space<vmem>>, vector<24x128xf32>
    %c0_0 = arith.constant 0 : index
    %c0_1 = arith.constant 0 : index
    %c0_2 = arith.constant 0 : index
    %4 = vector.load %arg2[%c0_0, %c0_1, %c0_2] : memref<3x24x24xf32, #tpu.memory_space<vmem>>, vector<1x24x24xf32>
    %5 = vector.shape_cast %4 : vector<1x24x24xf32> to vector<24x24xf32>
    %c0_3 = arith.constant 0 : index
    %c0_4 = arith.constant 0 : index
    %c0_5 = arith.constant 0 : index
    %6 = vector.load %arg3[%c0_3, %c0_4, %c0_5] : memref<3x128x128xf32, #tpu.memory_space<vmem>>, vector<1x128x128xf32>
    %7 = vector.shape_cast %6 : vector<1x128x128xf32> to vector<128x128xf32>
    %c0_6 = arith.constant 0 : index
    %c0_7 = arith.constant 0 : index
    %c0_8 = arith.constant 0 : index
    %8 = vector.load %arg4[%c0_6, %c0_7, %c0_8] : memref<3x1x128xf32, #tpu.memory_space<vmem>>, vector<1x1x128xf32>
    %9 = vector.shape_cast %8 : vector<1x1x128xf32> to vector<1x128xf32>
    %10 = vector.shape_cast %9 : vector<1x128xf32> to vector<1x128xf32>
    %11 = vector.broadcast %10 : vector<1x128xf32> to vector<24x128xf32>
    %cst = arith.constant dense<0.000000e+00> : vector<24x128xf32>
    %12 = tpu.matmul %5, %3, %cst {dimension_numbers = #tpu.dot_dimension_numbers<[1], [0], [0], [1], [0, 0, 1, 1], [], []>} : vector<24x24xf32>, vector<24x128xf32>, vector<24x128xf32> -> vector<24x128xf32>
    %cst_9 = arith.constant dense<0.000000e+00> : vector<24x128xf32>
    %13 = tpu.matmul %12, %7, %cst_9 {dimension_numbers = #tpu.dot_dimension_numbers<[1], [0], [0], [1], [0, 0, 1, 1], [], []>} : vector<24x128xf32>, vector<128x128xf32>, vector<24x128xf32> -> vector<24x128xf32>
    %14 = arith.addf %13, %11 : vector<24x128xf32>
    %cst_10 = arith.constant 0.000000e+00 : f32
    %15 = vector.broadcast %cst_10 : f32 to vector<24x128xf32>
    %16 = arith.cmpf ogt, %14, %15 : vector<24x128xf32>
    %cst_11 = arith.constant 0.00999999977 : f32
    %17 = vector.broadcast %cst_11 : f32 to vector<24x128xf32>
    %18 = arith.mulf %17, %14 : vector<24x128xf32>
    %19 = arith.select %16, %14, %18 : vector<24x128xi1>, vector<24x128xf32>
    %20 = vector.extract_strided_slice %19 {offsets = [8, 0], sizes = [8, 128], strides = [1, 1]} : vector<24x128xf32> to vector<8x128xf32>
    %cst_12 = arith.constant dense<0.000000e+00> : vector<24x128xf32>
    %21 = tpu.matmul %5, %19, %cst_12 {dimension_numbers = #tpu.dot_dimension_numbers<[1], [0], [0], [1], [0, 0, 1, 1], [], []>} : vector<24x24xf32>, vector<24x128xf32>, vector<24x128xf32> -> vector<24x128xf32>
    %cst_13 = arith.constant dense<0.000000e+00> : vector<24x128xf32>
    %22 = tpu.matmul %21, %7, %cst_13 {dimension_numbers = #tpu.dot_dimension_numbers<[1], [0], [0], [1], [0, 0, 1, 1], [], []>} : vector<24x128xf32>, vector<128x128xf32>, vector<24x128xf32> -> vector<24x128xf32>
    %23 = arith.addf %22, %11 : vector<24x128xf32>
    %cst_14 = arith.constant 0.000000e+00 : f32
    %24 = vector.broadcast %cst_14 : f32 to vector<24x128xf32>
    %25 = arith.cmpf ogt, %23, %24 : vector<24x128xf32>
    %cst_15 = arith.constant 0.00999999977 : f32
    %26 = vector.broadcast %cst_15 : f32 to vector<24x128xf32>
    %27 = arith.mulf %26, %23 : vector<24x128xf32>
    %28 = arith.select %25, %23, %27 : vector<24x128xi1>, vector<24x128xf32>
    %29 = vector.extract_strided_slice %28 {offsets = [8, 0], sizes = [8, 128], strides = [1, 1]} : vector<24x128xf32> to vector<8x128xf32>
    %30 = arith.maximumf %20, %29 : vector<8x128xf32>
    %cst_16 = arith.constant dense<0.000000e+00> : vector<24x128xf32>
    %31 = tpu.matmul %5, %28, %cst_16 {dimension_numbers = #tpu.dot_dimension_numbers<[1], [0], [0], [1], [0, 0, 1, 1], [], []>} : vector<24x24xf32>, vector<24x128xf32>, vector<24x128xf32> -> vector<24x128xf32>
    %cst_17 = arith.constant dense<0.000000e+00> : vector<24x128xf32>
    %32 = tpu.matmul %31, %7, %cst_17 {dimension_numbers = #tpu.dot_dimension_numbers<[1], [0], [0], [1], [0, 0, 1, 1], [], []>} : vector<24x128xf32>, vector<128x128xf32>, vector<24x128xf32> -> vector<24x128xf32>
    %33 = arith.addf %32, %11 : vector<24x128xf32>
    %cst_18 = arith.constant 0.000000e+00 : f32
    %34 = vector.broadcast %cst_18 : f32 to vector<24x128xf32>
    %35 = arith.cmpf ogt, %33, %34 : vector<24x128xf32>
    %cst_19 = arith.constant 0.00999999977 : f32
    %36 = vector.broadcast %cst_19 : f32 to vector<24x128xf32>
    %37 = arith.mulf %36, %33 : vector<24x128xf32>
    %38 = arith.select %35, %33, %37 : vector<24x128xi1>, vector<24x128xf32>
    %39 = vector.extract_strided_slice %38 {offsets = [8, 0], sizes = [8, 128], strides = [1, 1]} : vector<24x128xf32> to vector<8x128xf32>
    %40 = arith.maximumf %30, %39 : vector<8x128xf32>
    %c1 = arith.constant 1 : index
    %c0_20 = arith.constant 0 : index
    %c0_21 = arith.constant 0 : index
    %41 = vector.load %arg2[%c1, %c0_20, %c0_21] : memref<3x24x24xf32, #tpu.memory_space<vmem>>, vector<1x24x24xf32>
    %42 = vector.shape_cast %41 : vector<1x24x24xf32> to vector<24x24xf32>
    %c1_22 = arith.constant 1 : index
    %c0_23 = arith.constant 0 : index
    %c0_24 = arith.constant 0 : index
    %43 = vector.load %arg3[%c1_22, %c0_23, %c0_24] : memref<3x128x128xf32, #tpu.memory_space<vmem>>, vector<1x128x128xf32>
    %44 = vector.shape_cast %43 : vector<1x128x128xf32> to vector<128x128xf32>
    %c1_25 = arith.constant 1 : index
    %c0_26 = arith.constant 0 : index
    %c0_27 = arith.constant 0 : index
    %45 = vector.load %arg4[%c1_25, %c0_26, %c0_27] : memref<3x1x128xf32, #tpu.memory_space<vmem>>, vector<1x1x128xf32>
    %46 = vector.shape_cast %45 : vector<1x1x128xf32> to vector<1x128xf32>
    %47 = vector.shape_cast %46 : vector<1x128xf32> to vector<1x128xf32>
    %48 = vector.broadcast %47 : vector<1x128xf32> to vector<24x128xf32>
    %cst_28 = arith.constant dense<0.000000e+00> : vector<24x128xf32>
    %49 = tpu.matmul %42, %3, %cst_28 {dimension_numbers = #tpu.dot_dimension_numbers<[1], [0], [0], [1], [0, 0, 1, 1], [], []>} : vector<24x24xf32>, vector<24x128xf32>, vector<24x128xf32> -> vector<24x128xf32>
    %cst_29 = arith.constant dense<0.000000e+00> : vector<24x128xf32>
    %50 = tpu.matmul %49, %44, %cst_29 {dimension_numbers = #tpu.dot_dimension_numbers<[1], [0], [0], [1], [0, 0, 1, 1], [], []>} : vector<24x128xf32>, vector<128x128xf32>, vector<24x128xf32> -> vector<24x128xf32>
    %51 = arith.addf %50, %48 : vector<24x128xf32>
    %cst_30 = arith.constant 0.000000e+00 : f32
    %52 = vector.broadcast %cst_30 : f32 to vector<24x128xf32>
    %53 = arith.cmpf ogt, %51, %52 : vector<24x128xf32>
    %cst_31 = arith.constant 0.00999999977 : f32
    %54 = vector.broadcast %cst_31 : f32 to vector<24x128xf32>
    %55 = arith.mulf %54, %51 : vector<24x128xf32>
    %56 = arith.select %53, %51, %55 : vector<24x128xi1>, vector<24x128xf32>
    %57 = vector.extract_strided_slice %56 {offsets = [8, 0], sizes = [8, 128], strides = [1, 1]} : vector<24x128xf32> to vector<8x128xf32>
    %cst_32 = arith.constant dense<0.000000e+00> : vector<24x128xf32>
    %58 = tpu.matmul %42, %56, %cst_32 {dimension_numbers = #tpu.dot_dimension_numbers<[1], [0], [0], [1], [0, 0, 1, 1], [], []>} : vector<24x24xf32>, vector<24x128xf32>, vector<24x128xf32> -> vector<24x128xf32>
    %cst_33 = arith.constant dense<0.000000e+00> : vector<24x128xf32>
    %59 = tpu.matmul %58, %44, %cst_33 {dimension_numbers = #tpu.dot_dimension_numbers<[1], [0], [0], [1], [0, 0, 1, 1], [], []>} : vector<24x128xf32>, vector<128x128xf32>, vector<24x128xf32> -> vector<24x128xf32>
    %60 = arith.addf %59, %48 : vector<24x128xf32>
    %cst_34 = arith.constant 0.000000e+00 : f32
    %61 = vector.broadcast %cst_34 : f32 to vector<24x128xf32>
    %62 = arith.cmpf ogt, %60, %61 : vector<24x128xf32>
    %cst_35 = arith.constant 0.00999999977 : f32
    %63 = vector.broadcast %cst_35 : f32 to vector<24x128xf32>
    %64 = arith.mulf %63, %60 : vector<24x128xf32>
    %65 = arith.select %62, %60, %64 : vector<24x128xi1>, vector<24x128xf32>
    %66 = vector.extract_strided_slice %65 {offsets = [8, 0], sizes = [8, 128], strides = [1, 1]} : vector<24x128xf32> to vector<8x128xf32>
    %67 = arith.maximumf %57, %66 : vector<8x128xf32>
    %cst_36 = arith.constant dense<0.000000e+00> : vector<24x128xf32>
    %68 = tpu.matmul %42, %65, %cst_36 {dimension_numbers = #tpu.dot_dimension_numbers<[1], [0], [0], [1], [0, 0, 1, 1], [], []>} : vector<24x24xf32>, vector<24x128xf32>, vector<24x128xf32> -> vector<24x128xf32>
    %cst_37 = arith.constant dense<0.000000e+00> : vector<24x128xf32>
    %69 = tpu.matmul %68, %44, %cst_37 {dimension_numbers = #tpu.dot_dimension_numbers<[1], [0], [0], [1], [0, 0, 1, 1], [], []>} : vector<24x128xf32>, vector<128x128xf32>, vector<24x128xf32> -> vector<24x128xf32>
    %70 = arith.addf %69, %48 : vector<24x128xf32>
    %cst_38 = arith.constant 0.000000e+00 : f32
    %71 = vector.broadcast %cst_38 : f32 to vector<24x128xf32>
    %72 = arith.cmpf ogt, %70, %71 : vector<24x128xf32>
    %cst_39 = arith.constant 0.00999999977 : f32
    %73 = vector.broadcast %cst_39 : f32 to vector<24x128xf32>
    %74 = arith.mulf %73, %70 : vector<24x128xf32>
    %75 = arith.select %72, %70, %74 : vector<24x128xi1>, vector<24x128xf32>
    %76 = vector.extract_strided_slice %75 {offsets = [8, 0], sizes = [8, 128], strides = [1, 1]} : vector<24x128xf32> to vector<8x128xf32>
    %77 = arith.maximumf %67, %76 : vector<8x128xf32>
    %78 = arith.addf %40, %77 : vector<8x128xf32>
    %c2 = arith.constant 2 : index
    %c0_40 = arith.constant 0 : index
    %c0_41 = arith.constant 0 : index
    %79 = vector.load %arg2[%c2, %c0_40, %c0_41] : memref<3x24x24xf32, #tpu.memory_space<vmem>>, vector<1x24x24xf32>
    %80 = vector.shape_cast %79 : vector<1x24x24xf32> to vector<24x24xf32>
    %c2_42 = arith.constant 2 : index
    %c0_43 = arith.constant 0 : index
    %c0_44 = arith.constant 0 : index
    %81 = vector.load %arg3[%c2_42, %c0_43, %c0_44] : memref<3x128x128xf32, #tpu.memory_space<vmem>>, vector<1x128x128xf32>
    %82 = vector.shape_cast %81 : vector<1x128x128xf32> to vector<128x128xf32>
    %c2_45 = arith.constant 2 : index
    %c0_46 = arith.constant 0 : index
    %c0_47 = arith.constant 0 : index
    %83 = vector.load %arg4[%c2_45, %c0_46, %c0_47] : memref<3x1x128xf32, #tpu.memory_space<vmem>>, vector<1x1x128xf32>
    %84 = vector.shape_cast %83 : vector<1x1x128xf32> to vector<1x128xf32>
    %85 = vector.shape_cast %84 : vector<1x128xf32> to vector<1x128xf32>
    %86 = vector.broadcast %85 : vector<1x128xf32> to vector<24x128xf32>
    %cst_48 = arith.constant dense<0.000000e+00> : vector<24x128xf32>
    %87 = tpu.matmul %80, %3, %cst_48 {dimension_numbers = #tpu.dot_dimension_numbers<[1], [0], [0], [1], [0, 0, 1, 1], [], []>} : vector<24x24xf32>, vector<24x128xf32>, vector<24x128xf32> -> vector<24x128xf32>
    %cst_49 = arith.constant dense<0.000000e+00> : vector<24x128xf32>
    %88 = tpu.matmul %87, %82, %cst_49 {dimension_numbers = #tpu.dot_dimension_numbers<[1], [0], [0], [1], [0, 0, 1, 1], [], []>} : vector<24x128xf32>, vector<128x128xf32>, vector<24x128xf32> -> vector<24x128xf32>
    %89 = arith.addf %88, %86 : vector<24x128xf32>
    %cst_50 = arith.constant 0.000000e+00 : f32
    %90 = vector.broadcast %cst_50 : f32 to vector<24x128xf32>
    %91 = arith.cmpf ogt, %89, %90 : vector<24x128xf32>
    %cst_51 = arith.constant 0.00999999977 : f32
    %92 = vector.broadcast %cst_51 : f32 to vector<24x128xf32>
    %93 = arith.mulf %92, %89 : vector<24x128xf32>
    %94 = arith.select %91, %89, %93 : vector<24x128xi1>, vector<24x128xf32>
    %95 = vector.extract_strided_slice %94 {offsets = [8, 0], sizes = [8, 128], strides = [1, 1]} : vector<24x128xf32> to vector<8x128xf32>
    %cst_52 = arith.constant dense<0.000000e+00> : vector<24x128xf32>
    %96 = tpu.matmul %80, %94, %cst_52 {dimension_numbers = #tpu.dot_dimension_numbers<[1], [0], [0], [1], [0, 0, 1, 1], [], []>} : vector<24x24xf32>, vector<24x128xf32>, vector<24x128xf32> -> vector<24x128xf32>
    %cst_53 = arith.constant dense<0.000000e+00> : vector<24x128xf32>
    %97 = tpu.matmul %96, %82, %cst_53 {dimension_numbers = #tpu.dot_dimension_numbers<[1], [0], [0], [1], [0, 0, 1, 1], [], []>} : vector<24x128xf32>, vector<128x128xf32>, vector<24x128xf32> -> vector<24x128xf32>
    %98 = arith.addf %97, %86 : vector<24x128xf32>
    %cst_54 = arith.constant 0.000000e+00 : f32
    %99 = vector.broadcast %cst_54 : f32 to vector<24x128xf32>
    %100 = arith.cmpf ogt, %98, %99 : vector<24x128xf32>
    %cst_55 = arith.constant 0.00999999977 : f32
    %101 = vector.broadcast %cst_55 : f32 to vector<24x128xf32>
    %102 = arith.mulf %101, %98 : vector<24x128xf32>
    %103 = arith.select %100, %98, %102 : vector<24x128xi1>, vector<24x128xf32>
    %104 = vector.extract_strided_slice %103 {offsets = [8, 0], sizes = [8, 128], strides = [1, 1]} : vector<24x128xf32> to vector<8x128xf32>
    %105 = arith.maximumf %95, %104 : vector<8x128xf32>
    %cst_56 = arith.constant dense<0.000000e+00> : vector<24x128xf32>
    %106 = tpu.matmul %80, %103, %cst_56 {dimension_numbers = #tpu.dot_dimension_numbers<[1], [0], [0], [1], [0, 0, 1, 1], [], []>} : vector<24x24xf32>, vector<24x128xf32>, vector<24x128xf32> -> vector<24x128xf32>
    %cst_57 = arith.constant dense<0.000000e+00> : vector<24x128xf32>
    %107 = tpu.matmul %106, %82, %cst_57 {dimension_numbers = #tpu.dot_dimension_numbers<[1], [0], [0], [1], [0, 0, 1, 1], [], []>} : vector<24x128xf32>, vector<128x128xf32>, vector<24x128xf32> -> vector<24x128xf32>
    %108 = arith.addf %107, %86 : vector<24x128xf32>
    %cst_58 = arith.constant 0.000000e+00 : f32
    %109 = vector.broadcast %cst_58 : f32 to vector<24x128xf32>
    %110 = arith.cmpf ogt, %108, %109 : vector<24x128xf32>
    %cst_59 = arith.constant 0.00999999977 : f32
    %111 = vector.broadcast %cst_59 : f32 to vector<24x128xf32>
    %112 = arith.mulf %111, %108 : vector<24x128xf32>
    %113 = arith.select %110, %108, %112 : vector<24x128xi1>, vector<24x128xf32>
    %114 = vector.extract_strided_slice %113 {offsets = [8, 0], sizes = [8, 128], strides = [1, 1]} : vector<24x128xf32> to vector<8x128xf32>
    %115 = arith.maximumf %105, %114 : vector<8x128xf32>
    %116 = arith.addf %78, %115 : vector<8x128xf32>
    %c0_60 = arith.constant 0 : index
    %c0_61 = arith.constant 0 : index
    %c0_62 = arith.constant 0 : index
    %117 = vector.load %arg5[%c0_60, %c0_61, %c0_62] : memref<1x8x128xf32, #tpu.memory_space<vmem>>, vector<1x8x128xf32>
    %118 = vector.shape_cast %117 : vector<1x8x128xf32> to vector<8x128xf32>
    %119 = vector.shape_cast %116 : vector<8x128xf32> to vector<1x8x128xf32>
    tpu.vector_store %arg5[%c0_60, %c0_61, %c0_62], %119 {strides = array<i32>} : memref<1x8x128xf32, #tpu.memory_space<vmem>>, vector<1x8x128xf32>,
    return
  }
  func.func @transform_0(%arg0: i32) -> (i32, i32) {
    %c0_i32 = arith.constant 0 : i32
    %c0_i32_0 = arith.constant 0 : i32
    %c0_i32_1 = arith.constant 0 : i32
    return %c0_i32, %c0_i32_0 : i32, i32
  }
  func.func @transform_1(%arg0: i32) -> (i32, i32, i32) {
    %c0_i32 = arith.constant 0 : i32
    %c0_i32_0 = arith.constant 0 : i32
    %c0_i32_1 = arith.constant 0 : i32
    %c0_i32_2 = arith.constant 0 : i32
    return %c0_i32, %c0_i32_0, %c0_i32_1 : i32, i32, i32
  }
  func.func @transform_2(%arg0: i32) -> (i32, i32, i32) {
    %c0_i32 = arith.constant 0 : i32
    %c0_i32_0 = arith.constant 0 : i32
    %c0_i32_1 = arith.constant 0 : i32
    %c0_i32_2 = arith.constant 0 : i32
    return %c0_i32, %c0_i32_0, %c0_i32_1 : i32, i32, i32
  }
  func.func @transform_3(%arg0: i32) -> (i32, i32, i32) {
    %c0_i32 = arith.constant 0 : i32
    %c0_i32_0 = arith.constant 0 : i32
    %c0_i32_1 = arith.constant 0 : i32
    %c0_i32_2 = arith.constant 0 : i32
    return %c0_i32, %c0_i32_0, %c0_i32_1 : i32, i32, i32
  }
  func.func @transform_4(%arg0: i32) -> (i32, i32, i32) {
    %c0_i32 = arith.constant 0 : i32
    %c0_i32_0 = arith.constant 0 : i32
    %c0_i32_1 = arith.constant 0 : i32
    return %arg0, %c0_i32, %c0_i32_0 : i32, i32, i32
  }
}

module attributes {stable_mosaic.version = 11 : i64} {
  func.func @_attn_output_kernel(%arg0: memref<16x320xf32, #tpu.memory_space<vmem>>, %arg1: memref<384x320xf32, #tpu.memory_space<vmem>>, %arg2: memref<1x384xf32, #tpu.memory_space<vmem>>, %arg3: memref<16x128xf32, #tpu.memory_space<vmem>>) attributes {dimension_semantics = [], scalar_prefetch = 0 : i64, scratch_operands = 0 : i64, tpu.core_type = #tpu.core_type<tc>} {
    %c0 = arith.constant 0 : index
    %c0_0 = arith.constant 0 : index
    %0 = vector.load %arg0[%c0, %c0_0] : memref<16x320xf32, #tpu.memory_space<vmem>>, vector<16x320xf32>
    %c0_1 = arith.constant 0 : index
    %c0_2 = arith.constant 0 : index
    %1 = vector.load %arg1[%c0_1, %c0_2] : memref<384x320xf32, #tpu.memory_space<vmem>>, vector<384x320xf32>
    %cst = arith.constant dense<0.000000e+00> : vector<16x384xf32>
    %2 = tpu.matmul %0, %1, %cst {dimension_numbers = #tpu.dot_dimension_numbers<[1], [1], [0], [0], [0, 0, 1, 0], [], []>} : vector<16x320xf32>, vector<384x320xf32>, vector<16x384xf32> -> vector<16x384xf32>
    %c0_3 = arith.constant 0 : index
    %c0_4 = arith.constant 0 : index
    %3 = vector.load %arg2[%c0_3, %c0_4] : memref<1x384xf32, #tpu.memory_space<vmem>>, vector<1x384xf32>
    %4 = vector.broadcast %3 : vector<1x384xf32> to vector<16x384xf32>
    %5 = arith.addf %2, %4 : vector<16x384xf32>
    %6 = vector.extract_strided_slice %5 {offsets = [0, 0], sizes = [8, 384], strides = [1, 1]} : vector<16x384xf32> to vector<8x384xf32>
    %7 = vector.extract_strided_slice %6 {offsets = [0, 0], sizes = [8, 128], strides = [1, 1]} : vector<8x384xf32> to vector<8x128xf32>
    %8 = vector.extract_strided_slice %6 {offsets = [0, 128], sizes = [8, 128], strides = [1, 1]} : vector<8x384xf32> to vector<8x128xf32>
    %9 = vector.extract_strided_slice %6 {offsets = [0, 256], sizes = [8, 128], strides = [1, 1]} : vector<8x384xf32> to vector<8x128xf32>
    %cst_5 = arith.constant dense<0.000000e+00> : vector<8x8xf32>
    %10 = tpu.matmul %7, %8, %cst_5 {dimension_numbers = #tpu.dot_dimension_numbers<[1], [1], [0], [0], [0, 0, 1, 0], [], []>} : vector<8x128xf32>, vector<8x128xf32>, vector<8x8xf32> -> vector<8x8xf32>
    %cst_6 = arith.constant 0.0883883461 : f32
    %11 = vector.broadcast %cst_6 : f32 to vector<8x8xf32>
    %12 = arith.mulf %10, %11 : vector<8x8xf32>
    %cst_7 = arith.constant dense<0xFF800000> : vector<8xf32>
    %13 = vector.multi_reduction <maximumf>, %12, %cst_7 [1] : vector<8x8xf32> to vector<8xf32>
    %14 = vector.shape_cast %13 : vector<8xf32> to vector<8x1xf32>
    %15 = vector.broadcast %14 : vector<8x1xf32> to vector<8x8xf32>
    %16 = arith.subf %12, %15 : vector<8x8xf32>
    %17 = math.exp %16 : vector<8x8xf32>
    %cst_8 = arith.constant dense<0.000000e+00> : vector<8xf32>
    %18 = vector.multi_reduction <add>, %17, %cst_8 [1] : vector<8x8xf32> to vector<8xf32>
    %19 = vector.shape_cast %18 : vector<8xf32> to vector<8x1xf32>
    %20 = vector.broadcast %19 : vector<8x1xf32> to vector<8x8xf32>
    %21 = arith.divf %17, %20 : vector<8x8xf32>
    %cst_9 = arith.constant dense<0.000000e+00> : vector<8x128xf32>
    %22 = tpu.matmul %21, %9, %cst_9 {dimension_numbers = #tpu.dot_dimension_numbers<[1], [0], [0], [1], [0, 0, 1, 1], [], []>} : vector<8x8xf32>, vector<8x128xf32>, vector<8x128xf32> -> vector<8x128xf32>
    %c0_10 = arith.constant 0 : index
    %c0_11 = arith.constant 0 : index
    %23 = vector.load %arg3[%c0_10, %c0_11] : memref<16x128xf32, #tpu.memory_space<vmem>>, vector<8x128xf32>
    tpu.vector_store %arg3[%c0_10, %c0_11], %22 {strides = array<i32>} : memref<16x128xf32, #tpu.memory_space<vmem>>, vector<8x128xf32>,
    %24 = vector.extract_strided_slice %5 {offsets = [8, 0], sizes = [8, 384], strides = [1, 1]} : vector<16x384xf32> to vector<8x384xf32>
    %25 = vector.extract_strided_slice %24 {offsets = [0, 0], sizes = [8, 128], strides = [1, 1]} : vector<8x384xf32> to vector<8x128xf32>
    %26 = vector.extract_strided_slice %24 {offsets = [0, 128], sizes = [8, 128], strides = [1, 1]} : vector<8x384xf32> to vector<8x128xf32>
    %27 = vector.extract_strided_slice %24 {offsets = [0, 256], sizes = [8, 128], strides = [1, 1]} : vector<8x384xf32> to vector<8x128xf32>
    %cst_12 = arith.constant dense<0.000000e+00> : vector<8x8xf32>
    %28 = tpu.matmul %25, %26, %cst_12 {dimension_numbers = #tpu.dot_dimension_numbers<[1], [1], [0], [0], [0, 0, 1, 0], [], []>} : vector<8x128xf32>, vector<8x128xf32>, vector<8x8xf32> -> vector<8x8xf32>
    %cst_13 = arith.constant 0.0883883461 : f32
    %29 = vector.broadcast %cst_13 : f32 to vector<8x8xf32>
    %30 = arith.mulf %28, %29 : vector<8x8xf32>
    %cst_14 = arith.constant dense<0xFF800000> : vector<8xf32>
    %31 = vector.multi_reduction <maximumf>, %30, %cst_14 [1] : vector<8x8xf32> to vector<8xf32>
    %32 = vector.shape_cast %31 : vector<8xf32> to vector<8x1xf32>
    %33 = vector.broadcast %32 : vector<8x1xf32> to vector<8x8xf32>
    %34 = arith.subf %30, %33 : vector<8x8xf32>
    %35 = math.exp %34 : vector<8x8xf32>
    %cst_15 = arith.constant dense<0.000000e+00> : vector<8xf32>
    %36 = vector.multi_reduction <add>, %35, %cst_15 [1] : vector<8x8xf32> to vector<8xf32>
    %37 = vector.shape_cast %36 : vector<8xf32> to vector<8x1xf32>
    %38 = vector.broadcast %37 : vector<8x1xf32> to vector<8x8xf32>
    %39 = arith.divf %35, %38 : vector<8x8xf32>
    %cst_16 = arith.constant dense<0.000000e+00> : vector<8x128xf32>
    %40 = tpu.matmul %39, %27, %cst_16 {dimension_numbers = #tpu.dot_dimension_numbers<[1], [0], [0], [1], [0, 0, 1, 1], [], []>} : vector<8x8xf32>, vector<8x128xf32>, vector<8x128xf32> -> vector<8x128xf32>
    %c8 = arith.constant 8 : index
    %c0_17 = arith.constant 0 : index
    %41 = vector.load %arg3[%c8, %c0_17] : memref<16x128xf32, #tpu.memory_space<vmem>>, vector<8x128xf32>
    tpu.vector_store %arg3[%c8, %c0_17], %40 {strides = array<i32>} : memref<16x128xf32, #tpu.memory_space<vmem>>, vector<8x128xf32>,
    return
  }
}

</mosaic_0001>

<llo_original>
// kernel: tile.26
$region0: #{tile.26}
  #allocation0 [shape = 's32[1]{0}', space=sflag, size = 0x4, scoped, tag = 'scoped memory for tile.26']
  %s0 = inlined_call_operand.vmem [shape: f32[64], index: 0, kind: input, shape index: {}]
  %s1 = inlined_call_operand.vmem [shape: f32[2,64], index: 1, kind: output, shape index: {}]
  // Predicated region
  $region2: #{tile.26} parent=0 // pred_check
    _
  $region3: #{tile.26} parent=0 // pred_check_branch
    %3 = sbr.rel (0) target = $region5
  $region4: #{tile.26} parent=0 // pred_region
    _
  $region5: #{tile.26} parent=0 // pred_fallthru
    _
  %v4 = vld [vmem:[%s0] ss:$0 sm:$0xff]
  %5 = vst [vmem:[%s1] sm:$0x3] %v4

// kernel: tile.33
$region0: #{tile.33}
  %s0 = inlined_call_operand.vmem [shape: f32[2,64], index: 0, kind: input, shape index: {}]
  %s1 = inlined_call_operand.vmem [shape: f32[1,128], index: 1, kind: output, shape index: {}]
  $region1: #{tile.33} parent=0
    #allocation0 [shape = 'u8[4096]{0}', space=vmem, size = 0x1000, scoped, tag = 'scoped mem for output reshape']
    #allocation1 [shape = 'u8[4096]{0}', space=vmem, size = 0x1000, scoped, tag = 'scoped mem for input reshape']
    %s3 = sshllo.u32 0, 2
    %v4 = vld [vmem:[%s0] sm:%s3]
    %5 = vst [vmem:[#allocation1] sm:%s3] %v4
    %v6 = vld [vmem:[#allocation1] sm:$0x1]
    %vm7 = vcmask 523264
    %8 = vst.msk [vmem:[#allocation0] sm:$0x1] %vm7, %v6
    %s9 = scalar_lea.vmem [#allocation1], 1
    %v10 = vld [vmem:[%s9] sm:$0x1]
    %11 = vrot.lane.b32.xlu0 %v10, 64
    %v12 = vpop.permute.xlu0 %11
    %vm13 = vcmask 1048064
    %14 = vst.msk [vmem:[#allocation0] sm:$0x1] %vm13, %v12
    %s16 = sshllo.u32 0, 1
    %v18 = vld [vmem:[#allocation0] sm:%s16]
    %s19 = sshllo.u32 0, 1
    %20 = vst [vmem:[%s1] sm:%s19] %v18

// kernel: stsgcn_forward.3
$region0: #{stsgcn_forward.3}
  #allocation0 [shape = 'u32[]', space=smem, size = 0x4, offset = 0x4, fixed_abs, tag = 'smem constant byte address 0x4 - core index']
  #allocation1 [shape = 'u32[144,128]{1,0:T(1,128)}', space=vmem, size = 0x12000, scoped, tag = 'internal scratch']
  %s0 = inlined_call_operand.vmem [shape: f32[72,128], index: 0, kind: input, shape index: {}]
  %s1 = inlined_call_operand.vmem [shape: f32[3,24,24], index: 1, kind: input, shape index: {}]
  %s2 = inlined_call_operand.vmem [shape: f32[3,128,128], index: 2, kind: input, shape index: {}]
  %s3 = inlined_call_operand.vmem [shape: f32[3,1,128], index: 3, kind: input, shape index: {}]
  %s4 = inlined_call_operand.vmem [shape: f32[7,8,128], index: 4, kind: output, shape index: {}]
  %s5 = sld [smem:[#allocation0]]
  $region49: #{stsgcn_forward.3} parent=0
    _
  %s7 = ssub.s32 1, %s5
  %s8 = scalar_select 0, %s7, %s5
  loop: start=0, step=1, limit=9
  $region2: #{stsgcn_forward.3} parent=0 // loop_pre_header
    _
  $region3: #{stsgcn_forward.3} parent=0 // loop_header
    %s10 = sphi 0, %s14
    %p11 = scmp.ge.s32.totalorder %s10, 9
    %s18 = sphi 0, %s18
    %s20 = sphi 0, %s18
    %s21 = sphi 0, %s20
    %s35 = sphi 0, %s21
    %s39 = sphi 0, %s39
    %s41 = sphi 0, %s39
    %s42 = sphi 0, %s41
    %s56 = sphi 0, %s42
    %s60 = sphi 0, %s60
    %s62 = sphi 0, %s60
    %s63 = sphi 0, %s62
    %s77 = sphi 0, %s63
    %s81 = sphi 0, %s81
    %s83 = sphi 0, %s81
    %s84 = sphi 0, %s83
    %s98 = sphi 0, %s84
    %s104 = sphi 0, %s106
    %s107 = sphi 0, %s104
    %s108 = sphi 0, %s107
    %s124 = sphi 0, %s108
  $region4: #{stsgcn_forward.3} parent=0 // loop_header_branch
    %13 = sbr.rel (%p11) target = $region8
  $region5: #{stsgcn_forward.3} parent=0 // loop_body
    %s15 = ssub.s32 %s10, 1
    %s16 = ssub.s32 %s10, 2
    %s17 = sadd.s32 %s10, 1
    %s19 = sadd.s32 %s18, 1
    %p22 = scmp.eq.s32.totalorder %s10, 6
    %p23 = scmp.ne.s32.totalorder %s18, %s20
    %p24 = scmp.eq.s32.totalorder %s10, 0
    %p25 = por %p23, %p24
    %p26 = scmp.ne.s32.totalorder %s18, %s20
    %p27 = scmp.eq.s32.totalorder %s15, 6
    %p28 = por %p26, %p27
    %p29 = scmp.ne.s32.totalorder %s20, %s21
    %p30 = scmp.eq.s32.totalorder %s15, 0
    %p31 = por %p29, %p30
    %p32 = scmp.ne.s32.totalorder %s20, %s21
    %p33 = scmp.eq.s32.totalorder %s16, 6
    %p34 = por %p32, %p33
    %p36 = scmp.ne.s32.totalorder %s21, %s35
    %p37 = scmp.eq.s32.totalorder %s16, 0
    %p38 = por %p36, %p37
    %s40 = sadd.s32 %s39, 1
    %p43 = scmp.eq.s32.totalorder %s10, 6
    %p44 = scmp.ne.s32.totalorder %s39, %s41
    %p45 = scmp.eq.s32.totalorder %s10, 0
    %p46 = por %p44, %p45
    %p47 = scmp.ne.s32.totalorder %s39, %s41
    %p48 = scmp.eq.s32.totalorder %s15, 6
    %p49 = por %p47, %p48
    %p50 = scmp.ne.s32.totalorder %s41, %s42
    %p51 = scmp.eq.s32.totalorder %s15, 0
    %p52 = por %p50, %p51
    %p53 = scmp.ne.s32.totalorder %s41, %s42
    %p54 = scmp.eq.s32.totalorder %s16, 6
    %p55 = por %p53, %p54
    %p57 = scmp.ne.s32.totalorder %s42, %s56
    %p58 = scmp.eq.s32.totalorder %s16, 0
    %p59 = por %p57, %p58
    %s61 = sadd.s32 %s60, 1
    %p64 = scmp.eq.s32.totalorder %s10, 6
    %p65 = scmp.ne.s32.totalorder %s60, %s62
    %p66 = scmp.eq.s32.totalorder %s10, 0
    %p67 = por %p65, %p66
    %p68 = scmp.ne.s32.totalorder %s60, %s62
    %p69 = scmp.eq.s32.totalorder %s15, 6
    %p70 = por %p68, %p69
    %p71 = scmp.ne.s32.totalorder %s62, %s63
    %p72 = scmp.eq.s32.totalorder %s15, 0
    %p73 = por %p71, %p72
    %p74 = scmp.ne.s32.totalorder %s62, %s63
    %p75 = scmp.eq.s32.totalorder %s16, 6
    %p76 = por %p74, %p75
    %p78 = scmp.ne.s32.totalorder %s63, %s77
    %p79 = scmp.eq.s32.totalorder %s16, 0
    %p80 = por %p78, %p79
    %s82 = sadd.s32 %s81, 1
    %p85 = scmp.eq.s32.totalorder %s10, 6
    %p86 = scmp.ne.s32.totalorder %s81, %s83
    %p87 = scmp.eq.s32.totalorder %s10, 0
    %p88 = por %p86, %p87
    %p89 = scmp.ne.s32.totalorder %s81, %s83
    %p90 = scmp.eq.s32.totalorder %s15, 6
    %p91 = por %p89, %p90
    %p92 = scmp.ne.s32.totalorder %s83, %s84
    %p93 = scmp.eq.s32.totalorder %s15, 0
    %p94 = por %p92, %p93
    %p95 = scmp.ne.s32.totalorder %s83, %s84
    %p96 = scmp.eq.s32.totalorder %s16, 6
    %p97 = por %p95, %p96
    %p99 = scmp.ne.s32.totalorder %s84, %s98
    %p100 = scmp.eq.s32.totalorder %s16, 0
    %p101 = por %p99, %p100
    %s102 = ssub.s32 %s10, %s17
    %p103 = scmp.eq.s32.totalorder %s102, 0
    %s105 = sadd.s32 %s104, 1
    %s106 = scalar_select %p103, %s104, %s105
    %p109 = pneg %p103
    %p110 = scmp.eq.s32.totalorder %s10, 6
    %p111 = por %p109, %p110
    %p112 = scmp.ne.s32.totalorder %s104, %s107
    %p113 = scmp.eq.s32.totalorder %s10, 0
    %p114 = por %p112, %p113
    %p115 = scmp.ne.s32.totalorder %s104, %s107
    %p116 = scmp.eq.s32.totalorder %s15, 6
    %p117 = por %p115, %p116
    %p118 = scmp.ne.s32.totalorder %s107, %s108
    %p119 = scmp.eq.s32.totalorder %s15, 0
    %p120 = por %p118, %p119
    %p121 = scmp.ne.s32.totalorder %s107, %s108
    %p122 = scmp.eq.s32.totalorder %s16, 6
    %p123 = por %p121, %p122
    %p125 = scmp.ne.s32.totalorder %s108, %s124
    %p126 = scmp.eq.s32.totalorder %s16, 0
    %p127 = por %p125, %p126
    %p128 = scmp.le.s32.totalorder 1, %s10
    %p129 = scmp.lt.s32.totalorder %s10, 8
    %p130 = pnand %p128, %p129
    %p131 = pneg %p130
    // Predicated region
    $region9: #{stsgcn_forward.3} parent=5 // pred_check
      _
    $region10: #{stsgcn_forward.3} parent=5 // pred_check_branch
      %133 = sbr.rel (%p130) target = $region12
    $region11: #{stsgcn_forward.3} parent=5 // pred_region
      %s134 = ssub.s32 %s10, 1
      // Predicated region
      $region13: #{stsgcn_forward.3} parent=11 // pred_check
        %p135 = pneg %p31
      $region14: #{stsgcn_forward.3} parent=11 // pred_check_branch
        %137 = sbr.rel (%p135) target = $region16
      $region15: #{stsgcn_forward.3} parent=11 // pred_region
        _
      $region16: #{stsgcn_forward.3} parent=11 // pred_fallthru
        _
      // Predicated region
      $region17: #{stsgcn_forward.3} parent=11 // pred_check
        %p138 = pneg %p52
      $region18: #{stsgcn_forward.3} parent=11 // pred_check_branch
        %140 = sbr.rel (%p138) target = $region20
      $region19: #{stsgcn_forward.3} parent=11 // pred_region
        _
      $region20: #{stsgcn_forward.3} parent=11 // pred_fallthru
        _
      // Predicated region
      $region21: #{stsgcn_forward.3} parent=11 // pred_check
        %p141 = pneg %p73
      $region22: #{stsgcn_forward.3} parent=11 // pred_check_branch
        %143 = sbr.rel (%p141) target = $region24
      $region23: #{stsgcn_forward.3} parent=11 // pred_region
        _
      $region24: #{stsgcn_forward.3} parent=11 // pred_fallthru
        _
      // Predicated region
      $region25: #{stsgcn_forward.3} parent=11 // pred_check
        %p144 = pneg %p94
      $region26: #{stsgcn_forward.3} parent=11 // pred_check_branch
        %146 = sbr.rel (%p144) target = $region28
      $region27: #{stsgcn_forward.3} parent=11 // pred_region
        _
      $region28: #{stsgcn_forward.3} parent=11 // pred_fallthru
        _
    $region12: #{stsgcn_forward.3} parent=5 // pred_fallthru
      _
    %p147 = scmp.lt.s32.totalorder %s10, 7
    // Predicated region
    $region29: #{stsgcn_forward.3} parent=5 // pred_check
      %p148 = pneg %p147
    $region30: #{stsgcn_forward.3} parent=5 // pred_check_branch
      %150 = sbr.rel (%p148) target = $region32
    $region31: #{stsgcn_forward.3} parent=5 // pred_region
      _
    $region32: #{stsgcn_forward.3} parent=5 // pred_fallthru
      _
    %p151 = scmp.le.s32.totalorder 1, %s10
    %p152 = scmp.lt.s32.totalorder %s10, 8
    %p153 = pnand %p151, %p152
    %p154 = pneg %p153
    // Predicated region
    $region33: #{stsgcn_forward.3} parent=5 // pred_check
      _
    $region34: #{stsgcn_forward.3} parent=5 // pred_check_branch
      %156 = sbr.rel (%p153) target = $region36
    $region35: #{stsgcn_forward.3} parent=5 // pred_region
      %s157 = ssub.s32 %s10, 1
      %p158 = pneg %p31
      %p159 = pneg %p28
      %p160 = pneg %p52
      %p161 = pneg %p49
      %p162 = pneg %p73
      %p163 = pneg %p70
      %p164 = pneg %p94
      %p165 = pneg %p91
      %p166 = pneg %p120
      %p167 = pneg %p117
      %p168 = scmp.lt.s32.totalorder %s15, 6
      %s169 = scalar_select %p168, %s15, 6
      %s170 = smul.addr %s169, 8
      %s171 = scalar_lea.vmem %s4, %s170
      %p172 = scmp.lt.s32.totalorder %s15, 6
      %s173 = scalar_select %p172, %s15, 6
      %s174 = smul.addr %s173, 8
      %s175 = scalar_lea.vmem %s4, %s174
      %s176 = smul.u32 %s15, 8
      %s177 = scalar_lea.vmem %s0, %s176
      %v178 = vld [vmem:[%s177] sm:$0xff]
      %v179 = vld [vmem:[%s177 + $0x8] sm:$0xff]
      %v180 = vld [vmem:[%s177 + $0x10] sm:$0xff]
      %v181 = vld [vmem:[%s1] sm:$0xff]
      %v182 = vld [vmem:[%s1 + $0x8] sm:$0xff]
      %v183 = vld [vmem:[%s1 + $0x10] sm:$0xff]
      %v184 = vld [vmem:[%s2] sm:$0xff]
      %v185 = vld [vmem:[%s2 + $0x8] sm:$0xff]
      %v186 = vld [vmem:[%s2 + $0x10] sm:$0xff]
      %v187 = vld [vmem:[%s2 + $0x18] sm:$0xff]
      %v188 = vld [vmem:[%s2 + $0x20] sm:$0xff]
      %v189 = vld [vmem:[%s2 + $0x28] sm:$0xff]
      %v190 = vld [vmem:[%s2 + $0x30] sm:$0xff]
      %v191 = vld [vmem:[%s2 + $0x38] sm:$0xff]
      %v192 = vld [vmem:[%s2 + $0x40] sm:$0xff]
      %v193 = vld [vmem:[%s2 + $0x48] sm:$0xff]
      %v194 = vld [vmem:[%s2 + $0x50] sm:$0xff]
      %v195 = vld [vmem:[%s2 + $0x58] sm:$0xff]
      %v196 = vld [vmem:[%s2 + $0x60] sm:$0xff]
      %v197 = vld [vmem:[%s2 + $0x68] sm:$0xff]
      %v198 = vld [vmem:[%s2 + $0x70] sm:$0xff]
      %v199 = vld [vmem:[%s2 + $0x78] sm:$0xff]
      %v200 = vld [vmem:[%s3] sm:$0x1]
      %v202 = vlaneseq
      %v203 = vshrl.u32 %v202, 7
      %v204 = vsub.s32 0, %v203
      %v205 = vrot.slane %v200, %v204
      %vm207 = vcmask 195584
      %v209 = vsel %vm207, %v181, 0
      %v212 = vsel %vm207, %v182, 0
      %v215 = vsel %vm207, %v183, 0
      %217 = vmatprep.subr.mxu0 0.0
      %218 = vmatpush1.msra.mxu0 %v178
      %219 = vmatprep.subr.mxu0 0.0
      %220 = vmatpush1.msra.mxu0 %v179
      %221 = vmatprep.subr.mxu0 0.0
      %222 = vmatpush1.msra.mxu0 %v180
      %223 = vmatprep.subr.mxu0 0.0
      %224 = vmatpush1.msra.mxu0 0.0
      %225 = vmatprep.subr.mxu0 0.0
      %226 = vmatpush1.msra.mxu0 0.0
      %227 = vmatprep.subr.mxu0 0.0
      %228 = vmatpush1.msra.mxu0 0.0
      %229 = vmatprep.subr.mxu0 0.0
      %230 = vmatpush1.msra.mxu0 0.0
      %231 = vmatprep.subr.mxu0 0.0
      %232 = vmatpush1.msra.mxu0 0.0
      %233 = vmatprep.subr.mxu0 0.0
      %234 = vmatpush1.msra.mxu0 0.0
      %235 = vmatprep.subr.mxu0 0.0
      %236 = vmatpush1.msra.mxu0 0.0
      %237 = vmatprep.subr.mxu0 0.0
      %238 = vmatpush1.msra.mxu0 0.0
      %239 = vmatprep.subr.mxu0 0.0
      %240 = vmatpush1.msra.mxu0 0.0
      %241 = vmatprep.subr.mxu0 0.0
      %242 = vmatpush1.msra.mxu0 0.0
      %243 = vmatprep.subr.mxu0 0.0
      %244 = vmatpush1.msra.mxu0 0.0
      %245 = vmatprep.subr.mxu0 0.0
      %246 = vmatpush1.msra.mxu0 0.0
      %247 = vmatprep.subr.mxu0 0.0
      %248 = vmatpush1.msra.mxu0 0.0
      %249 = vmatprep.subr.mxu0 0.0
      %250 = vmatpush1.msra.mxu0 0.0
      %251 = vmatprep.subr.mxu0 0.0
      %252 = vmatpush1.msra.mxu0 0.0
      %253 = vmatprep.subr.mxu0 0.0
      %254 = vmatpush1.msra.mxu0 0.0
      %255 = vmatprep.subr.mxu0 0.0
      %256 = vmatpush1.msra.mxu0 0.0
      %257 = vmatprep.subr.mxu0 0.0
      %258 = vmatpush1.msra.mxu0 0.0
      %259 = vmatprep.subr.mxu0 0.0
      %260 = vmatpush1.msra.mxu0 0.0
      %261 = vmatprep.subr.mxu0 0.0
      %262 = vmatpush1.msra.mxu0 0.0
      %263 = vmatprep.subr.mxu0 0.0
      %264 = vmatpush1.msra.mxu0 0.0
      %265 = vmatprep.subr.mxu0 0.0
      %266 = vmatpush1.msra.mxu0 0.0
      %267 = vmatprep.subr.mxu0 0.0
      %268 = vmatpush1.msra.mxu0 0.0
      %269 = vmatprep.subr.mxu0 0.0
      %270 = vmatpush1.msra.mxu0 0.0
      %271 = vmatprep.subr.mxu0 0.0
      %272 = vmatpush1.msra.mxu0 0.0
      %273 = vmatprep.subr.mxu0 0.0
      %274 = vmatpush1.msra.mxu0 0.0
      %275 = vmatprep.subr.mxu0 0.0
      %276 = vmatpush1.msra.mxu0 0.0
      %277 = vmatprep.subr.mxu0 0.0
      %278 = vmatpush1.msra.mxu0 0.0
      %279 = vmatprep.subr.mxu0 0.0
      %280 = vmatpush1.msra.mxu0 0.0
      %281 = vmatprep.mubr.f32.mxu0 0.0
      %282 = vmatmul.mubr.f32.gmra.mrb[0].mxu0 %v209
      %v283 = vpop.f32.mrb[0].mxu0
      %v284 = vadd.f32 0.0, %v283
      %v285 = vpop.f32.mrb[0].mxu0
      %286 = vmatprep.mubr.f32.mxu0 0.0
      %287 = vmatmul.mubr.f32.gmra.mrb[0].mxu0 %v212
      %v288 = vpop.f32.mrb[0].mxu0
      %v289 = vadd.f32 0.0, %v288
      %v290 = vpop.f32.mrb[0].mxu0
      %291 = vmatprep.mubr.f32.mxu0 0.0
      %292 = vmatmul.mubr.f32.gmra.mrb[0].mxu0 %v215
      %v293 = vpop.f32.mrb[0].mxu0
      %v294 = vadd.f32 0.0, %v293
      %v295 = vpop.f32.mrb[0].mxu0
      %296 = vdwg.mxu0
      %297 = vmatprep.subr.mxu0 0.0
      %298 = vmatpush1.msra.mxu0 %v184
      %299 = vmatprep.subr.mxu0 0.0
      %300 = vmatpush1.msra.mxu0 %v185
      %301 = vmatprep.subr.mxu0 0.0
      %302 = vmatpush1.msra.mxu0 %v186
      %303 = vmatprep.subr.mxu0 0.0
      %304 = vmatpush1.msra.mxu0 %v187
      %305 = vmatprep.subr.mxu0 0.0
      %306 = vmatpush1.msra.mxu0 %v188
      %307 = vmatprep.subr.mxu0 0.0
      %308 = vmatpush1.msra.mxu0 %v189
      %309 = vmatprep.subr.mxu0 0.0
      %310 = vmatpush1.msra.mxu0 %v190
      %311 = vmatprep.subr.mxu0 0.0
      %312 = vmatpush1.msra.mxu0 %v191
      %313 = vmatprep.subr.mxu0 0.0
      %314 = vmatpush1.msra.mxu0 %v192
      %315 = vmatprep.subr.mxu0 0.0
      %316 = vmatpush1.msra.mxu0 %v193
      %317 = vmatprep.subr.mxu0 0.0
      %318 = vmatpush1.msra.mxu0 %v194
      %319 = vmatprep.subr.mxu0 0.0
      %320 = vmatpush1.msra.mxu0 %v195
      %321 = vmatprep.subr.mxu0 0.0
      %322 = vmatpush1.msra.mxu0 %v196
      %323 = vmatprep.subr.mxu0 0.0
      %324 = vmatpush1.msra.mxu0 %v197
      %325 = vmatprep.subr.mxu0 0.0
      %326 = vmatpush1.msra.mxu0 %v198
      %327 = vmatprep.subr.mxu0 0.0
      %328 = vmatpush1.msra.mxu0 %v199
      %329 = vmatprep.subr.mxu0 0.0
      %330 = vmatpush1.msra.mxu0 0.0
      %331 = vmatprep.subr.mxu0 0.0
      %332 = vmatpush1.msra.mxu0 0.0
      %333 = vmatprep.subr.mxu0 0.0
      %334 = vmatpush1.msra.mxu0 0.0
      %335 = vmatprep.subr.mxu0 0.0
      %336 = vmatpush1.msra.mxu0 0.0
      %337 = vmatprep.subr.mxu0 0.0
      %338 = vmatpush1.msra.mxu0 0.0
      %339 = vmatprep.subr.mxu0 0.0
      %340 = vmatpush1.msra.mxu0 0.0
      %341 = vmatprep.subr.mxu0 0.0
      %342 = vmatpush1.msra.mxu0 0.0
      %343 = vmatprep.subr.mxu0 0.0
      %344 = vmatpush1.msra.mxu0 0.0
      %345 = vmatprep.subr.mxu0 0.0
      %346 = vmatpush1.msra.mxu0 0.0
      %347 = vmatprep.subr.mxu0 0.0
      %348 = vmatpush1.msra.mxu0 0.0
      %349 = vmatprep.subr.mxu0 0.0
      %350 = vmatpush1.msra.mxu0 0.0
      %351 = vmatprep.subr.mxu0 0.0
      %352 = vmatpush1.msra.mxu0 0.0
      %353 = vmatprep.subr.mxu0 0.0
      %354 = vmatpush1.msra.mxu0 0.0
      %355 = vmatprep.subr.mxu0 0.0
      %356 = vmatpush1.msra.mxu0 0.0
      %357 = vmatprep.subr.mxu0 0.0
      %358 = vmatpush1.msra.mxu0 0.0
      %359 = vmatprep.subr.mxu0 0.0
      %360 = vmatpush1.msra.mxu0 0.0
      %361 = vmatprep.mubr.f32.mxu0 0.0
      %362 = vmatmul.mubr.f32.gmra.mrb[0].mxu0 %v284
      %v363 = vpop.f32.mrb[0].mxu0
      %v364 = vadd.f32 %v205, %v363
      %v365 = vpop.f32.mrb[0].mxu0
      %366 = vmatprep.mubr.f32.mxu0 0.0
      %367 = vmatmul.mubr.f32.gmra.mrb[0].mxu0 %v289
      %v368 = vpop.f32.mrb[0].mxu0
      %v369 = vadd.f32 %v205, %v368
      %v370 = vpop.f32.mrb[0].mxu0
      %371 = vmatprep.mubr.f32.mxu0 0.0
      %372 = vmatmul.mubr.f32.gmra.mrb[0].mxu0 %v294
      %v373 = vpop.f32.mrb[0].mxu0
      %v374 = vadd.f32 %v205, %v373
      %v375 = vpop.f32.mrb[0].mxu0
      %376 = vdwg.mxu0
      %vm377 = vcmp.gt.f32.partialorder %v364, 0.0
      %vm378 = vcmp.gt.f32.partialorder %v369, 0.0
      %vm379 = vcmp.gt.f32.partialorder %v374, 0.0
      %v380 = vmul.f32 %v364, 0.01
      %v381 = vmul.f32 %v369, 0.01
      %v382 = vmul.f32 %v374, 0.01
      %v383 = vsel %vm377, %v364, %v380
      %v384 = vsel %vm378, %v369, %v381
      %v385 = vsel %vm379, %v374, %v382
      %386 = vmatprep.subr.mxu0 0.0
      %387 = vmatpush1.msra.mxu0 %v383
      %388 = vmatprep.subr.mxu0 0.0
      %389 = vmatpush1.msra.mxu0 %v384
      %390 = vmatprep.subr.mxu0 0.0
      %391 = vmatpush1.msra.mxu0 %v385
      %392 = vmatprep.subr.mxu0 0.0
      %393 = vmatpush1.msra.mxu0 0.0
      %394 = vmatprep.subr.mxu0 0.0
      %395 = vmatpush1.msra.mxu0 0.0
      %396 = vmatprep.subr.mxu0 0.0
      %397 = vmatpush1.msra.mxu0 0.0
      %398 = vmatprep.subr.mxu0 0.0
      %399 = vmatpush1.msra.mxu0 0.0
      %400 = vmatprep.subr.mxu0 0.0
      %401 = vmatpush1.msra.mxu0 0.0
      %402 = vmatprep.subr.mxu0 0.0
      %403 = vmatpush1.msra.mxu0 0.0
      %404 = vmatprep.subr.mxu0 0.0
      %405 = vmatpush1.msra.mxu0 0.0
      %406 = vmatprep.subr.mxu0 0.0
      %407 = vmatpush1.msra.mxu0 0.0
      %408 = vmatprep.subr.mxu0 0.0
      %409 = vmatpush1.msra.mxu0 0.0
      %410 = vmatprep.subr.mxu0 0.0
      %411 = vmatpush1.msra.mxu0 0.0
      %412 = vmatprep.subr.mxu0 0.0
      %413 = vmatpush1.msra.mxu0 0.0
      %414 = vmatprep.subr.mxu0 0.0
      %415 = vmatpush1.msra.mxu0 0.0
      %416 = vmatprep.subr.mxu0 0.0
      %417 = vmatpush1.msra.mxu0 0.0
      %418 = vmatprep.subr.mxu0 0.0
      %419 = vmatpush1.msra.mxu0 0.0
      %420 = vmatprep.subr.mxu0 0.0
      %421 = vmatpush1.msra.mxu0 0.0
      %422 = vmatprep.subr.mxu0 0.0
      %423 = vmatpush1.msra.mxu0 0.0
      %424 = vmatprep.subr.mxu0 0.0
      %425 = vmatpush1.msra.mxu0 0.0
      %426 = vmatprep.subr.mxu0 0.0
      %427 = vmatpush1.msra.mxu0 0.0
      %428 = vmatprep.subr.mxu0 0.0
      %429 = vmatpush1.msra.mxu0 0.0
      %430 = vmatprep.subr.mxu0 0.0
      %431 = vmatpush1.msra.mxu0 0.0
      %432 = vmatprep.subr.mxu0 0.0
      %433 = vmatpush1.msra.mxu0 0.0
      %434 = vmatprep.subr.mxu0 0.0
      %435 = vmatpush1.msra.mxu0 0.0
      %436 = vmatprep.subr.mxu0 0.0
      %437 = vmatpush1.msra.mxu0 0.0
      %438 = vmatprep.subr.mxu0 0.0
      %439 = vmatpush1.msra.mxu0 0.0
      %440 = vmatprep.subr.mxu0 0.0
      %441 = vmatpush1.msra.mxu0 0.0
      %442 = vmatprep.subr.mxu0 0.0
      %443 = vmatpush1.msra.mxu0 0.0
      %444 = vmatprep.subr.mxu0 0.0
      %445 = vmatpush1.msra.mxu0 0.0
      %446 = vmatprep.subr.mxu0 0.0
      %447 = vmatpush1.msra.mxu0 0.0
      %448 = vmatprep.subr.mxu0 0.0
      %449 = vmatpush1.msra.mxu0 0.0
      %450 = vmatprep.mubr.f32.mxu0 0.0
      %451 = vmatmul.mubr.f32.gmra.mrb[0].mxu0 %v209
      %v452 = vpop.f32.mrb[0].mxu0
      %v453 = vadd.f32 0.0, %v452
      %v454 = vpop.f32.mrb[0].mxu0
      %455 = vmatprep.mubr.f32.mxu0 0.0
      %456 = vmatmul.mubr.f32.gmra.mrb[0].mxu0 %v212
      %v457 = vpop.f32.mrb[0].mxu0
      %v458 = vadd.f32 0.0, %v457
      %v459 = vpop.f32.mrb[0].mxu0
      %460 = vmatprep.mubr.f32.mxu0 0.0
      %461 = vmatmul.mubr.f32.gmra.mrb[0].mxu0 %v215
      %v462 = vpop.f32.mrb[0].mxu0
      %v463 = vadd.f32 0.0, %v462
      %v464 = vpop.f32.mrb[0].mxu0
      %465 = vdwg.mxu0
      %466 = vmatprep.subr.mxu0 0.0
      %467 = vmatpush1.msra.mxu0 %v184
      %468 = vmatprep.subr.mxu0 0.0
      %469 = vmatpush1.msra.mxu0 %v185
      %470 = vmatprep.subr.mxu0 0.0
      %471 = vmatpush1.msra.mxu0 %v186
      %472 = vmatprep.subr.mxu0 0.0
      %473 = vmatpush1.msra.mxu0 %v187
      %474 = vmatprep.subr.mxu0 0.0
      %475 = vmatpush1.msra.mxu0 %v188
      %476 = vmatprep.subr.mxu0 0.0
      %477 = vmatpush1.msra.mxu0 %v189
      %478 = vmatprep.subr.mxu0 0.0
      %479 = vmatpush1.msra.mxu0 %v190
      %480 = vmatprep.subr.mxu0 0.0
      %481 = vmatpush1.msra.mxu0 %v191
      %482 = vmatprep.subr.mxu0 0.0
      %483 = vmatpush1.msra.mxu0 %v192
      %484 = vmatprep.subr.mxu0 0.0
      %485 = vmatpush1.msra.mxu0 %v193
      %486 = vmatprep.subr.mxu0 0.0
      %487 = vmatpush1.msra.mxu0 %v194
      %488 = vmatprep.subr.mxu0 0.0
      %489 = vmatpush1.msra.mxu0 %v195
      %490 = vmatprep.subr.mxu0 0.0
      %491 = vmatpush1.msra.mxu0 %v196
      %492 = vmatprep.subr.mxu0 0.0
      %493 = vmatpush1.msra.mxu0 %v197
      %494 = vmatprep.subr.mxu0 0.0
      %495 = vmatpush1.msra.mxu0 %v198
      %496 = vmatprep.subr.mxu0 0.0
      %497 = vmatpush1.msra.mxu0 %v199
      %498 = vmatprep.subr.mxu0 0.0
      %499 = vmatpush1.msra.mxu0 0.0
      %500 = vmatprep.subr.mxu0 0.0
      %501 = vmatpush1.msra.mxu0 0.0
      %502 = vmatprep.subr.mxu0 0.0
      %503 = vmatpush1.msra.mxu0 0.0
      %504 = vmatprep.subr.mxu0 0.0
      %505 = vmatpush1.msra.mxu0 0.0
      %506 = vmatprep.subr.mxu0 0.0
      %507 = vmatpush1.msra.mxu0 0.0
      %508 = vmatprep.subr.mxu0 0.0
      %509 = vmatpush1.msra.mxu0 0.0
      %510 = vmatprep.subr.mxu0 0.0
      %511 = vmatpush1.msra.mxu0 0.0
      %512 = vmatprep.subr.mxu0 0.0
      %513 = vmatpush1.msra.mxu0 0.0
      %514 = vmatprep.subr.mxu0 0.0
      %515 = vmatpush1.msra.mxu0 0.0
      %516 = vmatprep.subr.mxu0 0.0
      %517 = vmatpush1.msra.mxu0 0.0
      %518 = vmatprep.subr.mxu0 0.0
      %519 = vmatpush1.msra.mxu0 0.0
      %520 = vmatprep.subr.mxu0 0.0
      %521 = vmatpush1.msra.mxu0 0.0
      %522 = vmatprep.subr.mxu0 0.0
      %523 = vmatpush1.msra.mxu0 0.0
      %524 = vmatprep.subr.mxu0 0.0
      %525 = vmatpush1.msra.mxu0 0.0
      %526 = vmatprep.subr.mxu0 0.0
      %527 = vmatpush1.msra.mxu0 0.0
      %528 = vmatprep.subr.mxu0 0.0
      %529 = vmatpush1.msra.mxu0 0.0
      %530 = vmatprep.mubr.f32.mxu0 0.0
      %531 = vmatmul.mubr.f32.gmra.mrb[0].mxu0 %v453
      %v532 = vpop.f32.mrb[0].mxu0
      %v533 = vadd.f32 %v205, %v532
      %v534 = vpop.f32.mrb[0].mxu0
      %535 = vmatprep.mubr.f32.mxu0 0.0
      %536 = vmatmul.mubr.f32.gmra.mrb[0].mxu0 %v458
      %v537 = vpop.f32.mrb[0].mxu0
      %v538 = vadd.f32 %v205, %v537
      %v539 = vpop.f32.mrb[0].mxu0
      %540 = vmatprep.mubr.f32.mxu0 0.0
      %541 = vmatmul.mubr.f32.gmra.mrb[0].mxu0 %v463
      %v542 = vpop.f32.mrb[0].mxu0
      %v543 = vadd.f32 %v205, %v542
      %v544 = vpop.f32.mrb[0].mxu0
      %545 = vdwg.mxu0
      %vm546 = vcmp.gt.f32.partialorder %v533, 0.0
      %vm547 = vcmp.gt.f32.partialorder %v538, 0.0
      %vm548 = vcmp.gt.f32.partialorder %v543, 0.0
      %v549 = vmul.f32 %v533, 0.01
      %v550 = vmul.f32 %v538, 0.01
      %v551 = vmul.f32 %v543, 0.01
      %v552 = vsel %vm546, %v533, %v549
      %v553 = vsel %vm547, %v538, %v550
      %v554 = vsel %vm548, %v543, %v551
      %v555 = vmax.f32 %v384, %v553
      %556 = vmatprep.subr.mxu0 0.0
      %557 = vmatpush1.msra.mxu0 %v552
      %558 = vmatprep.subr.mxu0 0.0
      %559 = vmatpush1.msra.mxu0 %v553
      %560 = vmatprep.subr.mxu0 0.0
      %561 = vmatpush1.msra.mxu0 %v554
      %562 = vmatprep.subr.mxu0 0.0
      %563 = vmatpush1.msra.mxu0 0.0
      %564 = vmatprep.subr.mxu0 0.0
      %565 = vmatpush1.msra.mxu0 0.0
      %566 = vmatprep.subr.mxu0 0.0
      %567 = vmatpush1.msra.mxu0 0.0
      %568 = vmatprep.subr.mxu0 0.0
      %569 = vmatpush1.msra.mxu0 0.0
      %570 = vmatprep.subr.mxu0 0.0
      %571 = vmatpush1.msra.mxu0 0.0
      %572 = vmatprep.subr.mxu0 0.0
      %573 = vmatpush1.msra.mxu0 0.0
      %574 = vmatprep.subr.mxu0 0.0
      %575 = vmatpush1.msra.mxu0 0.0
      %576 = vmatprep.subr.mxu0 0.0
      %577 = vmatpush1.msra.mxu0 0.0
      %578 = vmatprep.subr.mxu0 0.0
      %579 = vmatpush1.msra.mxu0 0.0
      %580 = vmatprep.subr.mxu0 0.0
      %581 = vmatpush1.msra.mxu0 0.0
      %582 = vmatprep.subr.mxu0 0.0
      %583 = vmatpush1.msra.mxu0 0.0
      %584 = vmatprep.subr.mxu0 0.0
      %585 = vmatpush1.msra.mxu0 0.0
      %586 = vmatprep.subr.mxu0 0.0
      %587 = vmatpush1.msra.mxu0 0.0
      %588 = vmatprep.subr.mxu0 0.0
      %589 = vmatpush1.msra.mxu0 0.0
      %590 = vmatprep.subr.mxu0 0.0
      %591 = vmatpush1.msra.mxu0 0.0
      %592 = vmatprep.subr.mxu0 0.0
      %593 = vmatpush1.msra.mxu0 0.0
      %594 = vmatprep.subr.mxu0 0.0
      %595 = vmatpush1.msra.mxu0 0.0
      %596 = vmatprep.subr.mxu0 0.0
      %597 = vmatpush1.msra.mxu0 0.0
      %598 = vmatprep.subr.mxu0 0.0
      %599 = vmatpush1.msra.mxu0 0.0
      %600 = vmatprep.subr.mxu0 0.0
      %601 = vmatpush1.msra.mxu0 0.0
      %602 = vmatprep.subr.mxu0 0.0
      %603 = vmatpush1.msra.mxu0 0.0
      %604 = vmatprep.subr.mxu0 0.0
      %605 = vmatpush1.msra.mxu0 0.0
      %606 = vmatprep.subr.mxu0 0.0
      %607 = vmatpush1.msra.mxu0 0.0
      %608 = vmatprep.subr.mxu0 0.0
      %609 = vmatpush1.msra.mxu0 0.0
      %610 = vmatprep.subr.mxu0 0.0
      %611 = vmatpush1.msra.mxu0 0.0
      %612 = vmatprep.subr.mxu0 0.0
      %613 = vmatpush1.msra.mxu0 0.0
      %614 = vmatprep.subr.mxu0 0.0
      %615 = vmatpush1.msra.mxu0 0.0
      %616 = vmatprep.subr.mxu0 0.0
      %617 = vmatpush1.msra.mxu0 0.0
      %618 = vmatprep.subr.mxu0 0.0
      %619 = vmatpush1.msra.mxu0 0.0
      %620 = vmatprep.mubr.f32.mxu0 0.0
      %621 = vmatmul.mubr.f32.gmra.mrb[0].mxu0 %v209
      %v622 = vpop.f32.mrb[0].mxu0
      %v623 = vadd.f32 0.0, %v622
      %v624 = vpop.f32.mrb[0].mxu0
      %625 = vmatprep.mubr.f32.mxu0 0.0
      %626 = vmatmul.mubr.f32.gmra.mrb[0].mxu0 %v212
      %v627 = vpop.f32.mrb[0].mxu0
      %v628 = vadd.f32 0.0, %v627
      %v629 = vpop.f32.mrb[0].mxu0
      %630 = vmatprep.mubr.f32.mxu0 0.0
      %631 = vmatmul.mubr.f32.gmra.mrb[0].mxu0 %v215
      %v632 = vpop.f32.mrb[0].mxu0
      %v633 = vadd.f32 0.0, %v632
      %v634 = vpop.f32.mrb[0].mxu0
      %635 = vdwg.mxu0
      %636 = vmatprep.subr.mxu0 0.0
      %637 = vmatpush1.msra.mxu0 %v184
      %638 = vmatprep.subr.mxu0 0.0
      %639 = vmatpush1.msra.mxu0 %v185
      %640 = vmatprep.subr.mxu0 0.0
      %641 = vmatpush1.msra.mxu0 %v186
      %642 = vmatprep.subr.mxu0 0.0
      %643 = vmatpush1.msra.mxu0 %v187
      %644 = vmatprep.subr.mxu0 0.0
      %645 = vmatpush1.msra.mxu0 %v188
      %646 = vmatprep.subr.mxu0 0.0
      %647 = vmatpush1.msra.mxu0 %v189
      %648 = vmatprep.subr.mxu0 0.0
      %649 = vmatpush1.msra.mxu0 %v190
      %650 = vmatprep.subr.mxu0 0.0
      %651 = vmatpush1.msra.mxu0 %v191
      %652 = vmatprep.subr.mxu0 0.0
      %653 = vmatpush1.msra.mxu0 %v192
      %654 = vmatprep.subr.mxu0 0.0
      %655 = vmatpush1.msra.mxu0 %v193
      %656 = vmatprep.subr.mxu0 0.0
      %657 = vmatpush1.msra.mxu0 %v194
      %658 = vmatprep.subr.mxu0 0.0
      %659 = vmatpush1.msra.mxu0 %v195
      %660 = vmatprep.subr.mxu0 0.0
      %661 = vmatpush1.msra.mxu0 %v196
      %662 = vmatprep.subr.mxu0 0.0
      %663 = vmatpush1.msra.mxu0 %v197
      %664 = vmatprep.subr.mxu0 0.0
      %665 = vmatpush1.msra.mxu0 %v198
      %666 = vmatprep.subr.mxu0 0.0
      %667 = vmatpush1.msra.mxu0 %v199
      %668 = vmatprep.subr.mxu0 0.0
      %669 = vmatpush1.msra.mxu0 0.0
      %670 = vmatprep.subr.mxu0 0.0
      %671 = vmatpush1.msra.mxu0 0.0
      %672 = vmatprep.subr.mxu0 0.0
      %673 = vmatpush1.msra.mxu0 0.0
      %674 = vmatprep.subr.mxu0 0.0
      %675 = vmatpush1.msra.mxu0 0.0
      %676 = vmatprep.subr.mxu0 0.0
      %677 = vmatpush1.msra.mxu0 0.0
      %678 = vmatprep.subr.mxu0 0.0
      %679 = vmatpush1.msra.mxu0 0.0
      %680 = vmatprep.subr.mxu0 0.0
      %681 = vmatpush1.msra.mxu0 0.0
      %682 = vmatprep.subr.mxu0 0.0
      %683 = vmatpush1.msra.mxu0 0.0
      %684 = vmatprep.subr.mxu0 0.0
      %685 = vmatpush1.msra.mxu0 0.0
      %686 = vmatprep.subr.mxu0 0.0
      %687 = vmatpush1.msra.mxu0 0.0
      %688 = vmatprep.subr.mxu0 0.0
      %689 = vmatpush1.msra.mxu0 0.0
      %690 = vmatprep.subr.mxu0 0.0
      %691 = vmatpush1.msra.mxu0 0.0
      %692 = vmatprep.subr.mxu0 0.0
      %693 = vmatpush1.msra.mxu0 0.0
      %694 = vmatprep.subr.mxu0 0.0
      %695 = vmatpush1.msra.mxu0 0.0
      %696 = vmatprep.subr.mxu0 0.0
      %697 = vmatpush1.msra.mxu0 0.0
      %698 = vmatprep.subr.mxu0 0.0
      %699 = vmatpush1.msra.mxu0 0.0
      %700 = vmatprep.mubr.f32.mxu0 0.0
      %701 = vmatmul.mubr.f32.gmra.mrb[0].mxu0 %v623
      %v702 = vpop.f32.mrb[0].mxu0
      %v703 = vpop.f32.mrb[0].mxu0
      %704 = vmatprep.mubr.f32.mxu0 0.0
      %705 = vmatmul.mubr.f32.gmra.mrb[0].mxu0 %v628
      %v706 = vpop.f32.mrb[0].mxu0
      %v707 = vadd.f32 %v205, %v706
      %v708 = vpop.f32.mrb[0].mxu0
      %709 = vmatprep.mubr.f32.mxu0 0.0
      %710 = vmatmul.mubr.f32.gmra.mrb[0].mxu0 %v633
      %v711 = vpop.f32.mrb[0].mxu0
      %v712 = vpop.f32.mrb[0].mxu0
      %713 = vdwg.mxu0
      %vm714 = vcmp.gt.f32.partialorder %v707, 0.0
      %v715 = vmul.f32 %v707, 0.01
      %v716 = vsel %vm714, %v707, %v715
      %v717 = vmax.f32 %v555, %v716
      %s718 = scalar_lea.vmem %s1, 24
      %v719 = vld [vmem:[%s718] sm:$0xff]
      %v720 = vld [vmem:[%s718 + $0x8] sm:$0xff]
      %v721 = vld [vmem:[%s718 + $0x10] sm:$0xff]
      %s722 = scalar_lea.vmem %s2, 128
      %v723 = vld [vmem:[%s722] sm:$0xff]
      %v724 = vld [vmem:[%s722 + $0x8] sm:$0xff]
      %v725 = vld [vmem:[%s722 + $0x10] sm:$0xff]
      %v726 = vld [vmem:[%s722 + $0x18] sm:$0xff]
      %v727 = vld [vmem:[%s722 + $0x20] sm:$0xff]
      %v728 = vld [vmem:[%s722 + $0x28] sm:$0xff]
      %v729 = vld [vmem:[%s722 + $0x30] sm:$0xff]
      %v730 = vld [vmem:[%s722 + $0x38] sm:$0xff]
      %v731 = vld [vmem:[%s722 + $0x40] sm:$0xff]
      %v732 = vld [vmem:[%s722 + $0x48] sm:$0xff]
      %v733 = vld [vmem:[%s722 + $0x50] sm:$0xff]
      %v734 = vld [vmem:[%s722 + $0x58] sm:$0xff]
      %v735 = vld [vmem:[%s722 + $0x60] sm:$0xff]
      %v736 = vld [vmem:[%s722 + $0x68] sm:$0xff]
      %v737 = vld [vmem:[%s722 + $0x70] sm:$0xff]
      %v738 = vld [vmem:[%s722 + $0x78] sm:$0xff]
      %s739 = scalar_lea.vmem %s3, 1
      %v740 = vld [vmem:[%s739] sm:$0x1]
      %v742 = vlaneseq
      %v743 = vshrl.u32 %v742, 7
      %v744 = vsub.s32 0, %v743
      %v745 = vrot.slane %v740, %v744
      %v748 = vsel %vm207, %v719, 0
      %v751 = vsel %vm207, %v720, 0
      %v754 = vsel %vm207, %v721, 0
      %756 = vmatprep.subr.mxu0 0.0
      %757 = vmatpush1.msra.mxu0 %v178
      %758 = vmatprep.subr.mxu0 0.0
      %759 = vmatpush1.msra.mxu0 %v179
      %760 = vmatprep.subr.mxu0 0.0
      %761 = vmatpush1.msra.mxu0 %v180
      %762 = vmatprep.subr.mxu0 0.0
      %763 = vmatpush1.msra.mxu0 0.0
      %764 = vmatprep.subr.mxu0 0.0
      %765 = vmatpush1.msra.mxu0 0.0
      %766 = vmatprep.subr.mxu0 0.0
      %767 = vmatpush1.msra.mxu0 0.0
      %768 = vmatprep.subr.mxu0 0.0
      %769 = vmatpush1.msra.mxu0 0.0
      %770 = vmatprep.subr.mxu0 0.0
      %771 = vmatpush1.msra.mxu0 0.0
      %772 = vmatprep.subr.mxu0 0.0
      %773 = vmatpush1.msra.mxu0 0.0
      %774 = vmatprep.subr.mxu0 0.0
      %775 = vmatpush1.msra.mxu0 0.0
      %776 = vmatprep.subr.mxu0 0.0
      %777 = vmatpush1.msra.mxu0 0.0
      %778 = vmatprep.subr.mxu0 0.0
      %779 = vmatpush1.msra.mxu0 0.0
      %780 = vmatprep.subr.mxu0 0.0
      %781 = vmatpush1.msra.mxu0 0.0
      %782 = vmatprep.subr.mxu0 0.0
      %783 = vmatpush1.msra.mxu0 0.0
      %784 = vmatprep.subr.mxu0 0.0
      %785 = vmatpush1.msra.mxu0 0.0
      %786 = vmatprep.subr.mxu0 0.0
      %787 = vmatpush1.msra.mxu0 0.0
      %788 = vmatprep.subr.mxu0 0.0
      %789 = vmatpush1.msra.mxu0 0.0
      %790 = vmatprep.subr.mxu0 0.0
      %791 = vmatpush1.msra.mxu0 0.0
      %792 = vmatprep.subr.mxu0 0.0
      %793 = vmatpush1.msra.mxu0 0.0
      %794 = vmatprep.subr.mxu0 0.0
      %795 = vmatpush1.msra.mxu0 0.0
      %796 = vmatprep.subr.mxu0 0.0
      %797 = vmatpush1.msra.mxu0 0.0
      %798 = vmatprep.subr.mxu0 0.0
      %799 = vmatpush1.msra.mxu0 0.0
      %800 = vmatprep.subr.mxu0 0.0
      %801 = vmatpush1.msra.mxu0 0.0
      %802 = vmatprep.subr.mxu0 0.0
      %803 = vmatpush1.msra.mxu0 0.0
      %804 = vmatprep.subr.mxu0 0.0
      %805 = vmatpush1.msra.mxu0 0.0
      %806 = vmatprep.subr.mxu0 0.0
      %807 = vmatpush1.msra.mxu0 0.0
      %808 = vmatprep.subr.mxu0 0.0
      %809 = vmatpush1.msra.mxu0 0.0
      %810 = vmatprep.subr.mxu0 0.0
      %811 = vmatpush1.msra.mxu0 0.0
      %812 = vmatprep.subr.mxu0 0.0
      %813 = vmatpush1.msra.mxu0 0.0
      %814 = vmatprep.subr.mxu0 0.0
      %815 = vmatpush1.msra.mxu0 0.0
      %816 = vmatprep.subr.mxu0 0.0
      %817 = vmatpush1.msra.mxu0 0.0
      %818 = vmatprep.subr.mxu0 0.0
      %819 = vmatpush1.msra.mxu0 0.0
      %820 = vmatprep.mubr.f32.mxu0 0.0
      %821 = vmatmul.mubr.f32.gmra.mrb[0].mxu0 %v748
      %v822 = vpop.f32.mrb[0].mxu0
      %v823 = vadd.f32 0.0, %v822
      %v824 = vpop.f32.mrb[0].mxu0
      %825 = vmatprep.mubr.f32.mxu0 0.0
      %826 = vmatmul.mubr.f32.gmra.mrb[0].mxu0 %v751
      %v827 = vpop.f32.mrb[0].mxu0
      %v828 = vadd.f32 0.0, %v827
      %v829 = vpop.f32.mrb[0].mxu0
      %830 = vmatprep.mubr.f32.mxu0 0.0
      %831 = vmatmul.mubr.f32.gmra.mrb[0].mxu0 %v754
      %v832 = vpop.f32.mrb[0].mxu0
      %v833 = vadd.f32 0.0, %v832
      %v834 = vpop.f32.mrb[0].mxu0
      %835 = vdwg.mxu0
      %836 = vmatprep.subr.mxu0 0.0
      %837 = vmatpush1.msra.mxu0 %v723
      %838 = vmatprep.subr.mxu0 0.0
      %839 = vmatpush1.msra.mxu0 %v724
      %840 = vmatprep.subr.mxu0 0.0
      %841 = vmatpush1.msra.mxu0 %v725
      %842 = vmatprep.subr.mxu0 0.0
      %843 = vmatpush1.msra.mxu0 %v726
      %844 = vmatprep.subr.mxu0 0.0
      %845 = vmatpush1.msra.mxu0 %v727
      %846 = vmatprep.subr.mxu0 0.0
      %847 = vmatpush1.msra.mxu0 %v728
      %848 = vmatprep.subr.mxu0 0.0
      %849 = vmatpush1.msra.mxu0 %v729
      %850 = vmatprep.subr.mxu0 0.0
      %851 = vmatpush1.msra.mxu0 %v730
      %852 = vmatprep.subr.mxu0 0.0
      %853 = vmatpush1.msra.mxu0 %v731
      %854 = vmatprep.subr.mxu0 0.0
      %855 = vmatpush1.msra.mxu0 %v732
      %856 = vmatprep.subr.mxu0 0.0
      %857 = vmatpush1.msra.mxu0 %v733
      %858 = vmatprep.subr.mxu0 0.0
      %859 = vmatpush1.msra.mxu0 %v734
      %860 = vmatprep.subr.mxu0 0.0
      %861 = vmatpush1.msra.mxu0 %v735
      %862 = vmatprep.subr.mxu0 0.0
      %863 = vmatpush1.msra.mxu0 %v736
      %864 = vmatprep.subr.mxu0 0.0
      %865 = vmatpush1.msra.mxu0 %v737
      %866 = vmatprep.subr.mxu0 0.0
      %867 = vmatpush1.msra.mxu0 %v738
      %868 = vmatprep.subr.mxu0 0.0
      %869 = vmatpush1.msra.mxu0 0.0
      %870 = vmatprep.subr.mxu0 0.0
      %871 = vmatpush1.msra.mxu0 0.0
      %872 = vmatprep.subr.mxu0 0.0
      %873 = vmatpush1.msra.mxu0 0.0
      %874 = vmatprep.subr.mxu0 0.0
      %875 = vmatpush1.msra.mxu0 0.0
      %876 = vmatprep.subr.mxu0 0.0
      %877 = vmatpush1.msra.mxu0 0.0
      %878 = vmatprep.subr.mxu0 0.0
      %879 = vmatpush1.msra.mxu0 0.0
      %880 = vmatprep.subr.mxu0 0.0
      %881 = vmatpush1.msra.mxu0 0.0
      %882 = vmatprep.subr.mxu0 0.0
      %883 = vmatpush1.msra.mxu0 0.0
      %884 = vmatprep.subr.mxu0 0.0
      %885 = vmatpush1.msra.mxu0 0.0
      %886 = vmatprep.subr.mxu0 0.0
      %887 = vmatpush1.msra.mxu0 0.0
      %888 = vmatprep.subr.mxu0 0.0
      %889 = vmatpush1.msra.mxu0 0.0
      %890 = vmatprep.subr.mxu0 0.0
      %891 = vmatpush1.msra.mxu0 0.0
      %892 = vmatprep.subr.mxu0 0.0
      %893 = vmatpush1.msra.mxu0 0.0
      %894 = vmatprep.subr.mxu0 0.0
      %895 = vmatpush1.msra.mxu0 0.0
      %896 = vmatprep.subr.mxu0 0.0
      %897 = vmatpush1.msra.mxu0 0.0
      %898 = vmatprep.subr.mxu0 0.0
      %899 = vmatpush1.msra.mxu0 0.0
      %900 = vmatprep.mubr.f32.mxu0 0.0
      %901 = vmatmul.mubr.f32.gmra.mrb[0].mxu0 %v823
      %v902 = vpop.f32.mrb[0].mxu0
      %v903 = vadd.f32 %v745, %v902
      %v904 = vpop.f32.mrb[0].mxu0
      %905 = vmatprep.mubr.f32.mxu0 0.0
      %906 = vmatmul.mubr.f32.gmra.mrb[0].mxu0 %v828
      %v907 = vpop.f32.mrb[0].mxu0
      %v908 = vadd.f32 %v745, %v907
      %v909 = vpop.f32.mrb[0].mxu0
      %910 = vmatprep.mubr.f32.mxu0 0.0
      %911 = vmatmul.mubr.f32.gmra.mrb[0].mxu0 %v833
      %v912 = vpop.f32.mrb[0].mxu0
      %v913 = vadd.f32 %v745, %v912
      %v914 = vpop.f32.mrb[0].mxu0
      %915 = vdwg.mxu0
      %vm916 = vcmp.gt.f32.partialorder %v903, 0.0
      %vm917 = vcmp.gt.f32.partialorder %v908, 0.0
      %vm918 = vcmp.gt.f32.partialorder %v913, 0.0
      %v919 = vmul.f32 %v903, 0.01
      %v920 = vmul.f32 %v908, 0.01
      %v921 = vmul.f32 %v913, 0.01
      %v922 = vsel %vm916, %v903, %v919
      %v923 = vsel %vm917, %v908, %v920
      %v924 = vsel %vm918, %v913, %v921
      %925 = vmatprep.subr.mxu0 0.0
      %926 = vmatpush1.msra.mxu0 %v922
      %927 = vmatprep.subr.mxu0 0.0
      %928 = vmatpush1.msra.mxu0 %v923
      %929 = vmatprep.subr.mxu0 0.0
      %930 = vmatpush1.msra.mxu0 %v924
      %931 = vmatprep.subr.mxu0 0.0
      %932 = vmatpush1.msra.mxu0 0.0
      %933 = vmatprep.subr.mxu0 0.0
      %934 = vmatpush1.msra.mxu0 0.0
      %935 = vmatprep.subr.mxu0 0.0
      %936 = vmatpush1.msra.mxu0 0.0
      %937 = vmatprep.subr.mxu0 0.0
      %938 = vmatpush1.msra.mxu0 0.0
      %939 = vmatprep.subr.mxu0 0.0
      %940 = vmatpush1.msra.mxu0 0.0
      %941 = vmatprep.subr.mxu0 0.0
      %942 = vmatpush1.msra.mxu0 0.0
      %943 = vmatprep.subr.mxu0 0.0
      %944 = vmatpush1.msra.mxu0 0.0
      %945 = vmatprep.subr.mxu0 0.0
      %946 = vmatpush1.msra.mxu0 0.0
      %947 = vmatprep.subr.mxu0 0.0
      %948 = vmatpush1.msra.mxu0 0.0
      %949 = vmatprep.subr.mxu0 0.0
      %950 = vmatpush1.msra.mxu0 0.0
      %951 = vmatprep.subr.mxu0 0.0
      %952 = vmatpush1.msra.mxu0 0.0
      %953 = vmatprep.subr.mxu0 0.0
      %954 = vmatpush1.msra.mxu0 0.0
      %955 = vmatprep.subr.mxu0 0.0
      %956 = vmatpush1.msra.mxu0 0.0
      %957 = vmatprep.subr.mxu0 0.0
      %958 = vmatpush1.msra.mxu0 0.0
      %959 = vmatprep.subr.mxu0 0.0
      %960 = vmatpush1.msra.mxu0 0.0
      %961 = vmatprep.subr.mxu0 0.0
      %962 = vmatpush1.msra.mxu0 0.0
      %963 = vmatprep.subr.mxu0 0.0
      %964 = vmatpush1.msra.mxu0 0.0
      %965 = vmatprep.subr.mxu0 0.0
      %966 = vmatpush1.msra.mxu0 0.0
      %967 = vmatprep.subr.mxu0 0.0
      %968 = vmatpush1.msra.mxu0 0.0
      %969 = vmatprep.subr.mxu0 0.0
      %970 = vmatpush1.msra.mxu0 0.0
      %971 = vmatprep.subr.mxu0 0.0
      %972 = vmatpush1.msra.mxu0 0.0
      %973 = vmatprep.subr.mxu0 0.0
      %974 = vmatpush1.msra.mxu0 0.0
      %975 = vmatprep.subr.mxu0 0.0
      %976 = vmatpush1.msra.mxu0 0.0
      %977 = vmatprep.subr.mxu0 0.0
      %978 = vmatpush1.msra.mxu0 0.0
      %979 = vmatprep.subr.mxu0 0.0
      %980 = vmatpush1.msra.mxu0 0.0
      %981 = vmatprep.subr.mxu0 0.0
      %982 = vmatpush1.msra.mxu0 0.0
      %983 = vmatprep.subr.mxu0 0.0
      %984 = vmatpush1.msra.mxu0 0.0
      %985 = vmatprep.subr.mxu0 0.0
      %986 = vmatpush1.msra.mxu0 0.0
      %987 = vmatprep.subr.mxu0 0.0
      %988 = vmatpush1.msra.mxu0 0.0
      %989 = vmatprep.mubr.f32.mxu0 0.0
      %990 = vmatmul.mubr.f32.gmra.mrb[0].mxu0 %v748
      %v991 = vpop.f32.mrb[0].mxu0
      %v992 = vadd.f32 0.0, %v991
      %v993 = vpop.f32.mrb[0].mxu0
      %994 = vmatprep.mubr.f32.mxu0 0.0
      %995 = vmatmul.mubr.f32.gmra.mrb[0].mxu0 %v751
      %v996 = vpop.f32.mrb[0].mxu0
      %v997 = vadd.f32 0.0, %v996
      %v998 = vpop.f32.mrb[0].mxu0
      %999 = vmatprep.mubr.f32.mxu0 0.0
      %1000 = vmatmul.mubr.f32.gmra.mrb[0].mxu0 %v754
      %v1001 = vpop.f32.mrb[0].mxu0
      %v1002 = vadd.f32 0.0, %v1001
      %v1003 = vpop.f32.mrb[0].mxu0
      %1004 = vdwg.mxu0
      %1005 = vmatprep.subr.mxu0 0.0
      %1006 = vmatpush1.msra.mxu0 %v723
      %1007 = vmatprep.subr.mxu0 0.0
      %1008 = vmatpush1.msra.mxu0 %v724
      %1009 = vmatprep.subr.mxu0 0.0
      %1010 = vmatpush1.msra.mxu0 %v725
      %1011 = vmatprep.subr.mxu0 0.0
      %1012 = vmatpush1.msra.mxu0 %v726
      %1013 = vmatprep.subr.mxu0 0.0
      %1014 = vmatpush1.msra.mxu0 %v727
      %1015 = vmatprep.subr.mxu0 0.0
      %1016 = vmatpush1.msra.mxu0 %v728
      %1017 = vmatprep.subr.mxu0 0.0
      %1018 = vmatpush1.msra.mxu0 %v729
      %1019 = vmatprep.subr.mxu0 0.0
      %1020 = vmatpush1.msra.mxu0 %v730
      %1021 = vmatprep.subr.mxu0 0.0
      %1022 = vmatpush1.msra.mxu0 %v731
      %1023 = vmatprep.subr.mxu0 0.0
      %1024 = vmatpush1.msra.mxu0 %v732
      %1025 = vmatprep.subr.mxu0 0.0
      %1026 = vmatpush1.msra.mxu0 %v733
      %1027 = vmatprep.subr.mxu0 0.0
      %1028 = vmatpush1.msra.mxu0 %v734
      %1029 = vmatprep.subr.mxu0 0.0
      %1030 = vmatpush1.msra.mxu0 %v735
      %1031 = vmatprep.subr.mxu0 0.0
      %1032 = vmatpush1.msra.mxu0 %v736
      %1033 = vmatprep.subr.mxu0 0.0
      %1034 = vmatpush1.msra.mxu0 %v737
      %1035 = vmatprep.subr.mxu0 0.0
      %1036 = vmatpush1.msra.mxu0 %v738
      %1037 = vmatprep.subr.mxu0 0.0
      %1038 = vmatpush1.msra.mxu0 0.0
      %1039 = vmatprep.subr.mxu0 0.0
      %1040 = vmatpush1.msra.mxu0 0.0
      %1041 = vmatprep.subr.mxu0 0.0
      %1042 = vmatpush1.msra.mxu0 0.0
      %1043 = vmatprep.subr.mxu0 0.0
      %1044 = vmatpush1.msra.mxu0 0.0
      %1045 = vmatprep.subr.mxu0 0.0
      %1046 = vmatpush1.msra.mxu0 0.0
      %1047 = vmatprep.subr.mxu0 0.0
      %1048 = vmatpush1.msra.mxu0 0.0
      %1049 = vmatprep.subr.mxu0 0.0
      %1050 = vmatpush1.msra.mxu0 0.0
      %1051 = vmatprep.subr.mxu0 0.0
      %1052 = vmatpush1.msra.mxu0 0.0
      %1053 = vmatprep.subr.mxu0 0.0
      %1054 = vmatpush1.msra.mxu0 0.0
      %1055 = vmatprep.subr.mxu0 0.0
      %1056 = vmatpush1.msra.mxu0 0.0
      %1057 = vmatprep.subr.mxu0 0.0
      %1058 = vmatpush1.msra.mxu0 0.0
      %1059 = vmatprep.subr.mxu0 0.0
      %1060 = vmatpush1.msra.mxu0 0.0
      %1061 = vmatprep.subr.mxu0 0.0
      %1062 = vmatpush1.msra.mxu0 0.0
      %1063 = vmatprep.subr.mxu0 0.0
      %1064 = vmatpush1.msra.mxu0 0.0
      %1065 = vmatprep.subr.mxu0 0.0
      %1066 = vmatpush1.msra.mxu0 0.0
      %1067 = vmatprep.subr.mxu0 0.0
      %1068 = vmatpush1.msra.mxu0 0.0
      %1069 = vmatprep.mubr.f32.mxu0 0.0
      %1070 = vmatmul.mubr.f32.gmra.mrb[0].mxu0 %v992
      %v1071 = vpop.f32.mrb[0].mxu0
      %v1072 = vadd.f32 %v745, %v1071
      %v1073 = vpop.f32.mrb[0].mxu0
      %1074 = vmatprep.mubr.f32.mxu0 0.0
      %1075 = vmatmul.mubr.f32.gmra.mrb[0].mxu0 %v997
      %v1076 = vpop.f32.mrb[0].mxu0
      %v1077 = vadd.f32 %v745, %v1076
      %v1078 = vpop.f32.mrb[0].mxu0
      %1079 = vmatprep.mubr.f32.mxu0 0.0
      %1080 = vmatmul.mubr.f32.gmra.mrb[0].mxu0 %v1002
      %v1081 = vpop.f32.mrb[0].mxu0
      %v1082 = vadd.f32 %v745, %v1081
      %v1083 = vpop.f32.mrb[0].mxu0
      %1084 = vdwg.mxu0
      %vm1085 = vcmp.gt.f32.partialorder %v1072, 0.0
      %vm1086 = vcmp.gt.f32.partialorder %v1077, 0.0
      %vm1087 = vcmp.gt.f32.partialorder %v1082, 0.0
      %v1088 = vmul.f32 %v1072, 0.01
      %v1089 = vmul.f32 %v1077, 0.01
      %v1090 = vmul.f32 %v1082, 0.01
      %v1091 = vsel %vm1085, %v1072, %v1088
      %v1092 = vsel %vm1086, %v1077, %v1089
      %v1093 = vsel %vm1087, %v1082, %v1090
      %v1094 = vmax.f32 %v923, %v1092
      %1095 = vmatprep.subr.mxu0 0.0
      %1096 = vmatpush1.msra.mxu0 %v1091
      %1097 = vmatprep.subr.mxu0 0.0
      %1098 = vmatpush1.msra.mxu0 %v1092
      %1099 = vmatprep.subr.mxu0 0.0
      %1100 = vmatpush1.msra.mxu0 %v1093
      %1101 = vmatprep.subr.mxu0 0.0
      %1102 = vmatpush1.msra.mxu0 0.0
      %1103 = vmatprep.subr.mxu0 0.0
      %1104 = vmatpush1.msra.mxu0 0.0
      %1105 = vmatprep.subr.mxu0 0.0
      %1106 = vmatpush1.msra.mxu0 0.0
      %1107 = vmatprep.subr.mxu0 0.0
      %1108 = vmatpush1.msra.mxu0 0.0
      %1109 = vmatprep.subr.mxu0 0.0
      %1110 = vmatpush1.msra.mxu0 0.0
      %1111 = vmatprep.subr.mxu0 0.0
      %1112 = vmatpush1.msra.mxu0 0.0
      %1113 = vmatprep.subr.mxu0 0.0
      %1114 = vmatpush1.msra.mxu0 0.0
      %1115 = vmatprep.subr.mxu0 0.0
      %1116 = vmatpush1.msra.mxu0 0.0
      %1117 = vmatprep.subr.mxu0 0.0
      %1118 = vmatpush1.msra.mxu0 0.0
      %1119 = vmatprep.subr.mxu0 0.0
      %1120 = vmatpush1.msra.mxu0 0.0
      %1121 = vmatprep.subr.mxu0 0.0
      %1122 = vmatpush1.msra.mxu0 0.0
      %1123 = vmatprep.subr.mxu0 0.0
      %1124 = vmatpush1.msra.mxu0 0.0
      %1125 = vmatprep.subr.mxu0 0.0
      %1126 = vmatpush1.msra.mxu0 0.0
      %1127 = vmatprep.subr.mxu0 0.0
      %1128 = vmatpush1.msra.mxu0 0.0
      %1129 = vmatprep.subr.mxu0 0.0
      %1130 = vmatpush1.msra.mxu0 0.0
      %1131 = vmatprep.subr.mxu0 0.0
      %1132 = vmatpush1.msra.mxu0 0.0
      %1133 = vmatprep.subr.mxu0 0.0
      %1134 = vmatpush1.msra.mxu0 0.0
      %1135 = vmatprep.subr.mxu0 0.0
      %1136 = vmatpush1.msra.mxu0 0.0
      %1137 = vmatprep.subr.mxu0 0.0
      %1138 = vmatpush1.msra.mxu0 0.0
      %1139 = vmatprep.subr.mxu0 0.0
      %1140 = vmatpush1.msra.mxu0 0.0
      %1141 = vmatprep.subr.mxu0 0.0
      %1142 = vmatpush1.msra.mxu0 0.0
      %1143 = vmatprep.subr.mxu0 0.0
      %1144 = vmatpush1.msra.mxu0 0.0
      %1145 = vmatprep.subr.mxu0 0.0
      %1146 = vmatpush1.msra.mxu0 0.0
      %1147 = vmatprep.subr.mxu0 0.0
      %1148 = vmatpush1.msra.mxu0 0.0
      %1149 = vmatprep.subr.mxu0 0.0
      %1150 = vmatpush1.msra.mxu0 0.0
      %1151 = vmatprep.subr.mxu0 0.0
      %1152 = vmatpush1.msra.mxu0 0.0
      %1153 = vmatprep.subr.mxu0 0.0
      %1154 = vmatpush1.msra.mxu0 0.0
      %1155 = vmatprep.subr.mxu0 0.0
      %1156 = vmatpush1.msra.mxu0 0.0
      %1157 = vmatprep.subr.mxu0 0.0
      %1158 = vmatpush1.msra.mxu0 0.0
      %1159 = vmatprep.mubr.f32.mxu0 0.0
      %1160 = vmatmul.mubr.f32.gmra.mrb[0].mxu0 %v748
      %v1161 = vpop.f32.mrb[0].mxu0
      %v1162 = vadd.f32 0.0, %v1161
      %v1163 = vpop.f32.mrb[0].mxu0
      %1164 = vmatprep.mubr.f32.mxu0 0.0
      %1165 = vmatmul.mubr.f32.gmra.mrb[0].mxu0 %v751
      %v1166 = vpop.f32.mrb[0].mxu0
      %v1167 = vadd.f32 0.0, %v1166
      %v1168 = vpop.f32.mrb[0].mxu0
      %1169 = vmatprep.mubr.f32.mxu0 0.0
      %1170 = vmatmul.mubr.f32.gmra.mrb[0].mxu0 %v754
      %v1171 = vpop.f32.mrb[0].mxu0
      %v1172 = vadd.f32 0.0, %v1171
      %v1173 = vpop.f32.mrb[0].mxu0
      %1174 = vdwg.mxu0
      %1175 = vmatprep.subr.mxu0 0.0
      %1176 = vmatpush1.msra.mxu0 %v723
      %1177 = vmatprep.subr.mxu0 0.0
      %1178 = vmatpush1.msra.mxu0 %v724
      %1179 = vmatprep.subr.mxu0 0.0
      %1180 = vmatpush1.msra.mxu0 %v725
      %1181 = vmatprep.subr.mxu0 0.0
      %1182 = vmatpush1.msra.mxu0 %v726
      %1183 = vmatprep.subr.mxu0 0.0
      %1184 = vmatpush1.msra.mxu0 %v727
      %1185 = vmatprep.subr.mxu0 0.0
      %1186 = vmatpush1.msra.mxu0 %v728
      %1187 = vmatprep.subr.mxu0 0.0
      %1188 = vmatpush1.msra.mxu0 %v729
      %1189 = vmatprep.subr.mxu0 0.0
      %1190 = vmatpush1.msra.mxu0 %v730
      %1191 = vmatprep.subr.mxu0 0.0
      %1192 = vmatpush1.msra.mxu0 %v731
      %1193 = vmatprep.subr.mxu0 0.0
      %1194 = vmatpush1.msra.mxu0 %v732
      %1195 = vmatprep.subr.mxu0 0.0
      %1196 = vmatpush1.msra.mxu0 %v733
      %1197 = vmatprep.subr.mxu0 0.0
      %1198 = vmatpush1.msra.mxu0 %v734
      %1199 = vmatprep.subr.mxu0 0.0
      %1200 = vmatpush1.msra.mxu0 %v735
      %1201 = vmatprep.subr.mxu0 0.0
      %1202 = vmatpush1.msra.mxu0 %v736
      %1203 = vmatprep.subr.mxu0 0.0
      %1204 = vmatpush1.msra.mxu0 %v737
      %1205 = vmatprep.subr.mxu0 0.0
      %1206 = vmatpush1.msra.mxu0 %v738
      %1207 = vmatprep.subr.mxu0 0.0
      %1208 = vmatpush1.msra.mxu0 0.0
      %1209 = vmatprep.subr.mxu0 0.0
      %1210 = vmatpush1.msra.mxu0 0.0
      %1211 = vmatprep.subr.mxu0 0.0
      %1212 = vmatpush1.msra.mxu0 0.0
      %1213 = vmatprep.subr.mxu0 0.0
      %1214 = vmatpush1.msra.mxu0 0.0
      %1215 = vmatprep.subr.mxu0 0.0
      %1216 = vmatpush1.msra.mxu0 0.0
      %1217 = vmatprep.subr.mxu0 0.0
      %1218 = vmatpush1.msra.mxu0 0.0
      %1219 = vmatprep.subr.mxu0 0.0
      %1220 = vmatpush1.msra.mxu0 0.0
      %1221 = vmatprep.subr.mxu0 0.0
      %1222 = vmatpush1.msra.mxu0 0.0
      %1223 = vmatprep.subr.mxu0 0.0
      %1224 = vmatpush1.msra.mxu0 0.0
      %1225 = vmatprep.subr.mxu0 0.0
      %1226 = vmatpush1.msra.mxu0 0.0
      %1227 = vmatprep.subr.mxu0 0.0
      %1228 = vmatpush1.msra.mxu0 0.0
      %1229 = vmatprep.subr.mxu0 0.0
      %1230 = vmatpush1.msra.mxu0 0.0
      %1231 = vmatprep.subr.mxu0 0.0
      %1232 = vmatpush1.msra.mxu0 0.0
      %1233 = vmatprep.subr.mxu0 0.0
      %1234 = vmatpush1.msra.mxu0 0.0
      %1235 = vmatprep.subr.mxu0 0.0
      %1236 = vmatpush1.msra.mxu0 0.0
      %1237 = vmatprep.subr.mxu0 0.0
      %1238 = vmatpush1.msra.mxu0 0.0
      %1239 = vmatprep.mubr.f32.mxu0 0.0
      %1240 = vmatmul.mubr.f32.gmra.mrb[0].mxu0 %v1162
      %v1241 = vpop.f32.mrb[0].mxu0
      %v1242 = vpop.f32.mrb[0].mxu0
      %1243 = vmatprep.mubr.f32.mxu0 0.0
      %1244 = vmatmul.mubr.f32.gmra.mrb[0].mxu0 %v1167
      %v1245 = vpop.f32.mrb[0].mxu0
      %v1246 = vadd.f32 %v745, %v1245
      %v1247 = vpop.f32.mrb[0].mxu0
      %1248 = vmatprep.mubr.f32.mxu0 0.0
      %1249 = vmatmul.mubr.f32.gmra.mrb[0].mxu0 %v1172
      %v1250 = vpop.f32.mrb[0].mxu0
      %v1251 = vpop.f32.mrb[0].mxu0
      %1252 = vdwg.mxu0
      %vm1253 = vcmp.gt.f32.partialorder %v1246, 0.0
      %v1254 = vmul.f32 %v1246, 0.01
      %v1255 = vsel %vm1253, %v1246, %v1254
      %v1256 = vmax.f32 %v1094, %v1255
      %v1257 = vadd.f32 %v717, %v1256
      %s1258 = scalar_lea.vmem %s1, 48
      %v1259 = vld [vmem:[%s1258] sm:$0xff]
      %v1260 = vld [vmem:[%s1258 + $0x8] sm:$0xff]
      %v1261 = vld [vmem:[%s1258 + $0x10] sm:$0xff]
      %s1262 = scalar_lea.vmem %s2, 256
      %v1263 = vld [vmem:[%s1262] sm:$0xff]
      %v1264 = vld [vmem:[%s1262 + $0x8] sm:$0xff]
      %v1265 = vld [vmem:[%s1262 + $0x10] sm:$0xff]
      %v1266 = vld [vmem:[%s1262 + $0x18] sm:$0xff]
      %v1267 = vld [vmem:[%s1262 + $0x20] sm:$0xff]
      %v1268 = vld [vmem:[%s1262 + $0x28] sm:$0xff]
      %v1269 = vld [vmem:[%s1262 + $0x30] sm:$0xff]
      %v1270 = vld [vmem:[%s1262 + $0x38] sm:$0xff]
      %v1271 = vld [vmem:[%s1262 + $0x40] sm:$0xff]
      %v1272 = vld [vmem:[%s1262 + $0x48] sm:$0xff]
      %v1273 = vld [vmem:[%s1262 + $0x50] sm:$0xff]
      %v1274 = vld [vmem:[%s1262 + $0x58] sm:$0xff]
      %v1275 = vld [vmem:[%s1262 + $0x60] sm:$0xff]
      %v1276 = vld [vmem:[%s1262 + $0x68] sm:$0xff]
      %v1277 = vld [vmem:[%s1262 + $0x70] sm:$0xff]
      %v1278 = vld [vmem:[%s1262 + $0x78] sm:$0xff]
      %s1279 = scalar_lea.vmem %s3, 2
      %v1280 = vld [vmem:[%s1279] sm:$0x1]
      %v1282 = vlaneseq
      %v1283 = vshrl.u32 %v1282, 7
      %v1284 = vsub.s32 0, %v1283
      %v1285 = vrot.slane %v1280, %v1284
      %v1288 = vsel %vm207, %v1259, 0
      %v1291 = vsel %vm207, %v1260, 0
      %v1294 = vsel %vm207, %v1261, 0
      %1296 = vmatprep.subr.mxu0 0.0
      %1297 = vmatpush1.msra.mxu0 %v178
      %1298 = vmatprep.subr.mxu0 0.0
      %1299 = vmatpush1.msra.mxu0 %v179
      %1300 = vmatprep.subr.mxu0 0.0
      %1301 = vmatpush1.msra.mxu0 %v180
      %1302 = vmatprep.subr.mxu0 0.0
      %1303 = vmatpush1.msra.mxu0 0.0
      %1304 = vmatprep.subr.mxu0 0.0
      %1305 = vmatpush1.msra.mxu0 0.0
      %1306 = vmatprep.subr.mxu0 0.0
      %1307 = vmatpush1.msra.mxu0 0.0
      %1308 = vmatprep.subr.mxu0 0.0
      %1309 = vmatpush1.msra.mxu0 0.0
      %1310 = vmatprep.subr.mxu0 0.0
      %1311 = vmatpush1.msra.mxu0 0.0
      %1312 = vmatprep.subr.mxu0 0.0
      %1313 = vmatpush1.msra.mxu0 0.0
      %1314 = vmatprep.subr.mxu0 0.0
      %1315 = vmatpush1.msra.mxu0 0.0
      %1316 = vmatprep.subr.mxu0 0.0
      %1317 = vmatpush1.msra.mxu0 0.0
      %1318 = vmatprep.subr.mxu0 0.0
      %1319 = vmatpush1.msra.mxu0 0.0
      %1320 = vmatprep.subr.mxu0 0.0
      %1321 = vmatpush1.msra.mxu0 0.0
      %1322 = vmatprep.subr.mxu0 0.0
      %1323 = vmatpush1.msra.mxu0 0.0
      %1324 = vmatprep.subr.mxu0 0.0
      %1325 = vmatpush1.msra.mxu0 0.0
      %1326 = vmatprep.subr.mxu0 0.0
      %1327 = vmatpush1.msra.mxu0 0.0
      %1328 = vmatprep.subr.mxu0 0.0
      %1329 = vmatpush1.msra.mxu0 0.0
      %1330 = vmatprep.subr.mxu0 0.0
      %1331 = vmatpush1.msra.mxu0 0.0
      %1332 = vmatprep.subr.mxu0 0.0
      %1333 = vmatpush1.msra.mxu0 0.0
      %1334 = vmatprep.subr.mxu0 0.0
      %1335 = vmatpush1.msra.mxu0 0.0
      %1336 = vmatprep.subr.mxu0 0.0
      %1337 = vmatpush1.msra.mxu0 0.0
      %1338 = vmatprep.subr.mxu0 0.0
      %1339 = vmatpush1.msra.mxu0 0.0
      %1340 = vmatprep.subr.mxu0 0.0
      %1341 = vmatpush1.msra.mxu0 0.0
      %1342 = vmatprep.subr.mxu0 0.0
      %1343 = vmatpush1.msra.mxu0 0.0
      %1344 = vmatprep.subr.mxu0 0.0
      %1345 = vmatpush1.msra.mxu0 0.0
      %1346 = vmatprep.subr.mxu0 0.0
      %1347 = vmatpush1.msra.mxu0 0.0
      %1348 = vmatprep.subr.mxu0 0.0
      %1349 = vmatpush1.msra.mxu0 0.0
      %1350 = vmatprep.subr.mxu0 0.0
      %1351 = vmatpush1.msra.mxu0 0.0
      %1352 = vmatprep.subr.mxu0 0.0
      %1353 = vmatpush1.msra.mxu0 0.0
      %1354 = vmatprep.subr.mxu0 0.0
      %1355 = vmatpush1.msra.mxu0 0.0
      %1356 = vmatprep.subr.mxu0 0.0
      %1357 = vmatpush1.msra.mxu0 0.0
      %1358 = vmatprep.subr.mxu0 0.0
      %1359 = vmatpush1.msra.mxu0 0.0
      %1360 = vmatprep.mubr.f32.mxu0 0.0
      %1361 = vmatmul.mubr.f32.gmra.mrb[0].mxu0 %v1288
      %v1362 = vpop.f32.mrb[0].mxu0
      %v1363 = vadd.f32 0.0, %v1362
      %v1364 = vpop.f32.mrb[0].mxu0
      %1365 = vmatprep.mubr.f32.mxu0 0.0
      %1366 = vmatmul.mubr.f32.gmra.mrb[0].mxu0 %v1291
      %v1367 = vpop.f32.mrb[0].mxu0
      %v1368 = vadd.f32 0.0, %v1367
      %v1369 = vpop.f32.mrb[0].mxu0
      %1370 = vmatprep.mubr.f32.mxu0 0.0
      %1371 = vmatmul.mubr.f32.gmra.mrb[0].mxu0 %v1294
      %v1372 = vpop.f32.mrb[0].mxu0
      %v1373 = vadd.f32 0.0, %v1372
      %v1374 = vpop.f32.mrb[0].mxu0
      %1375 = vdwg.mxu0
      %1376 = vmatprep.subr.mxu0 0.0
      %1377 = vmatpush1.msra.mxu0 %v1263
      %1378 = vmatprep.subr.mxu0 0.0
      %1379 = vmatpush1.msra.mxu0 %v1264
      %1380 = vmatprep.subr.mxu0 0.0
      %1381 = vmatpush1.msra.mxu0 %v1265
      %1382 = vmatprep.subr.mxu0 0.0
      %1383 = vmatpush1.msra.mxu0 %v1266
      %1384 = vmatprep.subr.mxu0 0.0
      %1385 = vmatpush1.msra.mxu0 %v1267
      %1386 = vmatprep.subr.mxu0 0.0
      %1387 = vmatpush1.msra.mxu0 %v1268
      %1388 = vmatprep.subr.mxu0 0.0
      %1389 = vmatpush1.msra.mxu0 %v1269
      %1390 = vmatprep.subr.mxu0 0.0
      %1391 = vmatpush1.msra.mxu0 %v1270
      %1392 = vmatprep.subr.mxu0 0.0
      %1393 = vmatpush1.msra.mxu0 %v1271
      %1394 = vmatprep.subr.mxu0 0.0
      %1395 = vmatpush1.msra.mxu0 %v1272
      %1396 = vmatprep.subr.mxu0 0.0
      %1397 = vmatpush1.msra.mxu0 %v1273
      %1398 = vmatprep.subr.mxu0 0.0
      %1399 = vmatpush1.msra.mxu0 %v1274
      %1400 = vmatprep.subr.mxu0 0.0
      %1401 = vmatpush1.msra.mxu0 %v1275
      %1402 = vmatprep.subr.mxu0 0.0
      %1403 = vmatpush1.msra.mxu0 %v1276
      %1404 = vmatprep.subr.mxu0 0.0
      %1405 = vmatpush1.msra.mxu0 %v1277
      %1406 = vmatprep.subr.mxu0 0.0
      %1407 = vmatpush1.msra.mxu0 %v1278
      %1408 = vmatprep.subr.mxu0 0.0
      %1409 = vmatpush1.msra.mxu0 0.0
      %1410 = vmatprep.subr.mxu0 0.0
      %1411 = vmatpush1.msra.mxu0 0.0
      %1412 = vmatprep.subr.mxu0 0.0
      %1413 = vmatpush1.msra.mxu0 0.0
      %1414 = vmatprep.subr.mxu0 0.0
      %1415 = vmatpush1.msra.mxu0 0.0
      %1416 = vmatprep.subr.mxu0 0.0
      %1417 = vmatpush1.msra.mxu0 0.0
      %1418 = vmatprep.subr.mxu0 0.0
      %1419 = vmatpush1.msra.mxu0 0.0
      %1420 = vmatprep.subr.mxu0 0.0
      %1421 = vmatpush1.msra.mxu0 0.0
      %1422 = vmatprep.subr.mxu0 0.0
      %1423 = vmatpush1.msra.mxu0 0.0
      %1424 = vmatprep.subr.mxu0 0.0
      %1425 = vmatpush1.msra.mxu0 0.0
      %1426 = vmatprep.subr.mxu0 0.0
      %1427 = vmatpush1.msra.mxu0 0.0
      %1428 = vmatprep.subr.mxu0 0.0
      %1429 = vmatpush1.msra.mxu0 0.0
      %1430 = vmatprep.subr.mxu0 0.0
      %1431 = vmatpush1.msra.mxu0 0.0
      %1432 = vmatprep.subr.mxu0 0.0
      %1433 = vmatpush1.msra.mxu0 0.0
      %1434 = vmatprep.subr.mxu0 0.0
      %1435 = vmatpush1.msra.mxu0 0.0
      %1436 = vmatprep.subr.mxu0 0.0
      %1437 = vmatpush1.msra.mxu0 0.0
      %1438 = vmatprep.subr.mxu0 0.0
      %1439 = vmatpush1.msra.mxu0 0.0
      %1440 = vmatprep.mubr.f32.mxu0 0.0
      %1441 = vmatmul.mubr.f32.gmra.mrb[0].mxu0 %v1363
      %v1442 = vpop.f32.mrb[0].mxu0
      %v1443 = vadd.f32 %v1285, %v1442
      %v1444 = vpop.f32.mrb[0].mxu0
      %1445 = vmatprep.mubr.f32.mxu0 0.0
      %1446 = vmatmul.mubr.f32.gmra.mrb[0].mxu0 %v1368
      %v1447 = vpop.f32.mrb[0].mxu0
      %v1448 = vadd.f32 %v1285, %v1447
      %v1449 = vpop.f32.mrb[0].mxu0
      %1450 = vmatprep.mubr.f32.mxu0 0.0
      %1451 = vmatmul.mubr.f32.gmra.mrb[0].mxu0 %v1373
      %v1452 = vpop.f32.mrb[0].mxu0
      %v1453 = vadd.f32 %v1285, %v1452
      %v1454 = vpop.f32.mrb[0].mxu0
      %1455 = vdwg.mxu0
      %vm1456 = vcmp.gt.f32.partialorder %v1443, 0.0
      %vm1457 = vcmp.gt.f32.partialorder %v1448, 0.0
      %vm1458 = vcmp.gt.f32.partialorder %v1453, 0.0
      %v1459 = vmul.f32 %v1443, 0.01
      %v1460 = vmul.f32 %v1448, 0.01
      %v1461 = vmul.f32 %v1453, 0.01
      %v1462 = vsel %vm1456, %v1443, %v1459
      %v1463 = vsel %vm1457, %v1448, %v1460
      %v1464 = vsel %vm1458, %v1453, %v1461
      %1465 = vmatprep.subr.mxu0 0.0
      %1466 = vmatpush1.msra.mxu0 %v1462
      %1467 = vmatprep.subr.mxu0 0.0
      %1468 = vmatpush1.msra.mxu0 %v1463
      %1469 = vmatprep.subr.mxu0 0.0
      %1470 = vmatpush1.msra.mxu0 %v1464
      %1471 = vmatprep.subr.mxu0 0.0
      %1472 = vmatpush1.msra.mxu0 0.0
      %1473 = vmatprep.subr.mxu0 0.0
      %1474 = vmatpush1.msra.mxu0 0.0
      %1475 = vmatprep.subr.mxu0 0.0
      %1476 = vmatpush1.msra.mxu0 0.0
      %1477 = vmatprep.subr.mxu0 0.0
      %1478 = vmatpush1.msra.mxu0 0.0
      %1479 = vmatprep.subr.mxu0 0.0
      %1480 = vmatpush1.msra.mxu0 0.0
      %1481 = vmatprep.subr.mxu0 0.0
      %1482 = vmatpush1.msra.mxu0 0.0
      %1483 = vmatprep.subr.mxu0 0.0
      %1484 = vmatpush1.msra.mxu0 0.0
      %1485 = vmatprep.subr.mxu0 0.0
      %1486 = vmatpush1.msra.mxu0 0.0
      %1487 = vmatprep.subr.mxu0 0.0
      %1488 = vmatpush1.msra.mxu0 0.0
      %1489 = vmatprep.subr.mxu0 0.0
      %1490 = vmatpush1.msra.mxu0 0.0
      %1491 = vmatprep.subr.mxu0 0.0
      %1492 = vmatpush1.msra.mxu0 0.0
      %1493 = vmatprep.subr.mxu0 0.0
      %1494 = vmatpush1.msra.mxu0 0.0
      %1495 = vmatprep.subr.mxu0 0.0
      %1496 = vmatpush1.msra.mxu0 0.0
      %1497 = vmatprep.subr.mxu0 0.0
      %1498 = vmatpush1.msra.mxu0 0.0
      %1499 = vmatprep.subr.mxu0 0.0
      %1500 = vmatpush1.msra.mxu0 0.0
      %1501 = vmatprep.subr.mxu0 0.0
      %1502 = vmatpush1.msra.mxu0 0.0
      %1503 = vmatprep.subr.mxu0 0.0
      %1504 = vmatpush1.msra.mxu0 0.0
      %1505 = vmatprep.subr.mxu0 0.0
      %1506 = vmatpush1.msra.mxu0 0.0
      %1507 = vmatprep.subr.mxu0 0.0
      %1508 = vmatpush1.msra.mxu0 0.0
      %1509 = vmatprep.subr.mxu0 0.0
      %1510 = vmatpush1.msra.mxu0 0.0
      %1511 = vmatprep.subr.mxu0 0.0
      %1512 = vmatpush1.msra.mxu0 0.0
      %1513 = vmatprep.subr.mxu0 0.0
      %1514 = vmatpush1.msra.mxu0 0.0
      %1515 = vmatprep.subr.mxu0 0.0
      %1516 = vmatpush1.msra.mxu0 0.0
      %1517 = vmatprep.subr.mxu0 0.0
      %1518 = vmatpush1.msra.mxu0 0.0
      %1519 = vmatprep.subr.mxu0 0.0
      %1520 = vmatpush1.msra.mxu0 0.0
      %1521 = vmatprep.subr.mxu0 0.0
      %1522 = vmatpush1.msra.mxu0 0.0
      %1523 = vmatprep.subr.mxu0 0.0
      %1524 = vmatpush1.msra.mxu0 0.0
      %1525 = vmatprep.subr.mxu0 0.0
      %1526 = vmatpush1.msra.mxu0 0.0
      %1527 = vmatprep.subr.mxu0 0.0
      %1528 = vmatpush1.msra.mxu0 0.0
      %1529 = vmatprep.mubr.f32.mxu0 0.0
      %1530 = vmatmul.mubr.f32.gmra.mrb[0].mxu0 %v1288
      %v1531 = vpop.f32.mrb[0].mxu0
      %v1532 = vadd.f32 0.0, %v1531
      %v1533 = vpop.f32.mrb[0].mxu0
      %1534 = vmatprep.mubr.f32.mxu0 0.0
      %1535 = vmatmul.mubr.f32.gmra.mrb[0].mxu0 %v1291
      %v1536 = vpop.f32.mrb[0].mxu0
      %v1537 = vadd.f32 0.0, %v1536
      %v1538 = vpop.f32.mrb[0].mxu0
      %1539 = vmatprep.mubr.f32.mxu0 0.0
      %1540 = vmatmul.mubr.f32.gmra.mrb[0].mxu0 %v1294
      %v1541 = vpop.f32.mrb[0].mxu0
      %v1542 = vadd.f32 0.0, %v1541
      %v1543 = vpop.f32.mrb[0].mxu0
      %1544 = vdwg.mxu0
      %1545 = vmatprep.subr.mxu0 0.0
      %1546 = vmatpush1.msra.mxu0 %v1263
      %1547 = vmatprep.subr.mxu0 0.0
      %1548 = vmatpush1.msra.mxu0 %v1264
      %1549 = vmatprep.subr.mxu0 0.0
      %1550 = vmatpush1.msra.mxu0 %v1265
      %1551 = vmatprep.subr.mxu0 0.0
      %1552 = vmatpush1.msra.mxu0 %v1266
      %1553 = vmatprep.subr.mxu0 0.0
      %1554 = vmatpush1.msra.mxu0 %v1267
      %1555 = vmatprep.subr.mxu0 0.0
      %1556 = vmatpush1.msra.mxu0 %v1268
      %1557 = vmatprep.subr.mxu0 0.0
      %1558 = vmatpush1.msra.mxu0 %v1269
      %1559 = vmatprep.subr.mxu0 0.0
      %1560 = vmatpush1.msra.mxu0 %v1270
      %1561 = vmatprep.subr.mxu0 0.0
      %1562 = vmatpush1.msra.mxu0 %v1271
      %1563 = vmatprep.subr.mxu0 0.0
      %1564 = vmatpush1.msra.mxu0 %v1272
      %1565 = vmatprep.subr.mxu0 0.0
      %1566 = vmatpush1.msra.mxu0 %v1273
      %1567 = vmatprep.subr.mxu0 0.0
      %1568 = vmatpush1.msra.mxu0 %v1274
      %1569 = vmatprep.subr.mxu0 0.0
      %1570 = vmatpush1.msra.mxu0 %v1275
      %1571 = vmatprep.subr.mxu0 0.0
      %1572 = vmatpush1.msra.mxu0 %v1276
      %1573 = vmatprep.subr.mxu0 0.0
      %1574 = vmatpush1.msra.mxu0 %v1277
      %1575 = vmatprep.subr.mxu0 0.0
      %1576 = vmatpush1.msra.mxu0 %v1278
      %1577 = vmatprep.subr.mxu0 0.0
      %1578 = vmatpush1.msra.mxu0 0.0
      %1579 = vmatprep.subr.mxu0 0.0
      %1580 = vmatpush1.msra.mxu0 0.0
      %1581 = vmatprep.subr.mxu0 0.0
      %1582 = vmatpush1.msra.mxu0 0.0
      %1583 = vmatprep.subr.mxu0 0.0
      %1584 = vmatpush1.msra.mxu0 0.0
      %1585 = vmatprep.subr.mxu0 0.0
      %1586 = vmatpush1.msra.mxu0 0.0
      %1587 = vmatprep.subr.mxu0 0.0
      %1588 = vmatpush1.msra.mxu0 0.0
      %1589 = vmatprep.subr.mxu0 0.0
      %1590 = vmatpush1.msra.mxu0 0.0
      %1591 = vmatprep.subr.mxu0 0.0
      %1592 = vmatpush1.msra.mxu0 0.0
      %1593 = vmatprep.subr.mxu0 0.0
      %1594 = vmatpush1.msra.mxu0 0.0
      %1595 = vmatprep.subr.mxu0 0.0
      %1596 = vmatpush1.msra.mxu0 0.0
      %1597 = vmatprep.subr.mxu0 0.0
      %1598 = vmatpush1.msra.mxu0 0.0
      %1599 = vmatprep.subr.mxu0 0.0
      %1600 = vmatpush1.msra.mxu0 0.0
      %1601 = vmatprep.subr.mxu0 0.0
      %1602 = vmatpush1.msra.mxu0 0.0
      %1603 = vmatprep.subr.mxu0 0.0
      %1604 = vmatpush1.msra.mxu0 0.0
      %1605 = vmatprep.subr.mxu0 0.0
      %1606 = vmatpush1.msra.mxu0 0.0
      %1607 = vmatprep.subr.mxu0 0.0
      %1608 = vmatpush1.msra.mxu0 0.0
      %1609 = vmatprep.mubr.f32.mxu0 0.0
      %1610 = vmatmul.mubr.f32.gmra.mrb[0].mxu0 %v1532
      %v1611 = vpop.f32.mrb[0].mxu0
      %v1612 = vadd.f32 %v1285, %v1611
      %v1613 = vpop.f32.mrb[0].mxu0
      %1614 = vmatprep.mubr.f32.mxu0 0.0
      %1615 = vmatmul.mubr.f32.gmra.mrb[0].mxu0 %v1537
      %v1616 = vpop.f32.mrb[0].mxu0
      %v1617 = vadd.f32 %v1285, %v1616
      %v1618 = vpop.f32.mrb[0].mxu0
      %1619 = vmatprep.mubr.f32.mxu0 0.0
      %1620 = vmatmul.mubr.f32.gmra.mrb[0].mxu0 %v1542
      %v1621 = vpop.f32.mrb[0].mxu0
      %v1622 = vadd.f32 %v1285, %v1621
      %v1623 = vpop.f32.mrb[0].mxu0
      %1624 = vdwg.mxu0
      %vm1625 = vcmp.gt.f32.partialorder %v1612, 0.0
      %vm1626 = vcmp.gt.f32.partialorder %v1617, 0.0
      %vm1627 = vcmp.gt.f32.partialorder %v1622, 0.0
      %v1628 = vmul.f32 %v1612, 0.01
      %v1629 = vmul.f32 %v1617, 0.01
      %v1630 = vmul.f32 %v1622, 0.01
      %v1631 = vsel %vm1625, %v1612, %v1628
      %v1632 = vsel %vm1626, %v1617, %v1629
      %v1633 = vsel %vm1627, %v1622, %v1630
      %v1634 = vmax.f32 %v1463, %v1632
      %1635 = vmatprep.subr.mxu0 0.0
      %1636 = vmatpush1.msra.mxu0 %v1631
      %1637 = vmatprep.subr.mxu0 0.0
      %1638 = vmatpush1.msra.mxu0 %v1632
      %1639 = vmatprep.subr.mxu0 0.0
      %1640 = vmatpush1.msra.mxu0 %v1633
      %1641 = vmatprep.subr.mxu0 0.0
      %1642 = vmatpush1.msra.mxu0 0.0
      %1643 = vmatprep.subr.mxu0 0.0
      %1644 = vmatpush1.msra.mxu0 0.0
      %1645 = vmatprep.subr.mxu0 0.0
      %1646 = vmatpush1.msra.mxu0 0.0
      %1647 = vmatprep.subr.mxu0 0.0
      %1648 = vmatpush1.msra.mxu0 0.0
      %1649 = vmatprep.subr.mxu0 0.0
      %1650 = vmatpush1.msra.mxu0 0.0
      %1651 = vmatprep.subr.mxu0 0.0
      %1652 = vmatpush1.msra.mxu0 0.0
      %1653 = vmatprep.subr.mxu0 0.0
      %1654 = vmatpush1.msra.mxu0 0.0
      %1655 = vmatprep.subr.mxu0 0.0
      %1656 = vmatpush1.msra.mxu0 0.0
      %1657 = vmatprep.subr.mxu0 0.0
      %1658 = vmatpush1.msra.mxu0 0.0
      %1659 = vmatprep.subr.mxu0 0.0
      %1660 = vmatpush1.msra.mxu0 0.0
      %1661 = vmatprep.subr.mxu0 0.0
      %1662 = vmatpush1.msra.mxu0 0.0
      %1663 = vmatprep.subr.mxu0 0.0
      %1664 = vmatpush1.msra.mxu0 0.0
      %1665 = vmatprep.subr.mxu0 0.0
      %1666 = vmatpush1.msra.mxu0 0.0
      %1667 = vmatprep.subr.mxu0 0.0
      %1668 = vmatpush1.msra.mxu0 0.0
      %1669 = vmatprep.subr.mxu0 0.0
      %1670 = vmatpush1.msra.mxu0 0.0
      %1671 = vmatprep.subr.mxu0 0.0
      %1672 = vmatpush1.msra.mxu0 0.0
      %1673 = vmatprep.subr.mxu0 0.0
      %1674 = vmatpush1.msra.mxu0 0.0
      %1675 = vmatprep.subr.mxu0 0.0
      %1676 = vmatpush1.msra.mxu0 0.0
      %1677 = vmatprep.subr.mxu0 0.0
      %1678 = vmatpush1.msra.mxu0 0.0
      %1679 = vmatprep.subr.mxu0 0.0
      %1680 = vmatpush1.msra.mxu0 0.0
      %1681 = vmatprep.subr.mxu0 0.0
      %1682 = vmatpush1.msra.mxu0 0.0
      %1683 = vmatprep.subr.mxu0 0.0
      %1684 = vmatpush1.msra.mxu0 0.0
      %1685 = vmatprep.subr.mxu0 0.0
      %1686 = vmatpush1.msra.mxu0 0.0
      %1687 = vmatprep.subr.mxu0 0.0
      %1688 = vmatpush1.msra.mxu0 0.0
      %1689 = vmatprep.subr.mxu0 0.0
      %1690 = vmatpush1.msra.mxu0 0.0
      %1691 = vmatprep.subr.mxu0 0.0
      %1692 = vmatpush1.msra.mxu0 0.0
      %1693 = vmatprep.subr.mxu0 0.0
      %1694 = vmatpush1.msra.mxu0 0.0
      %1695 = vmatprep.subr.mxu0 0.0
      %1696 = vmatpush1.msra.mxu0 0.0
      %1697 = vmatprep.subr.mxu0 0.0
      %1698 = vmatpush1.msra.mxu0 0.0
      %1699 = vmatprep.mubr.f32.mxu0 0.0
      %1700 = vmatmul.mubr.f32.gmra.mrb[0].mxu0 %v1288
      %v1701 = vpop.f32.mrb[0].mxu0
      %v1702 = vadd.f32 0.0, %v1701
      %v1703 = vpop.f32.mrb[0].mxu0
      %1704 = vmatprep.mubr.f32.mxu0 0.0
      %1705 = vmatmul.mubr.f32.gmra.mrb[0].mxu0 %v1291
      %v1706 = vpop.f32.mrb[0].mxu0
      %v1707 = vadd.f32 0.0, %v1706
      %v1708 = vpop.f32.mrb[0].mxu0
      %1709 = vmatprep.mubr.f32.mxu0 0.0
      %1710 = vmatmul.mubr.f32.gmra.mrb[0].mxu0 %v1294
      %v1711 = vpop.f32.mrb[0].mxu0
      %v1712 = vadd.f32 0.0, %v1711
      %v1713 = vpop.f32.mrb[0].mxu0
      %1714 = vdwg.mxu0
      %1715 = vmatprep.subr.mxu0 0.0
      %1716 = vmatpush1.msra.mxu0 %v1263
      %1717 = vmatprep.subr.mxu0 0.0
      %1718 = vmatpush1.msra.mxu0 %v1264
      %1719 = vmatprep.subr.mxu0 0.0
      %1720 = vmatpush1.msra.mxu0 %v1265
      %1721 = vmatprep.subr.mxu0 0.0
      %1722 = vmatpush1.msra.mxu0 %v1266
      %1723 = vmatprep.subr.mxu0 0.0
      %1724 = vmatpush1.msra.mxu0 %v1267
      %1725 = vmatprep.subr.mxu0 0.0
      %1726 = vmatpush1.msra.mxu0 %v1268
      %1727 = vmatprep.subr.mxu0 0.0
      %1728 = vmatpush1.msra.mxu0 %v1269
      %1729 = vmatprep.subr.mxu0 0.0
      %1730 = vmatpush1.msra.mxu0 %v1270
      %1731 = vmatprep.subr.mxu0 0.0
      %1732 = vmatpush1.msra.mxu0 %v1271
      %1733 = vmatprep.subr.mxu0 0.0
      %1734 = vmatpush1.msra.mxu0 %v1272
      %1735 = vmatprep.subr.mxu0 0.0
      %1736 = vmatpush1.msra.mxu0 %v1273
      %1737 = vmatprep.subr.mxu0 0.0
      %1738 = vmatpush1.msra.mxu0 %v1274
      %1739 = vmatprep.subr.mxu0 0.0
      %1740 = vmatpush1.msra.mxu0 %v1275
      %1741 = vmatprep.subr.mxu0 0.0
      %1742 = vmatpush1.msra.mxu0 %v1276
      %1743 = vmatprep.subr.mxu0 0.0
      %1744 = vmatpush1.msra.mxu0 %v1277
      %1745 = vmatprep.subr.mxu0 0.0
      %1746 = vmatpush1.msra.mxu0 %v1278
      %1747 = vmatprep.subr.mxu0 0.0
      %1748 = vmatpush1.msra.mxu0 0.0
      %1749 = vmatprep.subr.mxu0 0.0
      %1750 = vmatpush1.msra.mxu0 0.0
      %1751 = vmatprep.subr.mxu0 0.0
      %1752 = vmatpush1.msra.mxu0 0.0
      %1753 = vmatprep.subr.mxu0 0.0
      %1754 = vmatpush1.msra.mxu0 0.0
      %1755 = vmatprep.subr.mxu0 0.0
      %1756 = vmatpush1.msra.mxu0 0.0
      %1757 = vmatprep.subr.mxu0 0.0
      %1758 = vmatpush1.msra.mxu0 0.0
      %1759 = vmatprep.subr.mxu0 0.0
      %1760 = vmatpush1.msra.mxu0 0.0
      %1761 = vmatprep.subr.mxu0 0.0
      %1762 = vmatpush1.msra.mxu0 0.0
      %1763 = vmatprep.subr.mxu0 0.0
      %1764 = vmatpush1.msra.mxu0 0.0
      %1765 = vmatprep.subr.mxu0 0.0
      %1766 = vmatpush1.msra.mxu0 0.0
      %1767 = vmatprep.subr.mxu0 0.0
      %1768 = vmatpush1.msra.mxu0 0.0
      %1769 = vmatprep.subr.mxu0 0.0
      %1770 = vmatpush1.msra.mxu0 0.0
      %1771 = vmatprep.subr.mxu0 0.0
      %1772 = vmatpush1.msra.mxu0 0.0
      %1773 = vmatprep.subr.mxu0 0.0
      %1774 = vmatpush1.msra.mxu0 0.0
      %1775 = vmatprep.subr.mxu0 0.0
      %1776 = vmatpush1.msra.mxu0 0.0
      %1777 = vmatprep.subr.mxu0 0.0
      %1778 = vmatpush1.msra.mxu0 0.0
      %1779 = vmatprep.mubr.f32.mxu0 0.0
      %1780 = vmatmul.mubr.f32.gmra.mrb[0].mxu0 %v1702
      %v1781 = vpop.f32.mrb[0].mxu0
      %v1782 = vpop.f32.mrb[0].mxu0
      %1783 = vmatprep.mubr.f32.mxu0 0.0
      %1784 = vmatmul.mubr.f32.gmra.mrb[0].mxu0 %v1707
      %v1785 = vpop.f32.mrb[0].mxu0
      %v1786 = vadd.f32 %v1285, %v1785
      %v1787 = vpop.f32.mrb[0].mxu0
      %1788 = vmatprep.mubr.f32.mxu0 0.0
      %1789 = vmatmul.mubr.f32.gmra.mrb[0].mxu0 %v1712
      %v1790 = vpop.f32.mrb[0].mxu0
      %v1791 = vpop.f32.mrb[0].mxu0
      %1792 = vdwg.mxu0
      %vm1793 = vcmp.gt.f32.partialorder %v1786, 0.0
      %v1794 = vmul.f32 %v1786, 0.01
      %v1795 = vsel %vm1793, %v1786, %v1794
      %v1796 = vmax.f32 %v1634, %v1795
      %v1797 = vadd.f32 %v1257, %v1796
      %1798 = vst [vmem:[%s175] sm:$0xff] %v1797
      %p1799 = scmp.lt.s32.totalorder %s15, 6
      %s1800 = scalar_select %p1799, %s15, 6
      %s1801 = smul.addr %s1800, 8
      %s1802 = scalar_lea.vmem %s4, %s1801
      // Predicated region
      $region37: #{stsgcn_forward.3} parent=35 // pred_check
        %p1803 = pneg %p117
      $region38: #{stsgcn_forward.3} parent=35 // pred_check_branch
        %1805 = sbr.rel (%p1803) target = $region40
      $region39: #{stsgcn_forward.3} parent=35 // pred_region
        _
      $region40: #{stsgcn_forward.3} parent=35 // pred_fallthru
        _
    $region36: #{stsgcn_forward.3} parent=5 // pred_fallthru
      _
    %p1806 = scmp.le.s32.totalorder 2, %s10
    // Predicated region
    $region41: #{stsgcn_forward.3} parent=5 // pred_check
      %p1807 = pneg %p1806
    $region42: #{stsgcn_forward.3} parent=5 // pred_check_branch
      %1809 = sbr.rel (%p1807) target = $region44
    $region43: #{stsgcn_forward.3} parent=5 // pred_region
      %s1810 = ssub.s32 %s10, 2
      // Predicated region
      $region45: #{stsgcn_forward.3} parent=43 // pred_check
        %p1811 = pneg %p123
      $region46: #{stsgcn_forward.3} parent=43 // pred_check_branch
        %1813 = sbr.rel (%p1811) target = $region48
      $region47: #{stsgcn_forward.3} parent=43 // pred_region
        %p1814 = scmp.lt.s32.totalorder %s16, 6
        %s1815 = scalar_select %p1814, %s16, 6
        %s1816 = smul.addr %s1815, 8
        %s1817 = scalar_lea.vmem %s4, %s1816
      $region48: #{stsgcn_forward.3} parent=43 // pred_fallthru
        _
    $region44: #{stsgcn_forward.3} parent=5 // pred_fallthru
      _
  $region6: #{stsgcn_forward.3} parent=0 // loop_footer
    %s14 = sadd.s32 1, %s10
  $region7: #{stsgcn_forward.3} parent=0 // loop_footer_branch
    %9 = sbr.rel target = $region3
  $region8: #{stsgcn_forward.3} parent=0 // loop_exit
    _

// kernel: stsgcn_forward.4
$region0: #{stsgcn_forward.4}
  #allocation0 [shape = 'u32[]', space=smem, size = 0x4, offset = 0x4, fixed_abs, tag = 'smem constant byte address 0x4 - core index']
  #allocation1 [shape = 'u32[144,128]{1,0:T(1,128)}', space=vmem, size = 0x12000, scoped, tag = 'internal scratch']
  %s0 = inlined_call_operand.vmem [shape: f32[56,128], index: 0, kind: input, shape index: {}]
  %s1 = inlined_call_operand.vmem [shape: f32[3,24,24], index: 1, kind: input, shape index: {}]
  %s2 = inlined_call_operand.vmem [shape: f32[3,128,128], index: 2, kind: input, shape index: {}]
  %s3 = inlined_call_operand.vmem [shape: f32[3,1,128], index: 3, kind: input, shape index: {}]
  %s4 = inlined_call_operand.vmem [shape: f32[5,8,128], index: 4, kind: output, shape index: {}]
  %s5 = sld [smem:[#allocation0]]
  $region49: #{stsgcn_forward.4} parent=0
    _
  %s7 = ssub.s32 1, %s5
  %s8 = scalar_select 0, %s7, %s5
  loop: start=0, step=1, limit=7
  $region2: #{stsgcn_forward.4} parent=0 // loop_pre_header
    _
  $region3: #{stsgcn_forward.4} parent=0 // loop_header
    %s10 = sphi 0, %s14
    %p11 = scmp.ge.s32.totalorder %s10, 7
    %s18 = sphi 0, %s18
    %s20 = sphi 0, %s18
    %s21 = sphi 0, %s20
    %s35 = sphi 0, %s21
    %s39 = sphi 0, %s39
    %s41 = sphi 0, %s39
    %s42 = sphi 0, %s41
    %s56 = sphi 0, %s42
    %s60 = sphi 0, %s60
    %s62 = sphi 0, %s60
    %s63 = sphi 0, %s62
    %s77 = sphi 0, %s63
    %s81 = sphi 0, %s81
    %s83 = sphi 0, %s81
    %s84 = sphi 0, %s83
    %s98 = sphi 0, %s84
    %s104 = sphi 0, %s106
    %s107 = sphi 0, %s104
    %s108 = sphi 0, %s107
    %s124 = sphi 0, %s108
  $region4: #{stsgcn_forward.4} parent=0 // loop_header_branch
    %13 = sbr.rel (%p11) target = $region8
  $region5: #{stsgcn_forward.4} parent=0 // loop_body
    %s15 = ssub.s32 %s10, 1
    %s16 = ssub.s32 %s10, 2
    %s17 = sadd.s32 %s10, 1
    %s19 = sadd.s32 %s18, 1
    %p22 = scmp.eq.s32.totalorder %s10, 4
    %p23 = scmp.ne.s32.totalorder %s18, %s20
    %p24 = scmp.eq.s32.totalorder %s10, 0
    %p25 = por %p23, %p24
    %p26 = scmp.ne.s32.totalorder %s18, %s20
    %p27 = scmp.eq.s32.totalorder %s15, 4
    %p28 = por %p26, %p27
    %p29 = scmp.ne.s32.totalorder %s20, %s21
    %p30 = scmp.eq.s32.totalorder %s15, 0
    %p31 = por %p29, %p30
    %p32 = scmp.ne.s32.totalorder %s20, %s21
    %p33 = scmp.eq.s32.totalorder %s16, 4
    %p34 = por %p32, %p33
    %p36 = scmp.ne.s32.totalorder %s21, %s35
    %p37 = scmp.eq.s32.totalorder %s16, 0
    %p38 = por %p36, %p37
    %s40 = sadd.s32 %s39, 1
    %p43 = scmp.eq.s32.totalorder %s10, 4
    %p44 = scmp.ne.s32.totalorder %s39, %s41
    %p45 = scmp.eq.s32.totalorder %s10, 0
    %p46 = por %p44, %p45
    %p47 = scmp.ne.s32.totalorder %s39, %s41
    %p48 = scmp.eq.s32.totalorder %s15, 4
    %p49 = por %p47, %p48
    %p50 = scmp.ne.s32.totalorder %s41, %s42
    %p51 = scmp.eq.s32.totalorder %s15, 0
    %p52 = por %p50, %p51
    %p53 = scmp.ne.s32.totalorder %s41, %s42
    %p54 = scmp.eq.s32.totalorder %s16, 4
    %p55 = por %p53, %p54
    %p57 = scmp.ne.s32.totalorder %s42, %s56
    %p58 = scmp.eq.s32.totalorder %s16, 0
    %p59 = por %p57, %p58
    %s61 = sadd.s32 %s60, 1
    %p64 = scmp.eq.s32.totalorder %s10, 4
    %p65 = scmp.ne.s32.totalorder %s60, %s62
    %p66 = scmp.eq.s32.totalorder %s10, 0
    %p67 = por %p65, %p66
    %p68 = scmp.ne.s32.totalorder %s60, %s62
    %p69 = scmp.eq.s32.totalorder %s15, 4
    %p70 = por %p68, %p69
    %p71 = scmp.ne.s32.totalorder %s62, %s63
    %p72 = scmp.eq.s32.totalorder %s15, 0
    %p73 = por %p71, %p72
    %p74 = scmp.ne.s32.totalorder %s62, %s63
    %p75 = scmp.eq.s32.totalorder %s16, 4
    %p76 = por %p74, %p75
    %p78 = scmp.ne.s32.totalorder %s63, %s77
    %p79 = scmp.eq.s32.totalorder %s16, 0
    %p80 = por %p78, %p79
    %s82 = sadd.s32 %s81, 1
    %p85 = scmp.eq.s32.totalorder %s10, 4
    %p86 = scmp.ne.s32.totalorder %s81, %s83
    %p87 = scmp.eq.s32.totalorder %s10, 0
    %p88 = por %p86, %p87
    %p89 = scmp.ne.s32.totalorder %s81, %s83
    %p90 = scmp.eq.s32.totalorder %s15, 4
    %p91 = por %p89, %p90
    %p92 = scmp.ne.s32.totalorder %s83, %s84
    %p93 = scmp.eq.s32.totalorder %s15, 0
    %p94 = por %p92, %p93
    %p95 = scmp.ne.s32.totalorder %s83, %s84
    %p96 = scmp.eq.s32.totalorder %s16, 4
    %p97 = por %p95, %p96
    %p99 = scmp.ne.s32.totalorder %s84, %s98
    %p100 = scmp.eq.s32.totalorder %s16, 0
    %p101 = por %p99, %p100
    %s102 = ssub.s32 %s10, %s17
    %p103 = scmp.eq.s32.totalorder %s102, 0
    %s105 = sadd.s32 %s104, 1
    %s106 = scalar_select %p103, %s104, %s105
    %p109 = pneg %p103
    %p110 = scmp.eq.s32.totalorder %s10, 4
    %p111 = por %p109, %p110
    %p112 = scmp.ne.s32.totalorder %s104, %s107
    %p113 = scmp.eq.s32.totalorder %s10, 0
    %p114 = por %p112, %p113
    %p115 = scmp.ne.s32.totalorder %s104, %s107
    %p116 = scmp.eq.s32.totalorder %s15, 4
    %p117 = por %p115, %p116
    %p118 = scmp.ne.s32.totalorder %s107, %s108
    %p119 = scmp.eq.s32.totalorder %s15, 0
    %p120 = por %p118, %p119
    %p121 = scmp.ne.s32.totalorder %s107, %s108
    %p122 = scmp.eq.s32.totalorder %s16, 4
    %p123 = por %p121, %p122
    %p125 = scmp.ne.s32.totalorder %s108, %s124
    %p126 = scmp.eq.s32.totalorder %s16, 0
    %p127 = por %p125, %p126
    %p128 = scmp.le.s32.totalorder 1, %s10
    %p129 = scmp.lt.s32.totalorder %s10, 6
    %p130 = pnand %p128, %p129
    %p131 = pneg %p130
    // Predicated region
    $region9: #{stsgcn_forward.4} parent=5 // pred_check
      _
    $region10: #{stsgcn_forward.4} parent=5 // pred_check_branch
      %133 = sbr.rel (%p130) target = $region12
    $region11: #{stsgcn_forward.4} parent=5 // pred_region
      %s134 = ssub.s32 %s10, 1
      // Predicated region
      $region13: #{stsgcn_forward.4} parent=11 // pred_check
        %p135 = pneg %p31
      $region14: #{stsgcn_forward.4} parent=11 // pred_check_branch
        %137 = sbr.rel (%p135) target = $region16
      $region15: #{stsgcn_forward.4} parent=11 // pred_region
        _
      $region16: #{stsgcn_forward.4} parent=11 // pred_fallthru
        _
      // Predicated region
      $region17: #{stsgcn_forward.4} parent=11 // pred_check
        %p138 = pneg %p52
      $region18: #{stsgcn_forward.4} parent=11 // pred_check_branch
        %140 = sbr.rel (%p138) target = $region20
      $region19: #{stsgcn_forward.4} parent=11 // pred_region
        _
      $region20: #{stsgcn_forward.4} parent=11 // pred_fallthru
        _
      // Predicated region
      $region21: #{stsgcn_forward.4} parent=11 // pred_check
        %p141 = pneg %p73
      $region22: #{stsgcn_forward.4} parent=11 // pred_check_branch
        %143 = sbr.rel (%p141) target = $region24
      $region23: #{stsgcn_forward.4} parent=11 // pred_region
        _
      $region24: #{stsgcn_forward.4} parent=11 // pred_fallthru
        _
      // Predicated region
      $region25: #{stsgcn_forward.4} parent=11 // pred_check
        %p144 = pneg %p94
      $region26: #{stsgcn_forward.4} parent=11 // pred_check_branch
        %146 = sbr.rel (%p144) target = $region28
      $region27: #{stsgcn_forward.4} parent=11 // pred_region
        _
      $region28: #{stsgcn_forward.4} parent=11 // pred_fallthru
        _
    $region12: #{stsgcn_forward.4} parent=5 // pred_fallthru
      _
    %p147 = scmp.lt.s32.totalorder %s10, 5
    // Predicated region
    $region29: #{stsgcn_forward.4} parent=5 // pred_check
      %p148 = pneg %p147
    $region30: #{stsgcn_forward.4} parent=5 // pred_check_branch
      %150 = sbr.rel (%p148) target = $region32
    $region31: #{stsgcn_forward.4} parent=5 // pred_region
      _
    $region32: #{stsgcn_forward.4} parent=5 // pred_fallthru
      _
    %p151 = scmp.le.s32.totalorder 1, %s10
    %p152 = scmp.lt.s32.totalorder %s10, 6
    %p153 = pnand %p151, %p152
    %p154 = pneg %p153
    // Predicated region
    $region33: #{stsgcn_forward.4} parent=5 // pred_check
      _
    $region34: #{stsgcn_forward.4} parent=5 // pred_check_branch
      %156 = sbr.rel (%p153) target = $region36
    $region35: #{stsgcn_forward.4} parent=5 // pred_region
      %s157 = ssub.s32 %s10, 1
      %p158 = pneg %p31
      %p159 = pneg %p28
      %p160 = pneg %p52
      %p161 = pneg %p49
      %p162 = pneg %p73
      %p163 = pneg %p70
      %p164 = pneg %p94
      %p165 = pneg %p91
      %p166 = pneg %p120
      %p167 = pneg %p117
      %p168 = scmp.lt.s32.totalorder %s15, 4
      %s169 = scalar_select %p168, %s15, 4
      %s170 = smul.addr %s169, 8
      %s171 = scalar_lea.vmem %s4, %s170
      %p172 = scmp.lt.s32.totalorder %s15, 4
      %s173 = scalar_select %p172, %s15, 4
      %s174 = smul.addr %s173, 8
      %s175 = scalar_lea.vmem %s4, %s174
      %s176 = smul.u32 %s15, 8
      %s177 = scalar_lea.vmem %s0, %s176
      %v178 = vld [vmem:[%s177] sm:$0xff]
      %v179 = vld [vmem:[%s177 + $0x8] sm:$0xff]
      %v180 = vld [vmem:[%s177 + $0x10] sm:$0xff]
      %v181 = vld [vmem:[%s1] sm:$0xff]
      %v182 = vld [vmem:[%s1 + $0x8] sm:$0xff]
      %v183 = vld [vmem:[%s1 + $0x10] sm:$0xff]
      %v184 = vld [vmem:[%s2] sm:$0xff]
      %v185 = vld [vmem:[%s2 + $0x8] sm:$0xff]
      %v186 = vld [vmem:[%s2 + $0x10] sm:$0xff]
      %v187 = vld [vmem:[%s2 + $0x18] sm:$0xff]
      %v188 = vld [vmem:[%s2 + $0x20] sm:$0xff]
      %v189 = vld [vmem:[%s2 + $0x28] sm:$0xff]
      %v190 = vld [vmem:[%s2 + $0x30] sm:$0xff]
      %v191 = vld [vmem:[%s2 + $0x38] sm:$0xff]
      %v192 = vld [vmem:[%s2 + $0x40] sm:$0xff]
      %v193 = vld [vmem:[%s2 + $0x48] sm:$0xff]
      %v194 = vld [vmem:[%s2 + $0x50] sm:$0xff]
      %v195 = vld [vmem:[%s2 + $0x58] sm:$0xff]
      %v196 = vld [vmem:[%s2 + $0x60] sm:$0xff]
      %v197 = vld [vmem:[%s2 + $0x68] sm:$0xff]
      %v198 = vld [vmem:[%s2 + $0x70] sm:$0xff]
      %v199 = vld [vmem:[%s2 + $0x78] sm:$0xff]
      %v200 = vld [vmem:[%s3] sm:$0x1]
      %v202 = vlaneseq
      %v203 = vshrl.u32 %v202, 7
      %v204 = vsub.s32 0, %v203
      %v205 = vrot.slane %v200, %v204
      %vm207 = vcmask 195584
      %v209 = vsel %vm207, %v181, 0
      %v212 = vsel %vm207, %v182, 0
      %v215 = vsel %vm207, %v183, 0
      %217 = vmatprep.subr.mxu0 0.0
      %218 = vmatpush1.msra.mxu0 %v178
      %219 = vmatprep.subr.mxu0 0.0
      %220 = vmatpush1.msra.mxu0 %v179
      %221 = vmatprep.subr.mxu0 0.0
      %222 = vmatpush1.msra.mxu0 %v180
      %223 = vmatprep.subr.mxu0 0.0
      %224 = vmatpush1.msra.mxu0 0.0
      %225 = vmatprep.subr.mxu0 0.0
      %226 = vmatpush1.msra.mxu0 0.0
      %227 = vmatprep.subr.mxu0 0.0
      %228 = vmatpush1.msra.mxu0 0.0
      %229 = vmatprep.subr.mxu0 0.0
      %230 = vmatpush1.msra.mxu0 0.0
      %231 = vmatprep.subr.mxu0 0.0
      %232 = vmatpush1.msra.mxu0 0.0
      %233 = vmatprep.subr.mxu0 0.0
      %234 = vmatpush1.msra.mxu0 0.0
      %235 = vmatprep.subr.mxu0 0.0
      %236 = vmatpush1.msra.mxu0 0.0
      %237 = vmatprep.subr.mxu0 0.0
      %238 = vmatpush1.msra.mxu0 0.0
      %239 = vmatprep.subr.mxu0 0.0
      %240 = vmatpush1.msra.mxu0 0.0
      %241 = vmatprep.subr.mxu0 0.0
      %242 = vmatpush1.msra.mxu0 0.0
      %243 = vmatprep.subr.mxu0 0.0
      %244 = vmatpush1.msra.mxu0 0.0
      %245 = vmatprep.subr.mxu0 0.0
      %246 = vmatpush1.msra.mxu0 0.0
      %247 = vmatprep.subr.mxu0 0.0
      %248 = vmatpush1.msra.mxu0 0.0
      %249 = vmatprep.subr.mxu0 0.0
      %250 = vmatpush1.msra.mxu0 0.0
      %251 = vmatprep.subr.mxu0 0.0
      %252 = vmatpush1.msra.mxu0 0.0
      %253 = vmatprep.subr.mxu0 0.0
      %254 = vmatpush1.msra.mxu0 0.0
      %255 = vmatprep.subr.mxu0 0.0
      %256 = vmatpush1.msra.mxu0 0.0
      %257 = vmatprep.subr.mxu0 0.0
      %258 = vmatpush1.msra.mxu0 0.0
      %259 = vmatprep.subr.mxu0 0.0
      %260 = vmatpush1.msra.mxu0 0.0
      %261 = vmatprep.subr.mxu0 0.0
      %262 = vmatpush1.msra.mxu0 0.0
      %263 = vmatprep.subr.mxu0 0.0
      %264 = vmatpush1.msra.mxu0 0.0
      %265 = vmatprep.subr.mxu0 0.0
      %266 = vmatpush1.msra.mxu0 0.0
      %267 = vmatprep.subr.mxu0 0.0
      %268 = vmatpush1.msra.mxu0 0.0
      %269 = vmatprep.subr.mxu0 0.0
      %270 = vmatpush1.msra.mxu0 0.0
      %271 = vmatprep.subr.mxu0 0.0
      %272 = vmatpush1.msra.mxu0 0.0
      %273 = vmatprep.subr.mxu0 0.0
      %274 = vmatpush1.msra.mxu0 0.0
      %275 = vmatprep.subr.mxu0 0.0
      %276 = vmatpush1.msra.mxu0 0.0
      %277 = vmatprep.subr.mxu0 0.0
      %278 = vmatpush1.msra.mxu0 0.0
      %279 = vmatprep.subr.mxu0 0.0
      %280 = vmatpush1.msra.mxu0 0.0
      %281 = vmatprep.mubr.f32.mxu0 0.0
      %282 = vmatmul.mubr.f32.gmra.mrb[0].mxu0 %v209
      %v283 = vpop.f32.mrb[0].mxu0
      %v284 = vadd.f32 0.0, %v283
      %v285 = vpop.f32.mrb[0].mxu0
      %286 = vmatprep.mubr.f32.mxu0 0.0
      %287 = vmatmul.mubr.f32.gmra.mrb[0].mxu0 %v212
      %v288 = vpop.f32.mrb[0].mxu0
      %v289 = vadd.f32 0.0, %v288
      %v290 = vpop.f32.mrb[0].mxu0
      %291 = vmatprep.mubr.f32.mxu0 0.0
      %292 = vmatmul.mubr.f32.gmra.mrb[0].mxu0 %v215
      %v293 = vpop.f32.mrb[0].mxu0
      %v294 = vadd.f32 0.0, %v293
      %v295 = vpop.f32.mrb[0].mxu0
      %296 = vdwg.mxu0
      %297 = vmatprep.subr.mxu0 0.0
      %298 = vmatpush1.msra.mxu0 %v184
      %299 = vmatprep.subr.mxu0 0.0
      %300 = vmatpush1.msra.mxu0 %v185
      %301 = vmatprep.subr.mxu0 0.0
      %302 = vmatpush1.msra.mxu0 %v186
      %303 = vmatprep.subr.mxu0 0.0
      %304 = vmatpush1.msra.mxu0 %v187
      %305 = vmatprep.subr.mxu0 0.0
      %306 = vmatpush1.msra.mxu0 %v188
      %307 = vmatprep.subr.mxu0 0.0
      %308 = vmatpush1.msra.mxu0 %v189
      %309 = vmatprep.subr.mxu0 0.0
      %310 = vmatpush1.msra.mxu0 %v190
      %311 = vmatprep.subr.mxu0 0.0
      %312 = vmatpush1.msra.mxu0 %v191
      %313 = vmatprep.subr.mxu0 0.0
      %314 = vmatpush1.msra.mxu0 %v192
      %315 = vmatprep.subr.mxu0 0.0
      %316 = vmatpush1.msra.mxu0 %v193
      %317 = vmatprep.subr.mxu0 0.0
      %318 = vmatpush1.msra.mxu0 %v194
      %319 = vmatprep.subr.mxu0 0.0
      %320 = vmatpush1.msra.mxu0 %v195
      %321 = vmatprep.subr.mxu0 0.0
      %322 = vmatpush1.msra.mxu0 %v196
      %323 = vmatprep.subr.mxu0 0.0
      %324 = vmatpush1.msra.mxu0 %v197
      %325 = vmatprep.subr.mxu0 0.0
      %326 = vmatpush1.msra.mxu0 %v198
      %327 = vmatprep.subr.mxu0 0.0
      %328 = vmatpush1.msra.mxu0 %v199
      %329 = vmatprep.subr.mxu0 0.0
      %330 = vmatpush1.msra.mxu0 0.0
      %331 = vmatprep.subr.mxu0 0.0
      %332 = vmatpush1.msra.mxu0 0.0
      %333 = vmatprep.subr.mxu0 0.0
      %334 = vmatpush1.msra.mxu0 0.0
      %335 = vmatprep.subr.mxu0 0.0
      %336 = vmatpush1.msra.mxu0 0.0
      %337 = vmatprep.subr.mxu0 0.0
      %338 = vmatpush1.msra.mxu0 0.0
      %339 = vmatprep.subr.mxu0 0.0
      %340 = vmatpush1.msra.mxu0 0.0
      %341 = vmatprep.subr.mxu0 0.0
      %342 = vmatpush1.msra.mxu0 0.0
      %343 = vmatprep.subr.mxu0 0.0
      %344 = vmatpush1.msra.mxu0 0.0
      %345 = vmatprep.subr.mxu0 0.0
      %346 = vmatpush1.msra.mxu0 0.0
      %347 = vmatprep.subr.mxu0 0.0
      %348 = vmatpush1.msra.mxu0 0.0
      %349 = vmatprep.subr.mxu0 0.0
      %350 = vmatpush1.msra.mxu0 0.0
      %351 = vmatprep.subr.mxu0 0.0
      %352 = vmatpush1.msra.mxu0 0.0
      %353 = vmatprep.subr.mxu0 0.0
      %354 = vmatpush1.msra.mxu0 0.0
      %355 = vmatprep.subr.mxu0 0.0
      %356 = vmatpush1.msra.mxu0 0.0
      %357 = vmatprep.subr.mxu0 0.0
      %358 = vmatpush1.msra.mxu0 0.0
      %359 = vmatprep.subr.mxu0 0.0
      %360 = vmatpush1.msra.mxu0 0.0
      %361 = vmatprep.mubr.f32.mxu0 0.0
      %362 = vmatmul.mubr.f32.gmra.mrb[0].mxu0 %v284
      %v363 = vpop.f32.mrb[0].mxu0
      %v364 = vadd.f32 %v205, %v363
      %v365 = vpop.f32.mrb[0].mxu0
      %366 = vmatprep.mubr.f32.mxu0 0.0
      %367 = vmatmul.mubr.f32.gmra.mrb[0].mxu0 %v289
      %v368 = vpop.f32.mrb[0].mxu0
      %v369 = vadd.f32 %v205, %v368
      %v370 = vpop.f32.mrb[0].mxu0
      %371 = vmatprep.mubr.f32.mxu0 0.0
      %372 = vmatmul.mubr.f32.gmra.mrb[0].mxu0 %v294
      %v373 = vpop.f32.mrb[0].mxu0
      %v374 = vadd.f32 %v205, %v373
      %v375 = vpop.f32.mrb[0].mxu0
      %376 = vdwg.mxu0
      %vm377 = vcmp.gt.f32.partialorder %v364, 0.0
      %vm378 = vcmp.gt.f32.partialorder %v369, 0.0
      %vm379 = vcmp.gt.f32.partialorder %v374, 0.0
      %v380 = vmul.f32 %v364, 0.01
      %v381 = vmul.f32 %v369, 0.01
      %v382 = vmul.f32 %v374, 0.01
      %v383 = vsel %vm377, %v364, %v380
      %v384 = vsel %vm378, %v369, %v381
      %v385 = vsel %vm379, %v374, %v382
      %386 = vmatprep.subr.mxu0 0.0
      %387 = vmatpush1.msra.mxu0 %v383
      %388 = vmatprep.subr.mxu0 0.0
      %389 = vmatpush1.msra.mxu0 %v384
      %390 = vmatprep.subr.mxu0 0.0
      %391 = vmatpush1.msra.mxu0 %v385
      %392 = vmatprep.subr.mxu0 0.0
      %393 = vmatpush1.msra.mxu0 0.0
      %394 = vmatprep.subr.mxu0 0.0
      %395 = vmatpush1.msra.mxu0 0.0
      %396 = vmatprep.subr.mxu0 0.0
      %397 = vmatpush1.msra.mxu0 0.0
      %398 = vmatprep.subr.mxu0 0.0
      %399 = vmatpush1.msra.mxu0 0.0
      %400 = vmatprep.subr.mxu0 0.0
      %401 = vmatpush1.msra.mxu0 0.0
      %402 = vmatprep.subr.mxu0 0.0
      %403 = vmatpush1.msra.mxu0 0.0
      %404 = vmatprep.subr.mxu0 0.0
      %405 = vmatpush1.msra.mxu0 0.0
      %406 = vmatprep.subr.mxu0 0.0
      %407 = vmatpush1.msra.mxu0 0.0
      %408 = vmatprep.subr.mxu0 0.0
      %409 = vmatpush1.msra.mxu0 0.0
      %410 = vmatprep.subr.mxu0 0.0
      %411 = vmatpush1.msra.mxu0 0.0
      %412 = vmatprep.subr.mxu0 0.0
      %413 = vmatpush1.msra.mxu0 0.0
      %414 = vmatprep.subr.mxu0 0.0
      %415 = vmatpush1.msra.mxu0 0.0
      %416 = vmatprep.subr.mxu0 0.0
      %417 = vmatpush1.msra.mxu0 0.0
      %418 = vmatprep.subr.mxu0 0.0
      %419 = vmatpush1.msra.mxu0 0.0
      %420 = vmatprep.subr.mxu0 0.0
      %421 = vmatpush1.msra.mxu0 0.0
      %422 = vmatprep.subr.mxu0 0.0
      %423 = vmatpush1.msra.mxu0 0.0
      %424 = vmatprep.subr.mxu0 0.0
      %425 = vmatpush1.msra.mxu0 0.0
      %426 = vmatprep.subr.mxu0 0.0
      %427 = vmatpush1.msra.mxu0 0.0
      %428 = vmatprep.subr.mxu0 0.0
      %429 = vmatpush1.msra.mxu0 0.0
      %430 = vmatprep.subr.mxu0 0.0
      %431 = vmatpush1.msra.mxu0 0.0
      %432 = vmatprep.subr.mxu0 0.0
      %433 = vmatpush1.msra.mxu0 0.0
      %434 = vmatprep.subr.mxu0 0.0
      %435 = vmatpush1.msra.mxu0 0.0
      %436 = vmatprep.subr.mxu0 0.0
      %437 = vmatpush1.msra.mxu0 0.0
      %438 = vmatprep.subr.mxu0 0.0
      %439 = vmatpush1.msra.mxu0 0.0
      %440 = vmatprep.subr.mxu0 0.0
      %441 = vmatpush1.msra.mxu0 0.0
      %442 = vmatprep.subr.mxu0 0.0
      %443 = vmatpush1.msra.mxu0 0.0
      %444 = vmatprep.subr.mxu0 0.0
      %445 = vmatpush1.msra.mxu0 0.0
      %446 = vmatprep.subr.mxu0 0.0
      %447 = vmatpush1.msra.mxu0 0.0
      %448 = vmatprep.subr.mxu0 0.0
      %449 = vmatpush1.msra.mxu0 0.0
      %450 = vmatprep.mubr.f32.mxu0 0.0
      %451 = vmatmul.mubr.f32.gmra.mrb[0].mxu0 %v209
      %v452 = vpop.f32.mrb[0].mxu0
      %v453 = vadd.f32 0.0, %v452
      %v454 = vpop.f32.mrb[0].mxu0
      %455 = vmatprep.mubr.f32.mxu0 0.0
      %456 = vmatmul.mubr.f32.gmra.mrb[0].mxu0 %v212
      %v457 = vpop.f32.mrb[0].mxu0
      %v458 = vadd.f32 0.0, %v457
      %v459 = vpop.f32.mrb[0].mxu0
      %460 = vmatprep.mubr.f32.mxu0 0.0
      %461 = vmatmul.mubr.f32.gmra.mrb[0].mxu0 %v215
      %v462 = vpop.f32.mrb[0].mxu0
      %v463 = vadd.f32 0.0, %v462
      %v464 = vpop.f32.mrb[0].mxu0
      %465 = vdwg.mxu0
      %466 = vmatprep.subr.mxu0 0.0
      %467 = vmatpush1.msra.mxu0 %v184
      %468 = vmatprep.subr.mxu0 0.0
      %469 = vmatpush1.msra.mxu0 %v185
      %470 = vmatprep.subr.mxu0 0.0
      %471 = vmatpush1.msra.mxu0 %v186
      %472 = vmatprep.subr.mxu0 0.0
      %473 = vmatpush1.msra.mxu0 %v187
      %474 = vmatprep.subr.mxu0 0.0
      %475 = vmatpush1.msra.mxu0 %v188
      %476 = vmatprep.subr.mxu0 0.0
      %477 = vmatpush1.msra.mxu0 %v189
      %478 = vmatprep.subr.mxu0 0.0
      %479 = vmatpush1.msra.mxu0 %v190
      %480 = vmatprep.subr.mxu0 0.0
      %481 = vmatpush1.msra.mxu0 %v191
      %482 = vmatprep.subr.mxu0 0.0
      %483 = vmatpush1.msra.mxu0 %v192
      %484 = vmatprep.subr.mxu0 0.0
      %485 = vmatpush1.msra.mxu0 %v193
      %486 = vmatprep.subr.mxu0 0.0
      %487 = vmatpush1.msra.mxu0 %v194
      %488 = vmatprep.subr.mxu0 0.0
      %489 = vmatpush1.msra.mxu0 %v195
      %490 = vmatprep.subr.mxu0 0.0
      %491 = vmatpush1.msra.mxu0 %v196
      %492 = vmatprep.subr.mxu0 0.0
      %493 = vmatpush1.msra.mxu0 %v197
      %494 = vmatprep.subr.mxu0 0.0
      %495 = vmatpush1.msra.mxu0 %v198
      %496 = vmatprep.subr.mxu0 0.0
      %497 = vmatpush1.msra.mxu0 %v199
      %498 = vmatprep.subr.mxu0 0.0
      %499 = vmatpush1.msra.mxu0 0.0
      %500 = vmatprep.subr.mxu0 0.0
      %501 = vmatpush1.msra.mxu0 0.0
      %502 = vmatprep.subr.mxu0 0.0
      %503 = vmatpush1.msra.mxu0 0.0
      %504 = vmatprep.subr.mxu0 0.0
      %505 = vmatpush1.msra.mxu0 0.0
      %506 = vmatprep.subr.mxu0 0.0
      %507 = vmatpush1.msra.mxu0 0.0
      %508 = vmatprep.subr.mxu0 0.0
      %509 = vmatpush1.msra.mxu0 0.0
      %510 = vmatprep.subr.mxu0 0.0
      %511 = vmatpush1.msra.mxu0 0.0
      %512 = vmatprep.subr.mxu0 0.0
      %513 = vmatpush1.msra.mxu0 0.0
      %514 = vmatprep.subr.mxu0 0.0
      %515 = vmatpush1.msra.mxu0 0.0
      %516 = vmatprep.subr.mxu0 0.0
      %517 = vmatpush1.msra.mxu0 0.0
      %518 = vmatprep.subr.mxu0 0.0
      %519 = vmatpush1.msra.mxu0 0.0
      %520 = vmatprep.subr.mxu0 0.0
      %521 = vmatpush1.msra.mxu0 0.0
      %522 = vmatprep.subr.mxu0 0.0
      %523 = vmatpush1.msra.mxu0 0.0
      %524 = vmatprep.subr.mxu0 0.0
      %525 = vmatpush1.msra.mxu0 0.0
      %526 = vmatprep.subr.mxu0 0.0
      %527 = vmatpush1.msra.mxu0 0.0
      %528 = vmatprep.subr.mxu0 0.0
      %529 = vmatpush1.msra.mxu0 0.0
      %530 = vmatprep.mubr.f32.mxu0 0.0
      %531 = vmatmul.mubr.f32.gmra.mrb[0].mxu0 %v453
      %v532 = vpop.f32.mrb[0].mxu0
      %v533 = vadd.f32 %v205, %v532
      %v534 = vpop.f32.mrb[0].mxu0
      %535 = vmatprep.mubr.f32.mxu0 0.0
      %536 = vmatmul.mubr.f32.gmra.mrb[0].mxu0 %v458
      %v537 = vpop.f32.mrb[0].mxu0
      %v538 = vadd.f32 %v205, %v537
      %v539 = vpop.f32.mrb[0].mxu0
      %540 = vmatprep.mubr.f32.mxu0 0.0
      %541 = vmatmul.mubr.f32.gmra.mrb[0].mxu0 %v463
      %v542 = vpop.f32.mrb[0].mxu0
      %v543 = vadd.f32 %v205, %v542
      %v544 = vpop.f32.mrb[0].mxu0
      %545 = vdwg.mxu0
      %vm546 = vcmp.gt.f32.partialorder %v533, 0.0
      %vm547 = vcmp.gt.f32.partialorder %v538, 0.0
      %vm548 = vcmp.gt.f32.partialorder %v543, 0.0
      %v549 = vmul.f32 %v533, 0.01
      %v550 = vmul.f32 %v538, 0.01
      %v551 = vmul.f32 %v543, 0.01
      %v552 = vsel %vm546, %v533, %v549
      %v553 = vsel %vm547, %v538, %v550
      %v554 = vsel %vm548, %v543, %v551
      %v555 = vmax.f32 %v384, %v553
      %556 = vmatprep.subr.mxu0 0.0
      %557 = vmatpush1.msra.mxu0 %v552
      %558 = vmatprep.subr.mxu0 0.0
      %559 = vmatpush1.msra.mxu0 %v553
      %560 = vmatprep.subr.mxu0 0.0
      %561 = vmatpush1.msra.mxu0 %v554
      %562 = vmatprep.subr.mxu0 0.0
      %563 = vmatpush1.msra.mxu0 0.0
      %564 = vmatprep.subr.mxu0 0.0
      %565 = vmatpush1.msra.mxu0 0.0
      %566 = vmatprep.subr.mxu0 0.0
      %567 = vmatpush1.msra.mxu0 0.0
      %568 = vmatprep.subr.mxu0 0.0
      %569 = vmatpush1.msra.mxu0 0.0
      %570 = vmatprep.subr.mxu0 0.0
      %571 = vmatpush1.msra.mxu0 0.0
      %572 = vmatprep.subr.mxu0 0.0
      %573 = vmatpush1.msra.mxu0 0.0
      %574 = vmatprep.subr.mxu0 0.0
      %575 = vmatpush1.msra.mxu0 0.0
      %576 = vmatprep.subr.mxu0 0.0
      %577 = vmatpush1.msra.mxu0 0.0
      %578 = vmatprep.subr.mxu0 0.0
      %579 = vmatpush1.msra.mxu0 0.0
      %580 = vmatprep.subr.mxu0 0.0
      %581 = vmatpush1.msra.mxu0 0.0
      %582 = vmatprep.subr.mxu0 0.0
      %583 = vmatpush1.msra.mxu0 0.0
      %584 = vmatprep.subr.mxu0 0.0
      %585 = vmatpush1.msra.mxu0 0.0
      %586 = vmatprep.subr.mxu0 0.0
      %587 = vmatpush1.msra.mxu0 0.0
      %588 = vmatprep.subr.mxu0 0.0
      %589 = vmatpush1.msra.mxu0 0.0
      %590 = vmatprep.subr.mxu0 0.0
      %591 = vmatpush1.msra.mxu0 0.0
      %592 = vmatprep.subr.mxu0 0.0
      %593 = vmatpush1.msra.mxu0 0.0
      %594 = vmatprep.subr.mxu0 0.0
      %595 = vmatpush1.msra.mxu0 0.0
      %596 = vmatprep.subr.mxu0 0.0
      %597 = vmatpush1.msra.mxu0 0.0
      %598 = vmatprep.subr.mxu0 0.0
      %599 = vmatpush1.msra.mxu0 0.0
      %600 = vmatprep.subr.mxu0 0.0
      %601 = vmatpush1.msra.mxu0 0.0
      %602 = vmatprep.subr.mxu0 0.0
      %603 = vmatpush1.msra.mxu0 0.0
      %604 = vmatprep.subr.mxu0 0.0
      %605 = vmatpush1.msra.mxu0 0.0
      %606 = vmatprep.subr.mxu0 0.0
      %607 = vmatpush1.msra.mxu0 0.0
      %608 = vmatprep.subr.mxu0 0.0
      %609 = vmatpush1.msra.mxu0 0.0
      %610 = vmatprep.subr.mxu0 0.0
      %611 = vmatpush1.msra.mxu0 0.0
      %612 = vmatprep.subr.mxu0 0.0
      %613 = vmatpush1.msra.mxu0 0.0
      %614 = vmatprep.subr.mxu0 0.0
      %615 = vmatpush1.msra.mxu0 0.0
      %616 = vmatprep.subr.mxu0 0.0
      %617 = vmatpush1.msra.mxu0 0.0
      %618 = vmatprep.subr.mxu0 0.0
      %619 = vmatpush1.msra.mxu0 0.0
      %620 = vmatprep.mubr.f32.mxu0 0.0
      %621 = vmatmul.mubr.f32.gmra.mrb[0].mxu0 %v209
      %v622 = vpop.f32.mrb[0].mxu0
      %v623 = vadd.f32 0.0, %v622
      %v624 = vpop.f32.mrb[0].mxu0
      %625 = vmatprep.mubr.f32.mxu0 0.0
      %626 = vmatmul.mubr.f32.gmra.mrb[0].mxu0 %v212
      %v627 = vpop.f32.mrb[0].mxu0
      %v628 = vadd.f32 0.0, %v627
      %v629 = vpop.f32.mrb[0].mxu0
      %630 = vmatprep.mubr.f32.mxu0 0.0
      %631 = vmatmul.mubr.f32.gmra.mrb[0].mxu0 %v215
      %v632 = vpop.f32.mrb[0].mxu0
      %v633 = vadd.f32 0.0, %v632
      %v634 = vpop.f32.mrb[0].mxu0
      %635 = vdwg.mxu0
      %636 = vmatprep.subr.mxu0 0.0
      %637 = vmatpush1.msra.mxu0 %v184
      %638 = vmatprep.subr.mxu0 0.0
      %639 = vmatpush1.msra.mxu0 %v185
      %640 = vmatprep.subr.mxu0 0.0
      %641 = vmatpush1.msra.mxu0 %v186
      %642 = vmatprep.subr.mxu0 0.0
      %643 = vmatpush1.msra.mxu0 %v187
      %644 = vmatprep.subr.mxu0 0.0
      %645 = vmatpush1.msra.mxu0 %v188
      %646 = vmatprep.subr.mxu0 0.0
      %647 = vmatpush1.msra.mxu0 %v189
      %648 = vmatprep.subr.mxu0 0.0
      %649 = vmatpush1.msra.mxu0 %v190
      %650 = vmatprep.subr.mxu0 0.0
      %651 = vmatpush1.msra.mxu0 %v191
      %652 = vmatprep.subr.mxu0 0.0
      %653 = vmatpush1.msra.mxu0 %v192
      %654 = vmatprep.subr.mxu0 0.0
      %655 = vmatpush1.msra.mxu0 %v193
      %656 = vmatprep.subr.mxu0 0.0
      %657 = vmatpush1.msra.mxu0 %v194
      %658 = vmatprep.subr.mxu0 0.0
      %659 = vmatpush1.msra.mxu0 %v195
      %660 = vmatprep.subr.mxu0 0.0
      %661 = vmatpush1.msra.mxu0 %v196
      %662 = vmatprep.subr.mxu0 0.0
      %663 = vmatpush1.msra.mxu0 %v197
      %664 = vmatprep.subr.mxu0 0.0
      %665 = vmatpush1.msra.mxu0 %v198
      %666 = vmatprep.subr.mxu0 0.0
      %667 = vmatpush1.msra.mxu0 %v199
      %668 = vmatprep.subr.mxu0 0.0
      %669 = vmatpush1.msra.mxu0 0.0
      %670 = vmatprep.subr.mxu0 0.0
      %671 = vmatpush1.msra.mxu0 0.0
      %672 = vmatprep.subr.mxu0 0.0
      %673 = vmatpush1.msra.mxu0 0.0
      %674 = vmatprep.subr.mxu0 0.0
      %675 = vmatpush1.msra.mxu0 0.0
      %676 = vmatprep.subr.mxu0 0.0
      %677 = vmatpush1.msra.mxu0 0.0
      %678 = vmatprep.subr.mxu0 0.0
      %679 = vmatpush1.msra.mxu0 0.0
      %680 = vmatprep.subr.mxu0 0.0
      %681 = vmatpush1.msra.mxu0 0.0
      %682 = vmatprep.subr.mxu0 0.0
      %683 = vmatpush1.msra.mxu0 0.0
      %684 = vmatprep.subr.mxu0 0.0
      %685 = vmatpush1.msra.mxu0 0.0
      %686 = vmatprep.subr.mxu0 0.0
      %687 = vmatpush1.msra.mxu0 0.0
      %688 = vmatprep.subr.mxu0 0.0
      %689 = vmatpush1.msra.mxu0 0.0
      %690 = vmatprep.subr.mxu0 0.0
      %691 = vmatpush1.msra.mxu0 0.0
      %692 = vmatprep.subr.mxu0 0.0
      %693 = vmatpush1.msra.mxu0 0.0
      %694 = vmatprep.subr.mxu0 0.0
      %695 = vmatpush1.msra.mxu0 0.0
      %696 = vmatprep.subr.mxu0 0.0
      %697 = vmatpush1.msra.mxu0 0.0
      %698 = vmatprep.subr.mxu0 0.0
      %699 = vmatpush1.msra.mxu0 0.0
      %700 = vmatprep.mubr.f32.mxu0 0.0
      %701 = vmatmul.mubr.f32.gmra.mrb[0].mxu0 %v623
      %v702 = vpop.f32.mrb[0].mxu0
      %v703 = vpop.f32.mrb[0].mxu0
      %704 = vmatprep.mubr.f32.mxu0 0.0
      %705 = vmatmul.mubr.f32.gmra.mrb[0].mxu0 %v628
      %v706 = vpop.f32.mrb[0].mxu0
      %v707 = vadd.f32 %v205, %v706
      %v708 = vpop.f32.mrb[0].mxu0
      %709 = vmatprep.mubr.f32.mxu0 0.0
      %710 = vmatmul.mubr.f32.gmra.mrb[0].mxu0 %v633
      %v711 = vpop.f32.mrb[0].mxu0
      %v712 = vpop.f32.mrb[0].mxu0
      %713 = vdwg.mxu0
      %vm714 = vcmp.gt.f32.partialorder %v707, 0.0
      %v715 = vmul.f32 %v707, 0.01
      %v716 = vsel %vm714, %v707, %v715
      %v717 = vmax.f32 %v555, %v716
      %s718 = scalar_lea.vmem %s1, 24
      %v719 = vld [vmem:[%s718] sm:$0xff]
      %v720 = vld [vmem:[%s718 + $0x8] sm:$0xff]
      %v721 = vld [vmem:[%s718 + $0x10] sm:$0xff]
      %s722 = scalar_lea.vmem %s2, 128
      %v723 = vld [vmem:[%s722] sm:$0xff]
      %v724 = vld [vmem:[%s722 + $0x8] sm:$0xff]
      %v725 = vld [vmem:[%s722 + $0x10] sm:$0xff]
      %v726 = vld [vmem:[%s722 + $0x18] sm:$0xff]
      %v727 = vld [vmem:[%s722 + $0x20] sm:$0xff]
      %v728 = vld [vmem:[%s722 + $0x28] sm:$0xff]
      %v729 = vld [vmem:[%s722 + $0x30] sm:$0xff]
      %v730 = vld [vmem:[%s722 + $0x38] sm:$0xff]
      %v731 = vld [vmem:[%s722 + $0x40] sm:$0xff]
      %v732 = vld [vmem:[%s722 + $0x48] sm:$0xff]
      %v733 = vld [vmem:[%s722 + $0x50] sm:$0xff]
      %v734 = vld [vmem:[%s722 + $0x58] sm:$0xff]
      %v735 = vld [vmem:[%s722 + $0x60] sm:$0xff]
      %v736 = vld [vmem:[%s722 + $0x68] sm:$0xff]
      %v737 = vld [vmem:[%s722 + $0x70] sm:$0xff]
      %v738 = vld [vmem:[%s722 + $0x78] sm:$0xff]
      %s739 = scalar_lea.vmem %s3, 1
      %v740 = vld [vmem:[%s739] sm:$0x1]
      %v742 = vlaneseq
      %v743 = vshrl.u32 %v742, 7
      %v744 = vsub.s32 0, %v743
      %v745 = vrot.slane %v740, %v744
      %v748 = vsel %vm207, %v719, 0
      %v751 = vsel %vm207, %v720, 0
      %v754 = vsel %vm207, %v721, 0
      %756 = vmatprep.subr.mxu0 0.0
      %757 = vmatpush1.msra.mxu0 %v178
      %758 = vmatprep.subr.mxu0 0.0
      %759 = vmatpush1.msra.mxu0 %v179
      %760 = vmatprep.subr.mxu0 0.0
      %761 = vmatpush1.msra.mxu0 %v180
      %762 = vmatprep.subr.mxu0 0.0
      %763 = vmatpush1.msra.mxu0 0.0
      %764 = vmatprep.subr.mxu0 0.0
      %765 = vmatpush1.msra.mxu0 0.0
      %766 = vmatprep.subr.mxu0 0.0
      %767 = vmatpush1.msra.mxu0 0.0
      %768 = vmatprep.subr.mxu0 0.0
      %769 = vmatpush1.msra.mxu0 0.0
      %770 = vmatprep.subr.mxu0 0.0
      %771 = vmatpush1.msra.mxu0 0.0
      %772 = vmatprep.subr.mxu0 0.0
      %773 = vmatpush1.msra.mxu0 0.0
      %774 = vmatprep.subr.mxu0 0.0
      %775 = vmatpush1.msra.mxu0 0.0
      %776 = vmatprep.subr.mxu0 0.0
      %777 = vmatpush1.msra.mxu0 0.0
      %778 = vmatprep.subr.mxu0 0.0
      %779 = vmatpush1.msra.mxu0 0.0
      %780 = vmatprep.subr.mxu0 0.0
      %781 = vmatpush1.msra.mxu0 0.0
      %782 = vmatprep.subr.mxu0 0.0
      %783 = vmatpush1.msra.mxu0 0.0
      %784 = vmatprep.subr.mxu0 0.0
      %785 = vmatpush1.msra.mxu0 0.0
      %786 = vmatprep.subr.mxu0 0.0
      %787 = vmatpush1.msra.mxu0 0.0
      %788 = vmatprep.subr.mxu0 0.0
      %789 = vmatpush1.msra.mxu0 0.0
      %790 = vmatprep.subr.mxu0 0.0
      %791 = vmatpush1.msra.mxu0 0.0
      %792 = vmatprep.subr.mxu0 0.0
      %793 = vmatpush1.msra.mxu0 0.0
      %794 = vmatprep.subr.mxu0 0.0
      %795 = vmatpush1.msra.mxu0 0.0
      %796 = vmatprep.subr.mxu0 0.0
      %797 = vmatpush1.msra.mxu0 0.0
      %798 = vmatprep.subr.mxu0 0.0
      %799 = vmatpush1.msra.mxu0 0.0
      %800 = vmatprep.subr.mxu0 0.0
      %801 = vmatpush1.msra.mxu0 0.0
      %802 = vmatprep.subr.mxu0 0.0
      %803 = vmatpush1.msra.mxu0 0.0
      %804 = vmatprep.subr.mxu0 0.0
      %805 = vmatpush1.msra.mxu0 0.0
      %806 = vmatprep.subr.mxu0 0.0
      %807 = vmatpush1.msra.mxu0 0.0
      %808 = vmatprep.subr.mxu0 0.0
      %809 = vmatpush1.msra.mxu0 0.0
      %810 = vmatprep.subr.mxu0 0.0
      %811 = vmatpush1.msra.mxu0 0.0
      %812 = vmatprep.subr.mxu0 0.0
      %813 = vmatpush1.msra.mxu0 0.0
      %814 = vmatprep.subr.mxu0 0.0
      %815 = vmatpush1.msra.mxu0 0.0
      %816 = vmatprep.subr.mxu0 0.0
      %817 = vmatpush1.msra.mxu0 0.0
      %818 = vmatprep.subr.mxu0 0.0
      %819 = vmatpush1.msra.mxu0 0.0
      %820 = vmatprep.mubr.f32.mxu0 0.0
      %821 = vmatmul.mubr.f32.gmra.mrb[0].mxu0 %v748
      %v822 = vpop.f32.mrb[0].mxu0
      %v823 = vadd.f32 0.0, %v822
      %v824 = vpop.f32.mrb[0].mxu0
      %825 = vmatprep.mubr.f32.mxu0 0.0
      %826 = vmatmul.mubr.f32.gmra.mrb[0].mxu0 %v751
      %v827 = vpop.f32.mrb[0].mxu0
      %v828 = vadd.f32 0.0, %v827
      %v829 = vpop.f32.mrb[0].mxu0
      %830 = vmatprep.mubr.f32.mxu0 0.0
      %831 = vmatmul.mubr.f32.gmra.mrb[0].mxu0 %v754
      %v832 = vpop.f32.mrb[0].mxu0
      %v833 = vadd.f32 0.0, %v832
      %v834 = vpop.f32.mrb[0].mxu0
      %835 = vdwg.mxu0
      %836 = vmatprep.subr.mxu0 0.0
      %837 = vmatpush1.msra.mxu0 %v723
      %838 = vmatprep.subr.mxu0 0.0
      %839 = vmatpush1.msra.mxu0 %v724
      %840 = vmatprep.subr.mxu0 0.0
      %841 = vmatpush1.msra.mxu0 %v725
      %842 = vmatprep.subr.mxu0 0.0
      %843 = vmatpush1.msra.mxu0 %v726
      %844 = vmatprep.subr.mxu0 0.0
      %845 = vmatpush1.msra.mxu0 %v727
      %846 = vmatprep.subr.mxu0 0.0
      %847 = vmatpush1.msra.mxu0 %v728
      %848 = vmatprep.subr.mxu0 0.0
      %849 = vmatpush1.msra.mxu0 %v729
      %850 = vmatprep.subr.mxu0 0.0
      %851 = vmatpush1.msra.mxu0 %v730
      %852 = vmatprep.subr.mxu0 0.0
      %853 = vmatpush1.msra.mxu0 %v731
      %854 = vmatprep.subr.mxu0 0.0
      %855 = vmatpush1.msra.mxu0 %v732
      %856 = vmatprep.subr.mxu0 0.0
      %857 = vmatpush1.msra.mxu0 %v733
      %858 = vmatprep.subr.mxu0 0.0
      %859 = vmatpush1.msra.mxu0 %v734
      %860 = vmatprep.subr.mxu0 0.0
      %861 = vmatpush1.msra.mxu0 %v735
      %862 = vmatprep.subr.mxu0 0.0
      %863 = vmatpush1.msra.mxu0 %v736
      %864 = vmatprep.subr.mxu0 0.0
      %865 = vmatpush1.msra.mxu0 %v737
      %866 = vmatprep.subr.mxu0 0.0
      %867 = vmatpush1.msra.mxu0 %v738
      %868 = vmatprep.subr.mxu0 0.0
      %869 = vmatpush1.msra.mxu0 0.0
      %870 = vmatprep.subr.mxu0 0.0
      %871 = vmatpush1.msra.mxu0 0.0
      %872 = vmatprep.subr.mxu0 0.0
      %873 = vmatpush1.msra.mxu0 0.0
      %874 = vmatprep.subr.mxu0 0.0
      %875 = vmatpush1.msra.mxu0 0.0
      %876 = vmatprep.subr.mxu0 0.0
      %877 = vmatpush1.msra.mxu0 0.0
      %878 = vmatprep.subr.mxu0 0.0
      %879 = vmatpush1.msra.mxu0 0.0
      %880 = vmatprep.subr.mxu0 0.0
      %881 = vmatpush1.msra.mxu0 0.0
      %882 = vmatprep.subr.mxu0 0.0
      %883 = vmatpush1.msra.mxu0 0.0
      %884 = vmatprep.subr.mxu0 0.0
      %885 = vmatpush1.msra.mxu0 0.0
      %886 = vmatprep.subr.mxu0 0.0
      %887 = vmatpush1.msra.mxu0 0.0
      %888 = vmatprep.subr.mxu0 0.0
      %889 = vmatpush1.msra.mxu0 0.0
      %890 = vmatprep.subr.mxu0 0.0
      %891 = vmatpush1.msra.mxu0 0.0
      %892 = vmatprep.subr.mxu0 0.0
      %893 = vmatpush1.msra.mxu0 0.0
      %894 = vmatprep.subr.mxu0 0.0
      %895 = vmatpush1.msra.mxu0 0.0
      %896 = vmatprep.subr.mxu0 0.0
      %897 = vmatpush1.msra.mxu0 0.0
      %898 = vmatprep.subr.mxu0 0.0
      %899 = vmatpush1.msra.mxu0 0.0
      %900 = vmatprep.mubr.f32.mxu0 0.0
      %901 = vmatmul.mubr.f32.gmra.mrb[0].mxu0 %v823
      %v902 = vpop.f32.mrb[0].mxu0
      %v903 = vadd.f32 %v745, %v902
      %v904 = vpop.f32.mrb[0].mxu0
      %905 = vmatprep.mubr.f32.mxu0 0.0
      %906 = vmatmul.mubr.f32.gmra.mrb[0].mxu0 %v828
      %v907 = vpop.f32.mrb[0].mxu0
      %v908 = vadd.f32 %v745, %v907
      %v909 = vpop.f32.mrb[0].mxu0
      %910 = vmatprep.mubr.f32.mxu0 0.0
      %911 = vmatmul.mubr.f32.gmra.mrb[0].mxu0 %v833
      %v912 = vpop.f32.mrb[0].mxu0
      %v913 = vadd.f32 %v745, %v912
      %v914 = vpop.f32.mrb[0].mxu0
      %915 = vdwg.mxu0
      %vm916 = vcmp.gt.f32.partialorder %v903, 0.0
      %vm917 = vcmp.gt.f32.partialorder %v908, 0.0
      %vm918 = vcmp.gt.f32.partialorder %v913, 0.0
      %v919 = vmul.f32 %v903, 0.01
      %v920 = vmul.f32 %v908, 0.01
      %v921 = vmul.f32 %v913, 0.01
      %v922 = vsel %vm916, %v903, %v919
      %v923 = vsel %vm917, %v908, %v920
      %v924 = vsel %vm918, %v913, %v921
      %925 = vmatprep.subr.mxu0 0.0
      %926 = vmatpush1.msra.mxu0 %v922
      %927 = vmatprep.subr.mxu0 0.0
      %928 = vmatpush1.msra.mxu0 %v923
      %929 = vmatprep.subr.mxu0 0.0
      %930 = vmatpush1.msra.mxu0 %v924
      %931 = vmatprep.subr.mxu0 0.0
      %932 = vmatpush1.msra.mxu0 0.0
      %933 = vmatprep.subr.mxu0 0.0
      %934 = vmatpush1.msra.mxu0 0.0
      %935 = vmatprep.subr.mxu0 0.0
      %936 = vmatpush1.msra.mxu0 0.0
      %937 = vmatprep.subr.mxu0 0.0
      %938 = vmatpush1.msra.mxu0 0.0
      %939 = vmatprep.subr.mxu0 0.0
      %940 = vmatpush1.msra.mxu0 0.0
      %941 = vmatprep.subr.mxu0 0.0
      %942 = vmatpush1.msra.mxu0 0.0
      %943 = vmatprep.subr.mxu0 0.0
      %944 = vmatpush1.msra.mxu0 0.0
      %945 = vmatprep.subr.mxu0 0.0
      %946 = vmatpush1.msra.mxu0 0.0
      %947 = vmatprep.subr.mxu0 0.0
      %948 = vmatpush1.msra.mxu0 0.0
      %949 = vmatprep.subr.mxu0 0.0
      %950 = vmatpush1.msra.mxu0 0.0
      %951 = vmatprep.subr.mxu0 0.0
      %952 = vmatpush1.msra.mxu0 0.0
      %953 = vmatprep.subr.mxu0 0.0
      %954 = vmatpush1.msra.mxu0 0.0
      %955 = vmatprep.subr.mxu0 0.0
      %956 = vmatpush1.msra.mxu0 0.0
      %957 = vmatprep.subr.mxu0 0.0
      %958 = vmatpush1.msra.mxu0 0.0
      %959 = vmatprep.subr.mxu0 0.0
      %960 = vmatpush1.msra.mxu0 0.0
      %961 = vmatprep.subr.mxu0 0.0
      %962 = vmatpush1.msra.mxu0 0.0
      %963 = vmatprep.subr.mxu0 0.0
      %964 = vmatpush1.msra.mxu0 0.0
      %965 = vmatprep.subr.mxu0 0.0
      %966 = vmatpush1.msra.mxu0 0.0
      %967 = vmatprep.subr.mxu0 0.0
      %968 = vmatpush1.msra.mxu0 0.0
      %969 = vmatprep.subr.mxu0 0.0
      %970 = vmatpush1.msra.mxu0 0.0
      %971 = vmatprep.subr.mxu0 0.0
      %972 = vmatpush1.msra.mxu0 0.0
      %973 = vmatprep.subr.mxu0 0.0
      %974 = vmatpush1.msra.mxu0 0.0
      %975 = vmatprep.subr.mxu0 0.0
      %976 = vmatpush1.msra.mxu0 0.0
      %977 = vmatprep.subr.mxu0 0.0
      %978 = vmatpush1.msra.mxu0 0.0
      %979 = vmatprep.subr.mxu0 0.0
      %980 = vmatpush1.msra.mxu0 0.0
      %981 = vmatprep.subr.mxu0 0.0
      %982 = vmatpush1.msra.mxu0 0.0
      %983 = vmatprep.subr.mxu0 0.0
      %984 = vmatpush1.msra.mxu0 0.0
      %985 = vmatprep.subr.mxu0 0.0
      %986 = vmatpush1.msra.mxu0 0.0
      %987 = vmatprep.subr.mxu0 0.0
      %988 = vmatpush1.msra.mxu0 0.0
      %989 = vmatprep.mubr.f32.mxu0 0.0
      %990 = vmatmul.mubr.f32.gmra.mrb[0].mxu0 %v748
      %v991 = vpop.f32.mrb[0].mxu0
      %v992 = vadd.f32 0.0, %v991
      %v993 = vpop.f32.mrb[0].mxu0
      %994 = vmatprep.mubr.f32.mxu0 0.0
      %995 = vmatmul.mubr.f32.gmra.mrb[0].mxu0 %v751
      %v996 = vpop.f32.mrb[0].mxu0
      %v997 = vadd.f32 0.0, %v996
      %v998 = vpop.f32.mrb[0].mxu0
      %999 = vmatprep.mubr.f32.mxu0 0.0
      %1000 = vmatmul.mubr.f32.gmra.mrb[0].mxu0 %v754
      %v1001 = vpop.f32.mrb[0].mxu0
      %v1002 = vadd.f32 0.0, %v1001
      %v1003 = vpop.f32.mrb[0].mxu0
      %1004 = vdwg.mxu0
      %1005 = vmatprep.subr.mxu0 0.0
      %1006 = vmatpush1.msra.mxu0 %v723
      %1007 = vmatprep.subr.mxu0 0.0
      %1008 = vmatpush1.msra.mxu0 %v724
      %1009 = vmatprep.subr.mxu0 0.0
      %1010 = vmatpush1.msra.mxu0 %v725
      %1011 = vmatprep.subr.mxu0 0.0
      %1012 = vmatpush1.msra.mxu0 %v726
      %1013 = vmatprep.subr.mxu0 0.0
      %1014 = vmatpush1.msra.mxu0 %v727
      %1015 = vmatprep.subr.mxu0 0.0
      %1016 = vmatpush1.msra.mxu0 %v728
      %1017 = vmatprep.subr.mxu0 0.0
      %1018 = vmatpush1.msra.mxu0 %v729
      %1019 = vmatprep.subr.mxu0 0.0
      %1020 = vmatpush1.msra.mxu0 %v730
      %1021 = vmatprep.subr.mxu0 0.0
      %1022 = vmatpush1.msra.mxu0 %v731
      %1023 = vmatprep.subr.mxu0 0.0
      %1024 = vmatpush1.msra.mxu0 %v732
      %1025 = vmatprep.subr.mxu0 0.0
      %1026 = vmatpush1.msra.mxu0 %v733
      %1027 = vmatprep.subr.mxu0 0.0
      %1028 = vmatpush1.msra.mxu0 %v734
      %1029 = vmatprep.subr.mxu0 0.0
      %1030 = vmatpush1.msra.mxu0 %v735
      %1031 = vmatprep.subr.mxu0 0.0
      %1032 = vmatpush1.msra.mxu0 %v736
      %1033 = vmatprep.subr.mxu0 0.0
      %1034 = vmatpush1.msra.mxu0 %v737
      %1035 = vmatprep.subr.mxu0 0.0
      %1036 = vmatpush1.msra.mxu0 %v738
      %1037 = vmatprep.subr.mxu0 0.0
      %1038 = vmatpush1.msra.mxu0 0.0
      %1039 = vmatprep.subr.mxu0 0.0
      %1040 = vmatpush1.msra.mxu0 0.0
      %1041 = vmatprep.subr.mxu0 0.0
      %1042 = vmatpush1.msra.mxu0 0.0
      %1043 = vmatprep.subr.mxu0 0.0
      %1044 = vmatpush1.msra.mxu0 0.0
      %1045 = vmatprep.subr.mxu0 0.0
      %1046 = vmatpush1.msra.mxu0 0.0
      %1047 = vmatprep.subr.mxu0 0.0
      %1048 = vmatpush1.msra.mxu0 0.0
      %1049 = vmatprep.subr.mxu0 0.0
      %1050 = vmatpush1.msra.mxu0 0.0
      %1051 = vmatprep.subr.mxu0 0.0
      %1052 = vmatpush1.msra.mxu0 0.0
      %1053 = vmatprep.subr.mxu0 0.0
      %1054 = vmatpush1.msra.mxu0 0.0
      %1055 = vmatprep.subr.mxu0 0.0
      %1056 = vmatpush1.msra.mxu0 0.0
      %1057 = vmatprep.subr.mxu0 0.0
      %1058 = vmatpush1.msra.mxu0 0.0
      %1059 = vmatprep.subr.mxu0 0.0
      %1060 = vmatpush1.msra.mxu0 0.0
      %1061 = vmatprep.subr.mxu0 0.0
      %1062 = vmatpush1.msra.mxu0 0.0
      %1063 = vmatprep.subr.mxu0 0.0
      %1064 = vmatpush1.msra.mxu0 0.0
      %1065 = vmatprep.subr.mxu0 0.0
      %1066 = vmatpush1.msra.mxu0 0.0
      %1067 = vmatprep.subr.mxu0 0.0
      %1068 = vmatpush1.msra.mxu0 0.0
      %1069 = vmatprep.mubr.f32.mxu0 0.0
      %1070 = vmatmul.mubr.f32.gmra.mrb[0].mxu0 %v992
      %v1071 = vpop.f32.mrb[0].mxu0
      %v1072 = vadd.f32 %v745, %v1071
      %v1073 = vpop.f32.mrb[0].mxu0
      %1074 = vmatprep.mubr.f32.mxu0 0.0
      %1075 = vmatmul.mubr.f32.gmra.mrb[0].mxu0 %v997
      %v1076 = vpop.f32.mrb[0].mxu0
      %v1077 = vadd.f32 %v745, %v1076
      %v1078 = vpop.f32.mrb[0].mxu0
      %1079 = vmatprep.mubr.f32.mxu0 0.0
      %1080 = vmatmul.mubr.f32.gmra.mrb[0].mxu0 %v1002
      %v1081 = vpop.f32.mrb[0].mxu0
      %v1082 = vadd.f32 %v745, %v1081
      %v1083 = vpop.f32.mrb[0].mxu0
      %1084 = vdwg.mxu0
      %vm1085 = vcmp.gt.f32.partialorder %v1072, 0.0
      %vm1086 = vcmp.gt.f32.partialorder %v1077, 0.0
      %vm1087 = vcmp.gt.f32.partialorder %v1082, 0.0
      %v1088 = vmul.f32 %v1072, 0.01
      %v1089 = vmul.f32 %v1077, 0.01
      %v1090 = vmul.f32 %v1082, 0.01
      %v1091 = vsel %vm1085, %v1072, %v1088
      %v1092 = vsel %vm1086, %v1077, %v1089
      %v1093 = vsel %vm1087, %v1082, %v1090
      %v1094 = vmax.f32 %v923, %v1092
      %1095 = vmatprep.subr.mxu0 0.0
      %1096 = vmatpush1.msra.mxu0 %v1091
      %1097 = vmatprep.subr.mxu0 0.0
      %1098 = vmatpush1.msra.mxu0 %v1092
      %1099 = vmatprep.subr.mxu0 0.0
      %1100 = vmatpush1.msra.mxu0 %v1093
      %1101 = vmatprep.subr.mxu0 0.0
      %1102 = vmatpush1.msra.mxu0 0.0
      %1103 = vmatprep.subr.mxu0 0.0
      %1104 = vmatpush1.msra.mxu0 0.0
      %1105 = vmatprep.subr.mxu0 0.0
      %1106 = vmatpush1.msra.mxu0 0.0
      %1107 = vmatprep.subr.mxu0 0.0
      %1108 = vmatpush1.msra.mxu0 0.0
      %1109 = vmatprep.subr.mxu0 0.0
      %1110 = vmatpush1.msra.mxu0 0.0
      %1111 = vmatprep.subr.mxu0 0.0
      %1112 = vmatpush1.msra.mxu0 0.0
      %1113 = vmatprep.subr.mxu0 0.0
      %1114 = vmatpush1.msra.mxu0 0.0
      %1115 = vmatprep.subr.mxu0 0.0
      %1116 = vmatpush1.msra.mxu0 0.0
      %1117 = vmatprep.subr.mxu0 0.0
      %1118 = vmatpush1.msra.mxu0 0.0
      %1119 = vmatprep.subr.mxu0 0.0
      %1120 = vmatpush1.msra.mxu0 0.0
      %1121 = vmatprep.subr.mxu0 0.0
      %1122 = vmatpush1.msra.mxu0 0.0
      %1123 = vmatprep.subr.mxu0 0.0
      %1124 = vmatpush1.msra.mxu0 0.0
      %1125 = vmatprep.subr.mxu0 0.0
      %1126 = vmatpush1.msra.mxu0 0.0
      %1127 = vmatprep.subr.mxu0 0.0
      %1128 = vmatpush1.msra.mxu0 0.0
      %1129 = vmatprep.subr.mxu0 0.0
      %1130 = vmatpush1.msra.mxu0 0.0
      %1131 = vmatprep.subr.mxu0 0.0
      %1132 = vmatpush1.msra.mxu0 0.0
      %1133 = vmatprep.subr.mxu0 0.0
      %1134 = vmatpush1.msra.mxu0 0.0
      %1135 = vmatprep.subr.mxu0 0.0
      %1136 = vmatpush1.msra.mxu0 0.0
      %1137 = vmatprep.subr.mxu0 0.0
      %1138 = vmatpush1.msra.mxu0 0.0
      %1139 = vmatprep.subr.mxu0 0.0
      %1140 = vmatpush1.msra.mxu0 0.0
      %1141 = vmatprep.subr.mxu0 0.0
      %1142 = vmatpush1.msra.mxu0 0.0
      %1143 = vmatprep.subr.mxu0 0.0
      %1144 = vmatpush1.msra.mxu0 0.0
      %1145 = vmatprep.subr.mxu0 0.0
      %1146 = vmatpush1.msra.mxu0 0.0
      %1147 = vmatprep.subr.mxu0 0.0
      %1148 = vmatpush1.msra.mxu0 0.0
      %1149 = vmatprep.subr.mxu0 0.0
      %1150 = vmatpush1.msra.mxu0 0.0
      %1151 = vmatprep.subr.mxu0 0.0
      %1152 = vmatpush1.msra.mxu0 0.0
      %1153 = vmatprep.subr.mxu0 0.0
      %1154 = vmatpush1.msra.mxu0 0.0
      %1155 = vmatprep.subr.mxu0 0.0
      %1156 = vmatpush1.msra.mxu0 0.0
      %1157 = vmatprep.subr.mxu0 0.0
      %1158 = vmatpush1.msra.mxu0 0.0
      %1159 = vmatprep.mubr.f32.mxu0 0.0
      %1160 = vmatmul.mubr.f32.gmra.mrb[0].mxu0 %v748
      %v1161 = vpop.f32.mrb[0].mxu0
      %v1162 = vadd.f32 0.0, %v1161
      %v1163 = vpop.f32.mrb[0].mxu0
      %1164 = vmatprep.mubr.f32.mxu0 0.0
      %1165 = vmatmul.mubr.f32.gmra.mrb[0].mxu0 %v751
      %v1166 = vpop.f32.mrb[0].mxu0
      %v1167 = vadd.f32 0.0, %v1166
      %v1168 = vpop.f32.mrb[0].mxu0
      %1169 = vmatprep.mubr.f32.mxu0 0.0
      %1170 = vmatmul.mubr.f32.gmra.mrb[0].mxu0 %v754
      %v1171 = vpop.f32.mrb[0].mxu0
      %v1172 = vadd.f32 0.0, %v1171
      %v1173 = vpop.f32.mrb[0].mxu0
      %1174 = vdwg.mxu0
      %1175 = vmatprep.subr.mxu0 0.0
      %1176 = vmatpush1.msra.mxu0 %v723
      %1177 = vmatprep.subr.mxu0 0.0
      %1178 = vmatpush1.msra.mxu0 %v724
      %1179 = vmatprep.subr.mxu0 0.0
      %1180 = vmatpush1.msra.mxu0 %v725
      %1181 = vmatprep.subr.mxu0 0.0
      %1182 = vmatpush1.msra.mxu0 %v726
      %1183 = vmatprep.subr.mxu0 0.0
      %1184 = vmatpush1.msra.mxu0 %v727
      %1185 = vmatprep.subr.mxu0 0.0
      %1186 = vmatpush1.msra.mxu0 %v728
      %1187 = vmatprep.subr.mxu0 0.0
      %1188 = vmatpush1.msra.mxu0 %v729
      %1189 = vmatprep.subr.mxu0 0.0
      %1190 = vmatpush1.msra.mxu0 %v730
      %1191 = vmatprep.subr.mxu0 0.0
      %1192 = vmatpush1.msra.mxu0 %v731
      %1193 = vmatprep.subr.mxu0 0.0
      %1194 = vmatpush1.msra.mxu0 %v732
      %1195 = vmatprep.subr.mxu0 0.0
      %1196 = vmatpush1.msra.mxu0 %v733
      %1197 = vmatprep.subr.mxu0 0.0
      %1198 = vmatpush1.msra.mxu0 %v734
      %1199 = vmatprep.subr.mxu0 0.0
      %1200 = vmatpush1.msra.mxu0 %v735
      %1201 = vmatprep.subr.mxu0 0.0
      %1202 = vmatpush1.msra.mxu0 %v736
      %1203 = vmatprep.subr.mxu0 0.0
      %1204 = vmatpush1.msra.mxu0 %v737
      %1205 = vmatprep.subr.mxu0 0.0
      %1206 = vmatpush1.msra.mxu0 %v738
      %1207 = vmatprep.subr.mxu0 0.0
      %1208 = vmatpush1.msra.mxu0 0.0
      %1209 = vmatprep.subr.mxu0 0.0
      %1210 = vmatpush1.msra.mxu0 0.0
      %1211 = vmatprep.subr.mxu0 0.0
      %1212 = vmatpush1.msra.mxu0 0.0
      %1213 = vmatprep.subr.mxu0 0.0
      %1214 = vmatpush1.msra.mxu0 0.0
      %1215 = vmatprep.subr.mxu0 0.0
      %1216 = vmatpush1.msra.mxu0 0.0
      %1217 = vmatprep.subr.mxu0 0.0
      %1218 = vmatpush1.msra.mxu0 0.0
      %1219 = vmatprep.subr.mxu0 0.0
      %1220 = vmatpush1.msra.mxu0 0.0
      %1221 = vmatprep.subr.mxu0 0.0
      %1222 = vmatpush1.msra.mxu0 0.0
      %1223 = vmatprep.subr.mxu0 0.0
      %1224 = vmatpush1.msra.mxu0 0.0
      %1225 = vmatprep.subr.mxu0 0.0
      %1226 = vmatpush1.msra.mxu0 0.0
      %1227 = vmatprep.subr.mxu0 0.0
      %1228 = vmatpush1.msra.mxu0 0.0
      %1229 = vmatprep.subr.mxu0 0.0
      %1230 = vmatpush1.msra.mxu0 0.0
      %1231 = vmatprep.subr.mxu0 0.0
      %1232 = vmatpush1.msra.mxu0 0.0
      %1233 = vmatprep.subr.mxu0 0.0
      %1234 = vmatpush1.msra.mxu0 0.0
      %1235 = vmatprep.subr.mxu0 0.0
      %1236 = vmatpush1.msra.mxu0 0.0
      %1237 = vmatprep.subr.mxu0 0.0
      %1238 = vmatpush1.msra.mxu0 0.0
      %1239 = vmatprep.mubr.f32.mxu0 0.0
      %1240 = vmatmul.mubr.f32.gmra.mrb[0].mxu0 %v1162
      %v1241 = vpop.f32.mrb[0].mxu0
      %v1242 = vpop.f32.mrb[0].mxu0
      %1243 = vmatprep.mubr.f32.mxu0 0.0
      %1244 = vmatmul.mubr.f32.gmra.mrb[0].mxu0 %v1167
      %v1245 = vpop.f32.mrb[0].mxu0
      %v1246 = vadd.f32 %v745, %v1245
      %v1247 = vpop.f32.mrb[0].mxu0
      %1248 = vmatprep.mubr.f32.mxu0 0.0
      %1249 = vmatmul.mubr.f32.gmra.mrb[0].mxu0 %v1172
      %v1250 = vpop.f32.mrb[0].mxu0
      %v1251 = vpop.f32.mrb[0].mxu0
      %1252 = vdwg.mxu0
      %vm1253 = vcmp.gt.f32.partialorder %v1246, 0.0
      %v1254 = vmul.f32 %v1246, 0.01
      %v1255 = vsel %vm1253, %v1246, %v1254
      %v1256 = vmax.f32 %v1094, %v1255
      %v1257 = vadd.f32 %v717, %v1256
      %s1258 = scalar_lea.vmem %s1, 48
      %v1259 = vld [vmem:[%s1258] sm:$0xff]
      %v1260 = vld [vmem:[%s1258 + $0x8] sm:$0xff]
      %v1261 = vld [vmem:[%s1258 + $0x10] sm:$0xff]
      %s1262 = scalar_lea.vmem %s2, 256
      %v1263 = vld [vmem:[%s1262] sm:$0xff]
      %v1264 = vld [vmem:[%s1262 + $0x8] sm:$0xff]
      %v1265 = vld [vmem:[%s1262 + $0x10] sm:$0xff]
      %v1266 = vld [vmem:[%s1262 + $0x18] sm:$0xff]
      %v1267 = vld [vmem:[%s1262 + $0x20] sm:$0xff]
      %v1268 = vld [vmem:[%s1262 + $0x28] sm:$0xff]
      %v1269 = vld [vmem:[%s1262 + $0x30] sm:$0xff]
      %v1270 = vld [vmem:[%s1262 + $0x38] sm:$0xff]
      %v1271 = vld [vmem:[%s1262 + $0x40] sm:$0xff]
      %v1272 = vld [vmem:[%s1262 + $0x48] sm:$0xff]
      %v1273 = vld [vmem:[%s1262 + $0x50] sm:$0xff]
      %v1274 = vld [vmem:[%s1262 + $0x58] sm:$0xff]
      %v1275 = vld [vmem:[%s1262 + $0x60] sm:$0xff]
      %v1276 = vld [vmem:[%s1262 + $0x68] sm:$0xff]
      %v1277 = vld [vmem:[%s1262 + $0x70] sm:$0xff]
      %v1278 = vld [vmem:[%s1262 + $0x78] sm:$0xff]
      %s1279 = scalar_lea.vmem %s3, 2
      %v1280 = vld [vmem:[%s1279] sm:$0x1]
      %v1282 = vlaneseq
      %v1283 = vshrl.u32 %v1282, 7
      %v1284 = vsub.s32 0, %v1283
      %v1285 = vrot.slane %v1280, %v1284
      %v1288 = vsel %vm207, %v1259, 0
      %v1291 = vsel %vm207, %v1260, 0
      %v1294 = vsel %vm207, %v1261, 0
      %1296 = vmatprep.subr.mxu0 0.0
      %1297 = vmatpush1.msra.mxu0 %v178
      %1298 = vmatprep.subr.mxu0 0.0
      %1299 = vmatpush1.msra.mxu0 %v179
      %1300 = vmatprep.subr.mxu0 0.0
      %1301 = vmatpush1.msra.mxu0 %v180
      %1302 = vmatprep.subr.mxu0 0.0
      %1303 = vmatpush1.msra.mxu0 0.0
      %1304 = vmatprep.subr.mxu0 0.0
      %1305 = vmatpush1.msra.mxu0 0.0
      %1306 = vmatprep.subr.mxu0 0.0
      %1307 = vmatpush1.msra.mxu0 0.0
      %1308 = vmatprep.subr.mxu0 0.0
      %1309 = vmatpush1.msra.mxu0 0.0
      %1310 = vmatprep.subr.mxu0 0.0
      %1311 = vmatpush1.msra.mxu0 0.0
      %1312 = vmatprep.subr.mxu0 0.0
      %1313 = vmatpush1.msra.mxu0 0.0
      %1314 = vmatprep.subr.mxu0 0.0
      %1315 = vmatpush1.msra.mxu0 0.0
      %1316 = vmatprep.subr.mxu0 0.0
      %1317 = vmatpush1.msra.mxu0 0.0
      %1318 = vmatprep.subr.mxu0 0.0
      %1319 = vmatpush1.msra.mxu0 0.0
      %1320 = vmatprep.subr.mxu0 0.0
      %1321 = vmatpush1.msra.mxu0 0.0
      %1322 = vmatprep.subr.mxu0 0.0
      %1323 = vmatpush1.msra.mxu0 0.0
      %1324 = vmatprep.subr.mxu0 0.0
      %1325 = vmatpush1.msra.mxu0 0.0
      %1326 = vmatprep.subr.mxu0 0.0
      %1327 = vmatpush1.msra.mxu0 0.0
      %1328 = vmatprep.subr.mxu0 0.0
      %1329 = vmatpush1.msra.mxu0 0.0
      %1330 = vmatprep.subr.mxu0 0.0
      %1331 = vmatpush1.msra.mxu0 0.0
      %1332 = vmatprep.subr.mxu0 0.0
      %1333 = vmatpush1.msra.mxu0 0.0
      %1334 = vmatprep.subr.mxu0 0.0
      %1335 = vmatpush1.msra.mxu0 0.0
      %1336 = vmatprep.subr.mxu0 0.0
      %1337 = vmatpush1.msra.mxu0 0.0
      %1338 = vmatprep.subr.mxu0 0.0
      %1339 = vmatpush1.msra.mxu0 0.0
      %1340 = vmatprep.subr.mxu0 0.0
      %1341 = vmatpush1.msra.mxu0 0.0
      %1342 = vmatprep.subr.mxu0 0.0
      %1343 = vmatpush1.msra.mxu0 0.0
      %1344 = vmatprep.subr.mxu0 0.0
      %1345 = vmatpush1.msra.mxu0 0.0
      %1346 = vmatprep.subr.mxu0 0.0
      %1347 = vmatpush1.msra.mxu0 0.0
      %1348 = vmatprep.subr.mxu0 0.0
      %1349 = vmatpush1.msra.mxu0 0.0
      %1350 = vmatprep.subr.mxu0 0.0
      %1351 = vmatpush1.msra.mxu0 0.0
      %1352 = vmatprep.subr.mxu0 0.0
      %1353 = vmatpush1.msra.mxu0 0.0
      %1354 = vmatprep.subr.mxu0 0.0
      %1355 = vmatpush1.msra.mxu0 0.0
      %1356 = vmatprep.subr.mxu0 0.0
      %1357 = vmatpush1.msra.mxu0 0.0
      %1358 = vmatprep.subr.mxu0 0.0
      %1359 = vmatpush1.msra.mxu0 0.0
      %1360 = vmatprep.mubr.f32.mxu0 0.0
      %1361 = vmatmul.mubr.f32.gmra.mrb[0].mxu0 %v1288
      %v1362 = vpop.f32.mrb[0].mxu0
      %v1363 = vadd.f32 0.0, %v1362
      %v1364 = vpop.f32.mrb[0].mxu0
      %1365 = vmatprep.mubr.f32.mxu0 0.0
      %1366 = vmatmul.mubr.f32.gmra.mrb[0].mxu0 %v1291
      %v1367 = vpop.f32.mrb[0].mxu0
      %v1368 = vadd.f32 0.0, %v1367
      %v1369 = vpop.f32.mrb[0].mxu0
      %1370 = vmatprep.mubr.f32.mxu0 0.0
      %1371 = vmatmul.mubr.f32.gmra.mrb[0].mxu0 %v1294
      %v1372 = vpop.f32.mrb[0].mxu0
      %v1373 = vadd.f32 0.0, %v1372
      %v1374 = vpop.f32.mrb[0].mxu0
      %1375 = vdwg.mxu0
      %1376 = vmatprep.subr.mxu0 0.0
      %1377 = vmatpush1.msra.mxu0 %v1263
      %1378 = vmatprep.subr.mxu0 0.0
      %1379 = vmatpush1.msra.mxu0 %v1264
      %1380 = vmatprep.subr.mxu0 0.0
      %1381 = vmatpush1.msra.mxu0 %v1265
      %1382 = vmatprep.subr.mxu0 0.0
      %1383 = vmatpush1.msra.mxu0 %v1266
      %1384 = vmatprep.subr.mxu0 0.0
      %1385 = vmatpush1.msra.mxu0 %v1267
      %1386 = vmatprep.subr.mxu0 0.0
      %1387 = vmatpush1.msra.mxu0 %v1268
      %1388 = vmatprep.subr.mxu0 0.0
      %1389 = vmatpush1.msra.mxu0 %v1269
      %1390 = vmatprep.subr.mxu0 0.0
      %1391 = vmatpush1.msra.mxu0 %v1270
      %1392 = vmatprep.subr.mxu0 0.0
      %1393 = vmatpush1.msra.mxu0 %v1271
      %1394 = vmatprep.subr.mxu0 0.0
      %1395 = vmatpush1.msra.mxu0 %v1272
      %1396 = vmatprep.subr.mxu0 0.0
      %1397 = vmatpush1.msra.mxu0 %v1273
      %1398 = vmatprep.subr.mxu0 0.0
      %1399 = vmatpush1.msra.mxu0 %v1274
      %1400 = vmatprep.subr.mxu0 0.0
      %1401 = vmatpush1.msra.mxu0 %v1275
      %1402 = vmatprep.subr.mxu0 0.0
      %1403 = vmatpush1.msra.mxu0 %v1276
      %1404 = vmatprep.subr.mxu0 0.0
      %1405 = vmatpush1.msra.mxu0 %v1277
      %1406 = vmatprep.subr.mxu0 0.0
      %1407 = vmatpush1.msra.mxu0 %v1278
      %1408 = vmatprep.subr.mxu0 0.0
      %1409 = vmatpush1.msra.mxu0 0.0
      %1410 = vmatprep.subr.mxu0 0.0
      %1411 = vmatpush1.msra.mxu0 0.0
      %1412 = vmatprep.subr.mxu0 0.0
      %1413 = vmatpush1.msra.mxu0 0.0
      %1414 = vmatprep.subr.mxu0 0.0
      %1415 = vmatpush1.msra.mxu0 0.0
      %1416 = vmatprep.subr.mxu0 0.0
      %1417 = vmatpush1.msra.mxu0 0.0
      %1418 = vmatprep.subr.mxu0 0.0
      %1419 = vmatpush1.msra.mxu0 0.0
      %1420 = vmatprep.subr.mxu0 0.0
      %1421 = vmatpush1.msra.mxu0 0.0
      %1422 = vmatprep.subr.mxu0 0.0
      %1423 = vmatpush1.msra.mxu0 0.0
      %1424 = vmatprep.subr.mxu0 0.0
      %1425 = vmatpush1.msra.mxu0 0.0
      %1426 = vmatprep.subr.mxu0 0.0
      %1427 = vmatpush1.msra.mxu0 0.0
      %1428 = vmatprep.subr.mxu0 0.0
      %1429 = vmatpush1.msra.mxu0 0.0
      %1430 = vmatprep.subr.mxu0 0.0
      %1431 = vmatpush1.msra.mxu0 0.0
      %1432 = vmatprep.subr.mxu0 0.0
      %1433 = vmatpush1.msra.mxu0 0.0
      %1434 = vmatprep.subr.mxu0 0.0
      %1435 = vmatpush1.msra.mxu0 0.0
      %1436 = vmatprep.subr.mxu0 0.0
      %1437 = vmatpush1.msra.mxu0 0.0
      %1438 = vmatprep.subr.mxu0 0.0
      %1439 = vmatpush1.msra.mxu0 0.0
      %1440 = vmatprep.mubr.f32.mxu0 0.0
      %1441 = vmatmul.mubr.f32.gmra.mrb[0].mxu0 %v1363
      %v1442 = vpop.f32.mrb[0].mxu0
      %v1443 = vadd.f32 %v1285, %v1442
      %v1444 = vpop.f32.mrb[0].mxu0
      %1445 = vmatprep.mubr.f32.mxu0 0.0
      %1446 = vmatmul.mubr.f32.gmra.mrb[0].mxu0 %v1368
      %v1447 = vpop.f32.mrb[0].mxu0
      %v1448 = vadd.f32 %v1285, %v1447
      %v1449 = vpop.f32.mrb[0].mxu0
      %1450 = vmatprep.mubr.f32.mxu0 0.0
      %1451 = vmatmul.mubr.f32.gmra.mrb[0].mxu0 %v1373
      %v1452 = vpop.f32.mrb[0].mxu0
      %v1453 = vadd.f32 %v1285, %v1452
      %v1454 = vpop.f32.mrb[0].mxu0
      %1455 = vdwg.mxu0
      %vm1456 = vcmp.gt.f32.partialorder %v1443, 0.0
      %vm1457 = vcmp.gt.f32.partialorder %v1448, 0.0
      %vm1458 = vcmp.gt.f32.partialorder %v1453, 0.0
      %v1459 = vmul.f32 %v1443, 0.01
      %v1460 = vmul.f32 %v1448, 0.01
      %v1461 = vmul.f32 %v1453, 0.01
      %v1462 = vsel %vm1456, %v1443, %v1459
      %v1463 = vsel %vm1457, %v1448, %v1460
      %v1464 = vsel %vm1458, %v1453, %v1461
      %1465 = vmatprep.subr.mxu0 0.0
      %1466 = vmatpush1.msra.mxu0 %v1462
      %1467 = vmatprep.subr.mxu0 0.0
      %1468 = vmatpush1.msra.mxu0 %v1463
      %1469 = vmatprep.subr.mxu0 0.0
      %1470 = vmatpush1.msra.mxu0 %v1464
      %1471 = vmatprep.subr.mxu0 0.0
      %1472 = vmatpush1.msra.mxu0 0.0
      %1473 = vmatprep.subr.mxu0 0.0
      %1474 = vmatpush1.msra.mxu0 0.0
      %1475 = vmatprep.subr.mxu0 0.0
      %1476 = vmatpush1.msra.mxu0 0.0
      %1477 = vmatprep.subr.mxu0 0.0
      %1478 = vmatpush1.msra.mxu0 0.0
      %1479 = vmatprep.subr.mxu0 0.0
      %1480 = vmatpush1.msra.mxu0 0.0
      %1481 = vmatprep.subr.mxu0 0.0
      %1482 = vmatpush1.msra.mxu0 0.0
      %1483 = vmatprep.subr.mxu0 0.0
      %1484 = vmatpush1.msra.mxu0 0.0
      %1485 = vmatprep.subr.mxu0 0.0
      %1486 = vmatpush1.msra.mxu0 0.0
      %1487 = vmatprep.subr.mxu0 0.0
      %1488 = vmatpush1.msra.mxu0 0.0
      %1489 = vmatprep.subr.mxu0 0.0
      %1490 = vmatpush1.msra.mxu0 0.0
      %1491 = vmatprep.subr.mxu0 0.0
      %1492 = vmatpush1.msra.mxu0 0.0
      %1493 = vmatprep.subr.mxu0 0.0
      %1494 = vmatpush1.msra.mxu0 0.0
      %1495 = vmatprep.subr.mxu0 0.0
      %1496 = vmatpush1.msra.mxu0 0.0
      %1497 = vmatprep.subr.mxu0 0.0
      %1498 = vmatpush1.msra.mxu0 0.0
      %1499 = vmatprep.subr.mxu0 0.0
      %1500 = vmatpush1.msra.mxu0 0.0
      %1501 = vmatprep.subr.mxu0 0.0
      %1502 = vmatpush1.msra.mxu0 0.0
      %1503 = vmatprep.subr.mxu0 0.0
      %1504 = vmatpush1.msra.mxu0 0.0
      %1505 = vmatprep.subr.mxu0 0.0
      %1506 = vmatpush1.msra.mxu0 0.0
      %1507 = vmatprep.subr.mxu0 0.0
      %1508 = vmatpush1.msra.mxu0 0.0
      %1509 = vmatprep.subr.mxu0 0.0
      %1510 = vmatpush1.msra.mxu0 0.0
      %1511 = vmatprep.subr.mxu0 0.0
      %1512 = vmatpush1.msra.mxu0 0.0
      %1513 = vmatprep.subr.mxu0 0.0
      %1514 = vmatpush1.msra.mxu0 0.0
      %1515 = vmatprep.subr.mxu0 0.0
      %1516 = vmatpush1.msra.mxu0 0.0
      %1517 = vmatprep.subr.mxu0 0.0
      %1518 = vmatpush1.msra.mxu0 0.0
      %1519 = vmatprep.subr.mxu0 0.0
      %1520 = vmatpush1.msra.mxu0 0.0
      %1521 = vmatprep.subr.mxu0 0.0
      %1522 = vmatpush1.msra.mxu0 0.0
      %1523 = vmatprep.subr.mxu0 0.0
      %1524 = vmatpush1.msra.mxu0 0.0
      %1525 = vmatprep.subr.mxu0 0.0
      %1526 = vmatpush1.msra.mxu0 0.0
      %1527 = vmatprep.subr.mxu0 0.0
      %1528 = vmatpush1.msra.mxu0 0.0
      %1529 = vmatprep.mubr.f32.mxu0 0.0
      %1530 = vmatmul.mubr.f32.gmra.mrb[0].mxu0 %v1288
      %v1531 = vpop.f32.mrb[0].mxu0
      %v1532 = vadd.f32 0.0, %v1531
      %v1533 = vpop.f32.mrb[0].mxu0
      %1534 = vmatprep.mubr.f32.mxu0 0.0
      %1535 = vmatmul.mubr.f32.gmra.mrb[0].mxu0 %v1291
      %v1536 = vpop.f32.mrb[0].mxu0
      %v1537 = vadd.f32 0.0, %v1536
      %v1538 = vpop.f32.mrb[0].mxu0
      %1539 = vmatprep.mubr.f32.mxu0 0.0
      %1540 = vmatmul.mubr.f32.gmra.mrb[0].mxu0 %v1294
      %v1541 = vpop.f32.mrb[0].mxu0
      %v1542 = vadd.f32 0.0, %v1541
      %v1543 = vpop.f32.mrb[0].mxu0
      %1544 = vdwg.mxu0
      %1545 = vmatprep.subr.mxu0 0.0
      %1546 = vmatpush1.msra.mxu0 %v1263
      %1547 = vmatprep.subr.mxu0 0.0
      %1548 = vmatpush1.msra.mxu0 %v1264
      %1549 = vmatprep.subr.mxu0 0.0
      %1550 = vmatpush1.msra.mxu0 %v1265
      %1551 = vmatprep.subr.mxu0 0.0
      %1552 = vmatpush1.msra.mxu0 %v1266
      %1553 = vmatprep.subr.mxu0 0.0
      %1554 = vmatpush1.msra.mxu0 %v1267
      %1555 = vmatprep.subr.mxu0 0.0
      %1556 = vmatpush1.msra.mxu0 %v1268
      %1557 = vmatprep.subr.mxu0 0.0
      %1558 = vmatpush1.msra.mxu0 %v1269
      %1559 = vmatprep.subr.mxu0 0.0
      %1560 = vmatpush1.msra.mxu0 %v1270
      %1561 = vmatprep.subr.mxu0 0.0
      %1562 = vmatpush1.msra.mxu0 %v1271
      %1563 = vmatprep.subr.mxu0 0.0
      %1564 = vmatpush1.msra.mxu0 %v1272
      %1565 = vmatprep.subr.mxu0 0.0
      %1566 = vmatpush1.msra.mxu0 %v1273
      %1567 = vmatprep.subr.mxu0 0.0
      %1568 = vmatpush1.msra.mxu0 %v1274
      %1569 = vmatprep.subr.mxu0 0.0
      %1570 = vmatpush1.msra.mxu0 %v1275
      %1571 = vmatprep.subr.mxu0 0.0
      %1572 = vmatpush1.msra.mxu0 %v1276
      %1573 = vmatprep.subr.mxu0 0.0
      %1574 = vmatpush1.msra.mxu0 %v1277
      %1575 = vmatprep.subr.mxu0 0.0
      %1576 = vmatpush1.msra.mxu0 %v1278
      %1577 = vmatprep.subr.mxu0 0.0
      %1578 = vmatpush1.msra.mxu0 0.0
      %1579 = vmatprep.subr.mxu0 0.0
      %1580 = vmatpush1.msra.mxu0 0.0
      %1581 = vmatprep.subr.mxu0 0.0
      %1582 = vmatpush1.msra.mxu0 0.0
      %1583 = vmatprep.subr.mxu0 0.0
      %1584 = vmatpush1.msra.mxu0 0.0
      %1585 = vmatprep.subr.mxu0 0.0
      %1586 = vmatpush1.msra.mxu0 0.0
      %1587 = vmatprep.subr.mxu0 0.0
      %1588 = vmatpush1.msra.mxu0 0.0
      %1589 = vmatprep.subr.mxu0 0.0
      %1590 = vmatpush1.msra.mxu0 0.0
      %1591 = vmatprep.subr.mxu0 0.0
      %1592 = vmatpush1.msra.mxu0 0.0
      %1593 = vmatprep.subr.mxu0 0.0
      %1594 = vmatpush1.msra.mxu0 0.0
      %1595 = vmatprep.subr.mxu0 0.0
      %1596 = vmatpush1.msra.mxu0 0.0
      %1597 = vmatprep.subr.mxu0 0.0
      %1598 = vmatpush1.msra.mxu0 0.0
      %1599 = vmatprep.subr.mxu0 0.0
      %1600 = vmatpush1.msra.mxu0 0.0
      %1601 = vmatprep.subr.mxu0 0.0
      %1602 = vmatpush1.msra.mxu0 0.0
      %1603 = vmatprep.subr.mxu0 0.0
      %1604 = vmatpush1.msra.mxu0 0.0
      %1605 = vmatprep.subr.mxu0 0.0
      %1606 = vmatpush1.msra.mxu0 0.0
      %1607 = vmatprep.subr.mxu0 0.0
      %1608 = vmatpush1.msra.mxu0 0.0
      %1609 = vmatprep.mubr.f32.mxu0 0.0
      %1610 = vmatmul.mubr.f32.gmra.mrb[0].mxu0 %v1532
      %v1611 = vpop.f32.mrb[0].mxu0
      %v1612 = vadd.f32 %v1285, %v1611
      %v1613 = vpop.f32.mrb[0].mxu0
      %1614 = vmatprep.mubr.f32.mxu0 0.0
      %1615 = vmatmul.mubr.f32.gmra.mrb[0].mxu0 %v1537
      %v1616 = vpop.f32.mrb[0].mxu0
      %v1617 = vadd.f32 %v1285, %v1616
      %v1618 = vpop.f32.mrb[0].mxu0
      %1619 = vmatprep.mubr.f32.mxu0 0.0
      %1620 = vmatmul.mubr.f32.gmra.mrb[0].mxu0 %v1542
      %v1621 = vpop.f32.mrb[0].mxu0
      %v1622 = vadd.f32 %v1285, %v1621
      %v1623 = vpop.f32.mrb[0].mxu0
      %1624 = vdwg.mxu0
      %vm1625 = vcmp.gt.f32.partialorder %v1612, 0.0
      %vm1626 = vcmp.gt.f32.partialorder %v1617, 0.0
      %vm1627 = vcmp.gt.f32.partialorder %v1622, 0.0
      %v1628 = vmul.f32 %v1612, 0.01
      %v1629 = vmul.f32 %v1617, 0.01
      %v1630 = vmul.f32 %v1622, 0.01
      %v1631 = vsel %vm1625, %v1612, %v1628
      %v1632 = vsel %vm1626, %v1617, %v1629
      %v1633 = vsel %vm1627, %v1622, %v1630
      %v1634 = vmax.f32 %v1463, %v1632
      %1635 = vmatprep.subr.mxu0 0.0
      %1636 = vmatpush1.msra.mxu0 %v1631
      %1637 = vmatprep.subr.mxu0 0.0
      %1638 = vmatpush1.msra.mxu0 %v1632
      %1639 = vmatprep.subr.mxu0 0.0
      %1640 = vmatpush1.msra.mxu0 %v1633
      %1641 = vmatprep.subr.mxu0 0.0
      %1642 = vmatpush1.msra.mxu0 0.0
      %1643 = vmatprep.subr.mxu0 0.0
      %1644 = vmatpush1.msra.mxu0 0.0
      %1645 = vmatprep.subr.mxu0 0.0
      %1646 = vmatpush1.msra.mxu0 0.0
      %1647 = vmatprep.subr.mxu0 0.0
      %1648 = vmatpush1.msra.mxu0 0.0
      %1649 = vmatprep.subr.mxu0 0.0
      %1650 = vmatpush1.msra.mxu0 0.0
      %1651 = vmatprep.subr.mxu0 0.0
      %1652 = vmatpush1.msra.mxu0 0.0
      %1653 = vmatprep.subr.mxu0 0.0
      %1654 = vmatpush1.msra.mxu0 0.0
      %1655 = vmatprep.subr.mxu0 0.0
      %1656 = vmatpush1.msra.mxu0 0.0
      %1657 = vmatprep.subr.mxu0 0.0
      %1658 = vmatpush1.msra.mxu0 0.0
      %1659 = vmatprep.subr.mxu0 0.0
      %1660 = vmatpush1.msra.mxu0 0.0
      %1661 = vmatprep.subr.mxu0 0.0
      %1662 = vmatpush1.msra.mxu0 0.0
      %1663 = vmatprep.subr.mxu0 0.0
      %1664 = vmatpush1.msra.mxu0 0.0
      %1665 = vmatprep.subr.mxu0 0.0
      %1666 = vmatpush1.msra.mxu0 0.0
      %1667 = vmatprep.subr.mxu0 0.0
      %1668 = vmatpush1.msra.mxu0 0.0
      %1669 = vmatprep.subr.mxu0 0.0
      %1670 = vmatpush1.msra.mxu0 0.0
      %1671 = vmatprep.subr.mxu0 0.0
      %1672 = vmatpush1.msra.mxu0 0.0
      %1673 = vmatprep.subr.mxu0 0.0
      %1674 = vmatpush1.msra.mxu0 0.0
      %1675 = vmatprep.subr.mxu0 0.0
      %1676 = vmatpush1.msra.mxu0 0.0
      %1677 = vmatprep.subr.mxu0 0.0
      %1678 = vmatpush1.msra.mxu0 0.0
      %1679 = vmatprep.subr.mxu0 0.0
      %1680 = vmatpush1.msra.mxu0 0.0
      %1681 = vmatprep.subr.mxu0 0.0
      %1682 = vmatpush1.msra.mxu0 0.0
      %1683 = vmatprep.subr.mxu0 0.0
      %1684 = vmatpush1.msra.mxu0 0.0
      %1685 = vmatprep.subr.mxu0 0.0
      %1686 = vmatpush1.msra.mxu0 0.0
      %1687 = vmatprep.subr.mxu0 0.0
      %1688 = vmatpush1.msra.mxu0 0.0
      %1689 = vmatprep.subr.mxu0 0.0
      %1690 = vmatpush1.msra.mxu0 0.0
      %1691 = vmatprep.subr.mxu0 0.0
      %1692 = vmatpush1.msra.mxu0 0.0
      %1693 = vmatprep.subr.mxu0 0.0
      %1694 = vmatpush1.msra.mxu0 0.0
      %1695 = vmatprep.subr.mxu0 0.0
      %1696 = vmatpush1.msra.mxu0 0.0
      %1697 = vmatprep.subr.mxu0 0.0
      %1698 = vmatpush1.msra.mxu0 0.0
      %1699 = vmatprep.mubr.f32.mxu0 0.0
      %1700 = vmatmul.mubr.f32.gmra.mrb[0].mxu0 %v1288
      %v1701 = vpop.f32.mrb[0].mxu0
      %v1702 = vadd.f32 0.0, %v1701
      %v1703 = vpop.f32.mrb[0].mxu0
      %1704 = vmatprep.mubr.f32.mxu0 0.0
      %1705 = vmatmul.mubr.f32.gmra.mrb[0].mxu0 %v1291
      %v1706 = vpop.f32.mrb[0].mxu0
      %v1707 = vadd.f32 0.0, %v1706
      %v1708 = vpop.f32.mrb[0].mxu0
      %1709 = vmatprep.mubr.f32.mxu0 0.0
      %1710 = vmatmul.mubr.f32.gmra.mrb[0].mxu0 %v1294
      %v1711 = vpop.f32.mrb[0].mxu0
      %v1712 = vadd.f32 0.0, %v1711
      %v1713 = vpop.f32.mrb[0].mxu0
      %1714 = vdwg.mxu0
      %1715 = vmatprep.subr.mxu0 0.0
      %1716 = vmatpush1.msra.mxu0 %v1263
      %1717 = vmatprep.subr.mxu0 0.0
      %1718 = vmatpush1.msra.mxu0 %v1264
      %1719 = vmatprep.subr.mxu0 0.0
      %1720 = vmatpush1.msra.mxu0 %v1265
      %1721 = vmatprep.subr.mxu0 0.0
      %1722 = vmatpush1.msra.mxu0 %v1266
      %1723 = vmatprep.subr.mxu0 0.0
      %1724 = vmatpush1.msra.mxu0 %v1267
      %1725 = vmatprep.subr.mxu0 0.0
      %1726 = vmatpush1.msra.mxu0 %v1268
      %1727 = vmatprep.subr.mxu0 0.0
      %1728 = vmatpush1.msra.mxu0 %v1269
      %1729 = vmatprep.subr.mxu0 0.0
      %1730 = vmatpush1.msra.mxu0 %v1270
      %1731 = vmatprep.subr.mxu0 0.0
      %1732 = vmatpush1.msra.mxu0 %v1271
      %1733 = vmatprep.subr.mxu0 0.0
      %1734 = vmatpush1.msra.mxu0 %v1272
      %1735 = vmatprep.subr.mxu0 0.0
      %1736 = vmatpush1.msra.mxu0 %v1273
      %1737 = vmatprep.subr.mxu0 0.0
      %1738 = vmatpush1.msra.mxu0 %v1274
      %1739 = vmatprep.subr.mxu0 0.0
      %1740 = vmatpush1.msra.mxu0 %v1275
      %1741 = vmatprep.subr.mxu0 0.0
      %1742 = vmatpush1.msra.mxu0 %v1276
      %1743 = vmatprep.subr.mxu0 0.0
      %1744 = vmatpush1.msra.mxu0 %v1277
      %1745 = vmatprep.subr.mxu0 0.0
      %1746 = vmatpush1.msra.mxu0 %v1278
      %1747 = vmatprep.subr.mxu0 0.0
      %1748 = vmatpush1.msra.mxu0 0.0
      %1749 = vmatprep.subr.mxu0 0.0
      %1750 = vmatpush1.msra.mxu0 0.0
      %1751 = vmatprep.subr.mxu0 0.0
      %1752 = vmatpush1.msra.mxu0 0.0
      %1753 = vmatprep.subr.mxu0 0.0
      %1754 = vmatpush1.msra.mxu0 0.0
      %1755 = vmatprep.subr.mxu0 0.0
      %1756 = vmatpush1.msra.mxu0 0.0
      %1757 = vmatprep.subr.mxu0 0.0
      %1758 = vmatpush1.msra.mxu0 0.0
      %1759 = vmatprep.subr.mxu0 0.0
      %1760 = vmatpush1.msra.mxu0 0.0
      %1761 = vmatprep.subr.mxu0 0.0
      %1762 = vmatpush1.msra.mxu0 0.0
      %1763 = vmatprep.subr.mxu0 0.0
      %1764 = vmatpush1.msra.mxu0 0.0
      %1765 = vmatprep.subr.mxu0 0.0
      %1766 = vmatpush1.msra.mxu0 0.0
      %1767 = vmatprep.subr.mxu0 0.0
      %1768 = vmatpush1.msra.mxu0 0.0
      %1769 = vmatprep.subr.mxu0 0.0
      %1770 = vmatpush1.msra.mxu0 0.0
      %1771 = vmatprep.subr.mxu0 0.0
      %1772 = vmatpush1.msra.mxu0 0.0
      %1773 = vmatprep.subr.mxu0 0.0
      %1774 = vmatpush1.msra.mxu0 0.0
      %1775 = vmatprep.subr.mxu0 0.0
      %1776 = vmatpush1.msra.mxu0 0.0
      %1777 = vmatprep.subr.mxu0 0.0
      %1778 = vmatpush1.msra.mxu0 0.0
      %1779 = vmatprep.mubr.f32.mxu0 0.0
      %1780 = vmatmul.mubr.f32.gmra.mrb[0].mxu0 %v1702
      %v1781 = vpop.f32.mrb[0].mxu0
      %v1782 = vpop.f32.mrb[0].mxu0
      %1783 = vmatprep.mubr.f32.mxu0 0.0
      %1784 = vmatmul.mubr.f32.gmra.mrb[0].mxu0 %v1707
      %v1785 = vpop.f32.mrb[0].mxu0
      %v1786 = vadd.f32 %v1285, %v1785
      %v1787 = vpop.f32.mrb[0].mxu0
      %1788 = vmatprep.mubr.f32.mxu0 0.0
      %1789 = vmatmul.mubr.f32.gmra.mrb[0].mxu0 %v1712
      %v1790 = vpop.f32.mrb[0].mxu0
      %v1791 = vpop.f32.mrb[0].mxu0
      %1792 = vdwg.mxu0
      %vm1793 = vcmp.gt.f32.partialorder %v1786, 0.0
      %v1794 = vmul.f32 %v1786, 0.01
      %v1795 = vsel %vm1793, %v1786, %v1794
      %v1796 = vmax.f32 %v1634, %v1795
      %v1797 = vadd.f32 %v1257, %v1796
      %1798 = vst [vmem:[%s175] sm:$0xff] %v1797
      %p1799 = scmp.lt.s32.totalorder %s15, 4
      %s1800 = scalar_select %p1799, %s15, 4
      %s1801 = smul.addr %s1800, 8
      %s1802 = scalar_lea.vmem %s4, %s1801
      // Predicated region
      $region37: #{stsgcn_forward.4} parent=35 // pred_check
        %p1803 = pneg %p117
      $region38: #{stsgcn_forward.4} parent=35 // pred_check_branch
        %1805 = sbr.rel (%p1803) target = $region40
      $region39: #{stsgcn_forward.4} parent=35 // pred_region
        _
      $region40: #{stsgcn_forward.4} parent=35 // pred_fallthru
        _
    $region36: #{stsgcn_forward.4} parent=5 // pred_fallthru
      _
    %p1806 = scmp.le.s32.totalorder 2, %s10
    // Predicated region
    $region41: #{stsgcn_forward.4} parent=5 // pred_check
      %p1807 = pneg %p1806
    $region42: #{stsgcn_forward.4} parent=5 // pred_check_branch
      %1809 = sbr.rel (%p1807) target = $region44
    $region43: #{stsgcn_forward.4} parent=5 // pred_region
      %s1810 = ssub.s32 %s10, 2
      // Predicated region
      $region45: #{stsgcn_forward.4} parent=43 // pred_check
        %p1811 = pneg %p123
      $region46: #{stsgcn_forward.4} parent=43 // pred_check_branch
        %1813 = sbr.rel (%p1811) target = $region48
      $region47: #{stsgcn_forward.4} parent=43 // pred_region
        %p1814 = scmp.lt.s32.totalorder %s16, 4
        %s1815 = scalar_select %p1814, %s16, 4
        %s1816 = smul.addr %s1815, 8
        %s1817 = scalar_lea.vmem %s4, %s1816
      $region48: #{stsgcn_forward.4} parent=43 // pred_fallthru
        _
    $region44: #{stsgcn_forward.4} parent=5 // pred_fallthru
      _
  $region6: #{stsgcn_forward.4} parent=0 // loop_footer
    %s14 = sadd.s32 1, %s10
  $region7: #{stsgcn_forward.4} parent=0 // loop_footer_branch
    %9 = sbr.rel target = $region3
  $region8: #{stsgcn_forward.4} parent=0 // loop_exit
    _

// kernel: stsgcn_forward.5
$region0: #{stsgcn_forward.5}
  #allocation0 [shape = 'u32[]', space=smem, size = 0x4, offset = 0x4, fixed_abs, tag = 'smem constant byte address 0x4 - core index']
  #allocation1 [shape = 'u32[144,128]{1,0:T(1,128)}', space=vmem, size = 0x12000, scoped, tag = 'internal scratch']
  %s0 = inlined_call_operand.vmem [shape: f32[16,320], index: 0, kind: input, shape index: {}]
  %s1 = inlined_call_operand.vmem [shape: f32[384,320], index: 1, kind: input, shape index: {}]
  %s2 = inlined_call_operand.vmem [shape: f32[1,384], index: 2, kind: input, shape index: {}]
  %s3 = inlined_call_operand.vmem [shape: f32[16,128], index: 3, kind: output, shape index: {}]
  %s4 = sld [smem:[#allocation0]]
  $region22: #{stsgcn_forward.5} parent=0
    _
  %s6 = ssub.s32 1, %s4
  %s7 = scalar_select 0, %s6, %s4
  // Predicated region
  $region2: #{stsgcn_forward.5} parent=0 // pred_check
    _
  $region3: #{stsgcn_forward.5} parent=0 // pred_check_branch
    %9 = sbr.rel (0) target = $region5
  $region4: #{stsgcn_forward.5} parent=0 // pred_region
    _
  $region5: #{stsgcn_forward.5} parent=0 // pred_fallthru
    _
  // Predicated region
  $region6: #{stsgcn_forward.5} parent=0 // pred_check
    _
  $region7: #{stsgcn_forward.5} parent=0 // pred_check_branch
    %11 = sbr.rel (0) target = $region9
  $region8: #{stsgcn_forward.5} parent=0 // pred_region
    _
  $region9: #{stsgcn_forward.5} parent=0 // pred_fallthru
    _
  // Predicated region
  $region10: #{stsgcn_forward.5} parent=0 // pred_check
    _
  $region11: #{stsgcn_forward.5} parent=0 // pred_check_branch
    %13 = sbr.rel (0) target = $region13
  $region12: #{stsgcn_forward.5} parent=0 // pred_region
    _
  $region13: #{stsgcn_forward.5} parent=0 // pred_fallthru
    _
  %v14 = vld [vmem:[%s0] sm:$0xff]
  %v15 = vld [vmem:[%s0 + $0x8] sm:$0xff]
  %v16 = vld [vmem:[%s0 + $0x10] sm:$0xff]
  %v17 = vld [vmem:[%s0 + $0x18] sm:$0xff]
  %v18 = vld [vmem:[%s0 + $0x20] sm:$0xff]
  %v19 = vld [vmem:[%s0 + $0x28] sm:$0xff]
  %v20 = vld [vmem:[%s1] sm:$0xff]
  %v21 = vld [vmem:[%s1 + $0x8] sm:$0xff]
  %v22 = vld [vmem:[%s1 + $0x10] sm:$0xff]
  %v23 = vld [vmem:[%s1 + $0x18] sm:$0xff]
  %v24 = vld [vmem:[%s1 + $0x20] sm:$0xff]
  %v25 = vld [vmem:[%s1 + $0x28] sm:$0xff]
  %v26 = vld [vmem:[%s1 + $0x30] sm:$0xff]
  %v27 = vld [vmem:[%s1 + $0x38] sm:$0xff]
  %v28 = vld [vmem:[%s1 + $0x40] sm:$0xff]
  %v29 = vld [vmem:[%s1 + $0x48] sm:$0xff]
  %v30 = vld [vmem:[%s1 + $0x50] sm:$0xff]
  %v31 = vld [vmem:[%s1 + $0x58] sm:$0xff]
  %v32 = vld [vmem:[%s1 + $0x60] sm:$0xff]
  %v33 = vld [vmem:[%s1 + $0x68] sm:$0xff]
  %v34 = vld [vmem:[%s1 + $0x70] sm:$0xff]
  %v35 = vld [vmem:[%s1 + $0x78] sm:$0xff]
  %v36 = vld [vmem:[%s1 + $0x80] sm:$0xff]
  %v37 = vld [vmem:[%s1 + $0x88] sm:$0xff]
  %v38 = vld [vmem:[%s1 + $0x90] sm:$0xff]
  %v39 = vld [vmem:[%s1 + $0x98] sm:$0xff]
  %v40 = vld [vmem:[%s1 + $0xa0] sm:$0xff]
  %v41 = vld [vmem:[%s1 + $0xa8] sm:$0xff]
  %v42 = vld [vmem:[%s1 + $0xb0] sm:$0xff]
  %v43 = vld [vmem:[%s1 + $0xb8] sm:$0xff]
  %v44 = vld [vmem:[%s1 + $0xc0] sm:$0xff]
  %v45 = vld [vmem:[%s1 + $0xc8] sm:$0xff]
  %v46 = vld [vmem:[%s1 + $0xd0] sm:$0xff]
  %v47 = vld [vmem:[%s1 + $0xd8] sm:$0xff]
  %v48 = vld [vmem:[%s1 + $0xe0] sm:$0xff]
  %v49 = vld [vmem:[%s1 + $0xe8] sm:$0xff]
  %v50 = vld [vmem:[%s1 + $0xf0] sm:$0xff]
  %v51 = vld [vmem:[%s1 + $0xf8] sm:$0xff]
  %v52 = vld [vmem:[%s1 + $0x100] sm:$0xff]
  %v53 = vld [vmem:[%s1 + $0x108] sm:$0xff]
  %v54 = vld [vmem:[%s1 + $0x110] sm:$0xff]
  %v55 = vld [vmem:[%s1 + $0x118] sm:$0xff]
  %v56 = vld [vmem:[%s1 + $0x120] sm:$0xff]
  %v57 = vld [vmem:[%s1 + $0x128] sm:$0xff]
  %v58 = vld [vmem:[%s1 + $0x130] sm:$0xff]
  %v59 = vld [vmem:[%s1 + $0x138] sm:$0xff]
  %v60 = vld [vmem:[%s1 + $0x140] sm:$0xff]
  %v61 = vld [vmem:[%s1 + $0x148] sm:$0xff]
  %v62 = vld [vmem:[%s1 + $0x150] sm:$0xff]
  %v63 = vld [vmem:[%s1 + $0x158] sm:$0xff]
  %v64 = vld [vmem:[%s1 + $0x160] sm:$0xff]
  %v65 = vld [vmem:[%s1 + $0x168] sm:$0xff]
  %v66 = vld [vmem:[%s1 + $0x170] sm:$0xff]
  %v67 = vld [vmem:[%s1 + $0x178] sm:$0xff]
  %v68 = vld [vmem:[%s1 + $0x180] sm:$0xff]
  %v69 = vld [vmem:[%s1 + $0x188] sm:$0xff]
  %v70 = vld [vmem:[%s1 + $0x190] sm:$0xff]
  %v71 = vld [vmem:[%s1 + $0x198] sm:$0xff]
  %v72 = vld [vmem:[%s1 + $0x1a0] sm:$0xff]
  %v73 = vld [vmem:[%s1 + $0x1a8] sm:$0xff]
  %v74 = vld [vmem:[%s1 + $0x1b0] sm:$0xff]
  %v75 = vld [vmem:[%s1 + $0x1b8] sm:$0xff]
  %v76 = vld [vmem:[%s1 + $0x1c0] sm:$0xff]
  %v77 = vld [vmem:[%s1 + $0x1c8] sm:$0xff]
  %v78 = vld [vmem:[%s1 + $0x1d0] sm:$0xff]
  %v79 = vld [vmem:[%s1 + $0x1d8] sm:$0xff]
  %v80 = vld [vmem:[%s1 + $0x1e0] sm:$0xff]
  %v81 = vld [vmem:[%s1 + $0x1e8] sm:$0xff]
  %v82 = vld [vmem:[%s1 + $0x1f0] sm:$0xff]
  %v83 = vld [vmem:[%s1 + $0x1f8] sm:$0xff]
  %v84 = vld [vmem:[%s1 + $0x200] sm:$0xff]
  %v85 = vld [vmem:[%s1 + $0x208] sm:$0xff]
  %v86 = vld [vmem:[%s1 + $0x210] sm:$0xff]
  %v87 = vld [vmem:[%s1 + $0x218] sm:$0xff]
  %v88 = vld [vmem:[%s1 + $0x220] sm:$0xff]
  %v89 = vld [vmem:[%s1 + $0x228] sm:$0xff]
  %v90 = vld [vmem:[%s1 + $0x230] sm:$0xff]
  %v91 = vld [vmem:[%s1 + $0x238] sm:$0xff]
  %v92 = vld [vmem:[%s1 + $0x240] sm:$0xff]
  %v93 = vld [vmem:[%s1 + $0x248] sm:$0xff]
  %v94 = vld [vmem:[%s1 + $0x250] sm:$0xff]
  %v95 = vld [vmem:[%s1 + $0x258] sm:$0xff]
  %v96 = vld [vmem:[%s1 + $0x260] sm:$0xff]
  %v97 = vld [vmem:[%s1 + $0x268] sm:$0xff]
  %v98 = vld [vmem:[%s1 + $0x270] sm:$0xff]
  %v99 = vld [vmem:[%s1 + $0x278] sm:$0xff]
  %v100 = vld [vmem:[%s1 + $0x280] sm:$0xff]
  %v101 = vld [vmem:[%s1 + $0x288] sm:$0xff]
  %v102 = vld [vmem:[%s1 + $0x290] sm:$0xff]
  %v103 = vld [vmem:[%s1 + $0x298] sm:$0xff]
  %v104 = vld [vmem:[%s1 + $0x2a0] sm:$0xff]
  %v105 = vld [vmem:[%s1 + $0x2a8] sm:$0xff]
  %v106 = vld [vmem:[%s1 + $0x2b0] sm:$0xff]
  %v107 = vld [vmem:[%s1 + $0x2b8] sm:$0xff]
  %v108 = vld [vmem:[%s1 + $0x2c0] sm:$0xff]
  %v109 = vld [vmem:[%s1 + $0x2c8] sm:$0xff]
  %v110 = vld [vmem:[%s1 + $0x2d0] sm:$0xff]
  %v111 = vld [vmem:[%s1 + $0x2d8] sm:$0xff]
  %v112 = vld [vmem:[%s1 + $0x2e0] sm:$0xff]
  %v113 = vld [vmem:[%s1 + $0x2e8] sm:$0xff]
  %v114 = vld [vmem:[%s1 + $0x2f0] sm:$0xff]
  %v115 = vld [vmem:[%s1 + $0x2f8] sm:$0xff]
  %v116 = vld [vmem:[%s1 + $0x300] sm:$0xff]
  %v117 = vld [vmem:[%s1 + $0x308] sm:$0xff]
  %v118 = vld [vmem:[%s1 + $0x310] sm:$0xff]
  %v119 = vld [vmem:[%s1 + $0x318] sm:$0xff]
  %v120 = vld [vmem:[%s1 + $0x320] sm:$0xff]
  %v121 = vld [vmem:[%s1 + $0x328] sm:$0xff]
  %v122 = vld [vmem:[%s1 + $0x330] sm:$0xff]
  %v123 = vld [vmem:[%s1 + $0x338] sm:$0xff]
  %v124 = vld [vmem:[%s1 + $0x340] sm:$0xff]
  %v125 = vld [vmem:[%s1 + $0x348] sm:$0xff]
  %v126 = vld [vmem:[%s1 + $0x350] sm:$0xff]
  %v127 = vld [vmem:[%s1 + $0x358] sm:$0xff]
  %v128 = vld [vmem:[%s1 + $0x360] sm:$0xff]
  %v129 = vld [vmem:[%s1 + $0x368] sm:$0xff]
  %v130 = vld [vmem:[%s1 + $0x370] sm:$0xff]
  %v131 = vld [vmem:[%s1 + $0x378] sm:$0xff]
  %v132 = vld [vmem:[%s1 + $0x380] sm:$0xff]
  %v133 = vld [vmem:[%s1 + $0x388] sm:$0xff]
  %v134 = vld [vmem:[%s1 + $0x390] sm:$0xff]
  %v135 = vld [vmem:[%s1 + $0x398] sm:$0xff]
  %v136 = vld [vmem:[%s1 + $0x3a0] sm:$0xff]
  %v137 = vld [vmem:[%s1 + $0x3a8] sm:$0xff]
  %v138 = vld [vmem:[%s1 + $0x3b0] sm:$0xff]
  %v139 = vld [vmem:[%s1 + $0x3b8] sm:$0xff]
  %v140 = vld [vmem:[%s1 + $0x3c0] sm:$0xff]
  %v141 = vld [vmem:[%s1 + $0x3c8] sm:$0xff]
  %v142 = vld [vmem:[%s1 + $0x3d0] sm:$0xff]
  %v143 = vld [vmem:[%s1 + $0x3d8] sm:$0xff]
  %v144 = vld [vmem:[%s1 + $0x3e0] sm:$0xff]
  %v145 = vld [vmem:[%s1 + $0x3e8] sm:$0xff]
  %v146 = vld [vmem:[%s1 + $0x3f0] sm:$0xff]
  %v147 = vld [vmem:[%s1 + $0x3f8] sm:$0xff]
  %v148 = vld [vmem:[%s1 + $0x400] sm:$0xff]
  %v149 = vld [vmem:[%s1 + $0x408] sm:$0xff]
  %v150 = vld [vmem:[%s1 + $0x410] sm:$0xff]
  %v151 = vld [vmem:[%s1 + $0x418] sm:$0xff]
  %v152 = vld [vmem:[%s1 + $0x420] sm:$0xff]
  %v153 = vld [vmem:[%s1 + $0x428] sm:$0xff]
  %v154 = vld [vmem:[%s1 + $0x430] sm:$0xff]
  %v155 = vld [vmem:[%s1 + $0x438] sm:$0xff]
  %v156 = vld [vmem:[%s1 + $0x440] sm:$0xff]
  %v157 = vld [vmem:[%s1 + $0x448] sm:$0xff]
  %v158 = vld [vmem:[%s1 + $0x450] sm:$0xff]
  %v159 = vld [vmem:[%s1 + $0x458] sm:$0xff]
  %v160 = vld [vmem:[%s1 + $0x460] sm:$0xff]
  %v161 = vld [vmem:[%s1 + $0x468] sm:$0xff]
  %v162 = vld [vmem:[%s1 + $0x470] sm:$0xff]
  %v163 = vld [vmem:[%s1 + $0x478] sm:$0xff]
  %v164 = vld [vmem:[%s2] sm:$0x7]
  %v166 = vlaneseq
  %v167 = vshrl.u32 %v166, 7
  %v168 = vsub.s32 0, %v167
  %v169 = vrot.slane %v164, %v168
  %v170 = vlaneseq
  %v171 = vshrl.u32 %v170, 7
  %v172 = vsub.s32 1, %v171
  %v173 = vrot.slane %v164, %v172
  %v174 = vlaneseq
  %v175 = vshrl.u32 %v174, 7
  %v176 = vsub.s32 2, %v175
  %v177 = vrot.slane %v164, %v176
  %vm181 = vcmask 523264
  %v183 = vsel %vm181, %v16, 0
  %v186 = vsel %vm181, %v19, 0
  %v189 = vsel %vm181, %v22, 0
  %v192 = vsel %vm181, %v25, 0
  %v195 = vsel %vm181, %v28, 0
  %v198 = vsel %vm181, %v31, 0
  %v201 = vsel %vm181, %v34, 0
  %v204 = vsel %vm181, %v37, 0
  %v207 = vsel %vm181, %v40, 0
  %v210 = vsel %vm181, %v43, 0
  %v213 = vsel %vm181, %v46, 0
  %v216 = vsel %vm181, %v49, 0
  %v219 = vsel %vm181, %v52, 0
  %v222 = vsel %vm181, %v55, 0
  %v225 = vsel %vm181, %v58, 0
  %v228 = vsel %vm181, %v61, 0
  %v231 = vsel %vm181, %v64, 0
  %v234 = vsel %vm181, %v67, 0
  %v237 = vsel %vm181, %v70, 0
  %v240 = vsel %vm181, %v73, 0
  %v243 = vsel %vm181, %v76, 0
  %v246 = vsel %vm181, %v79, 0
  %v249 = vsel %vm181, %v82, 0
  %v252 = vsel %vm181, %v85, 0
  %v255 = vsel %vm181, %v88, 0
  %v258 = vsel %vm181, %v91, 0
  %v261 = vsel %vm181, %v94, 0
  %v264 = vsel %vm181, %v97, 0
  %v267 = vsel %vm181, %v100, 0
  %v270 = vsel %vm181, %v103, 0
  %v273 = vsel %vm181, %v106, 0
  %v276 = vsel %vm181, %v109, 0
  %v279 = vsel %vm181, %v112, 0
  %v282 = vsel %vm181, %v115, 0
  %v285 = vsel %vm181, %v118, 0
  %v288 = vsel %vm181, %v121, 0
  %v291 = vsel %vm181, %v124, 0
  %v294 = vsel %vm181, %v127, 0
  %v297 = vsel %vm181, %v130, 0
  %v300 = vsel %vm181, %v133, 0
  %v303 = vsel %vm181, %v136, 0
  %v306 = vsel %vm181, %v139, 0
  %v309 = vsel %vm181, %v142, 0
  %v312 = vsel %vm181, %v145, 0
  %v315 = vsel %vm181, %v148, 0
  %v318 = vsel %vm181, %v151, 0
  %v321 = vsel %vm181, %v154, 0
  %v324 = vsel %vm181, %v157, 0
  %v327 = vsel %vm181, %v160, 0
  %v330 = vsel %vm181, %v163, 0
  %332 = vmatprep.subr.mxu0 %v21
  %333 = vmatpush1.xpose.msra.mxu0 %v20
  %334 = vmatprep.subr.mxu0 %v24
  %335 = vmatpush1.xpose.msra.mxu0 %v23
  %336 = vmatprep.subr.mxu0 %v27
  %337 = vmatpush1.xpose.msra.mxu0 %v26
  %338 = vmatprep.subr.mxu0 %v30
  %339 = vmatpush1.xpose.msra.mxu0 %v29
  %340 = vmatprep.subr.mxu0 %v33
  %341 = vmatpush1.xpose.msra.mxu0 %v32
  %342 = vmatprep.subr.mxu0 %v36
  %343 = vmatpush1.xpose.msra.mxu0 %v35
  %344 = vmatprep.subr.mxu0 %v39
  %345 = vmatpush1.xpose.msra.mxu0 %v38
  %346 = vmatprep.subr.mxu0 %v42
  %347 = vmatpush1.xpose.msra.mxu0 %v41
  %348 = vmatprep.subr.mxu0 %v45
  %349 = vmatpush1.xpose.msra.mxu0 %v44
  %350 = vmatprep.subr.mxu0 %v48
  %351 = vmatpush1.xpose.msra.mxu0 %v47
  %352 = vmatprep.subr.mxu0 %v51
  %353 = vmatpush1.xpose.msra.mxu0 %v50
  %354 = vmatprep.subr.mxu0 %v54
  %355 = vmatpush1.xpose.msra.mxu0 %v53
  %356 = vmatprep.subr.mxu0 %v57
  %357 = vmatpush1.xpose.msra.mxu0 %v56
  %358 = vmatprep.subr.mxu0 %v60
  %359 = vmatpush1.xpose.msra.mxu0 %v59
  %360 = vmatprep.subr.mxu0 %v63
  %361 = vmatpush1.xpose.msra.mxu0 %v62
  %362 = vmatprep.subr.mxu0 %v66
  %363 = vmatpush1.xpose.msra.mxu0 %v65
  %364 = vmatprep.subr.mxu0 %v69
  %365 = vmatpush1.xpose.msra.mxu0 %v68
  %366 = vmatprep.subr.mxu0 %v72
  %367 = vmatpush1.xpose.msra.mxu0 %v71
  %368 = vmatprep.subr.mxu0 %v75
  %369 = vmatpush1.xpose.msra.mxu0 %v74
  %370 = vmatprep.subr.mxu0 %v78
  %371 = vmatpush1.xpose.msra.mxu0 %v77
  %372 = vmatprep.subr.mxu0 %v81
  %373 = vmatpush1.xpose.msra.mxu0 %v80
  %374 = vmatprep.subr.mxu0 %v84
  %375 = vmatpush1.xpose.msra.mxu0 %v83
  %376 = vmatprep.subr.mxu0 %v87
  %377 = vmatpush1.xpose.msra.mxu0 %v86
  %378 = vmatprep.subr.mxu0 %v90
  %379 = vmatpush1.xpose.msra.mxu0 %v89
  %380 = vmatprep.subr.mxu0 %v93
  %381 = vmatpush1.xpose.msra.mxu0 %v92
  %382 = vmatprep.subr.mxu0 %v96
  %383 = vmatpush1.xpose.msra.mxu0 %v95
  %384 = vmatprep.subr.mxu0 %v99
  %385 = vmatpush1.xpose.msra.mxu0 %v98
  %386 = vmatprep.subr.mxu0 %v102
  %387 = vmatpush1.xpose.msra.mxu0 %v101
  %388 = vmatprep.subr.mxu0 %v105
  %389 = vmatpush1.xpose.msra.mxu0 %v104
  %390 = vmatprep.subr.mxu0 %v108
  %391 = vmatpush1.xpose.msra.mxu0 %v107
  %392 = vmatprep.subr.mxu0 %v111
  %393 = vmatpush1.xpose.msra.mxu0 %v110
  %394 = vmatprep.subr.mxu0 %v114
  %395 = vmatpush1.xpose.msra.mxu0 %v113
  %396 = vmatprep.mubr.f32.mxu0 %v15
  %397 = vmatmul.mubr.f32.gmra.mrb[0].mxu0 %v14
  %v398 = vpop.f32.mrb[0].mxu0
  %v399 = vadd.f32 %v169, %v398
  %v400 = vpop.f32.mrb[0].mxu0
  %v401 = vadd.f32 %v173, %v400
  %402 = vmatprep.mubr.f32.mxu0 %v18
  %403 = vmatmul.mubr.f32.gmra.mrb[0].mxu0 %v17
  %v404 = vpop.f32.mrb[0].mxu0
  %v405 = vadd.f32 %v169, %v404
  %v406 = vpop.f32.mrb[0].mxu0
  %v407 = vadd.f32 %v173, %v406
  %408 = vdwg.mxu0
  %409 = vmatprep.subr.mxu0 0.0
  %410 = vmatpush1.xpose.msra.mxu0 %v189
  %411 = vmatprep.subr.mxu0 0.0
  %412 = vmatpush1.xpose.msra.mxu0 %v192
  %413 = vmatprep.subr.mxu0 0.0
  %414 = vmatpush1.xpose.msra.mxu0 %v195
  %415 = vmatprep.subr.mxu0 0.0
  %416 = vmatpush1.xpose.msra.mxu0 %v198
  %417 = vmatprep.subr.mxu0 0.0
  %418 = vmatpush1.xpose.msra.mxu0 %v201
  %419 = vmatprep.subr.mxu0 0.0
  %420 = vmatpush1.xpose.msra.mxu0 %v204
  %421 = vmatprep.subr.mxu0 0.0
  %422 = vmatpush1.xpose.msra.mxu0 %v207
  %423 = vmatprep.subr.mxu0 0.0
  %424 = vmatpush1.xpose.msra.mxu0 %v210
  %425 = vmatprep.subr.mxu0 0.0
  %426 = vmatpush1.xpose.msra.mxu0 %v213
  %427 = vmatprep.subr.mxu0 0.0
  %428 = vmatpush1.xpose.msra.mxu0 %v216
  %429 = vmatprep.subr.mxu0 0.0
  %430 = vmatpush1.xpose.msra.mxu0 %v219
  %431 = vmatprep.subr.mxu0 0.0
  %432 = vmatpush1.xpose.msra.mxu0 %v222
  %433 = vmatprep.subr.mxu0 0.0
  %434 = vmatpush1.xpose.msra.mxu0 %v225
  %435 = vmatprep.subr.mxu0 0.0
  %436 = vmatpush1.xpose.msra.mxu0 %v228
  %437 = vmatprep.subr.mxu0 0.0
  %438 = vmatpush1.xpose.msra.mxu0 %v231
  %439 = vmatprep.subr.mxu0 0.0
  %440 = vmatpush1.xpose.msra.mxu0 %v234
  %441 = vmatprep.subr.mxu0 0.0
  %442 = vmatpush1.xpose.msra.mxu0 %v237
  %443 = vmatprep.subr.mxu0 0.0
  %444 = vmatpush1.xpose.msra.mxu0 %v240
  %445 = vmatprep.subr.mxu0 0.0
  %446 = vmatpush1.xpose.msra.mxu0 %v243
  %447 = vmatprep.subr.mxu0 0.0
  %448 = vmatpush1.xpose.msra.mxu0 %v246
  %449 = vmatprep.subr.mxu0 0.0
  %450 = vmatpush1.xpose.msra.mxu0 %v249
  %451 = vmatprep.subr.mxu0 0.0
  %452 = vmatpush1.xpose.msra.mxu0 %v252
  %453 = vmatprep.subr.mxu0 0.0
  %454 = vmatpush1.xpose.msra.mxu0 %v255
  %455 = vmatprep.subr.mxu0 0.0
  %456 = vmatpush1.xpose.msra.mxu0 %v258
  %457 = vmatprep.subr.mxu0 0.0
  %458 = vmatpush1.xpose.msra.mxu0 %v261
  %459 = vmatprep.subr.mxu0 0.0
  %460 = vmatpush1.xpose.msra.mxu0 %v264
  %461 = vmatprep.subr.mxu0 0.0
  %462 = vmatpush1.xpose.msra.mxu0 %v267
  %463 = vmatprep.subr.mxu0 0.0
  %464 = vmatpush1.xpose.msra.mxu0 %v270
  %465 = vmatprep.subr.mxu0 0.0
  %466 = vmatpush1.xpose.msra.mxu0 %v273
  %467 = vmatprep.subr.mxu0 0.0
  %468 = vmatpush1.xpose.msra.mxu0 %v276
  %469 = vmatprep.subr.mxu0 0.0
  %470 = vmatpush1.xpose.msra.mxu0 %v279
  %471 = vmatprep.subr.mxu0 0.0
  %472 = vmatpush1.xpose.msra.mxu0 %v282
  %473 = vmatprep.mubr.f32.mxu0 0.0
  %474 = vmatmul.mubr.f32.gmra.mrb[0].mxu0 %v183
  %v475 = vpop.f32.mrb[0].mxu0
  %v476 = vadd.f32 %v399, %v475
  %v477 = vpop.f32.mrb[0].mxu0
  %v478 = vadd.f32 %v401, %v477
  %479 = vmatprep.mubr.f32.mxu0 0.0
  %480 = vmatmul.mubr.f32.gmra.mrb[0].mxu0 %v186
  %v481 = vpop.f32.mrb[0].mxu0
  %v482 = vadd.f32 %v405, %v481
  %v483 = vpop.f32.mrb[0].mxu0
  %v484 = vadd.f32 %v407, %v483
  %485 = vdwg.mxu0
  %486 = vmatprep.subr.mxu0 %v117
  %487 = vmatpush1.xpose.msra.mxu0 %v116
  %488 = vmatprep.subr.mxu0 %v120
  %489 = vmatpush1.xpose.msra.mxu0 %v119
  %490 = vmatprep.subr.mxu0 %v123
  %491 = vmatpush1.xpose.msra.mxu0 %v122
  %492 = vmatprep.subr.mxu0 %v126
  %493 = vmatpush1.xpose.msra.mxu0 %v125
  %494 = vmatprep.subr.mxu0 %v129
  %495 = vmatpush1.xpose.msra.mxu0 %v128
  %496 = vmatprep.subr.mxu0 %v132
  %497 = vmatpush1.xpose.msra.mxu0 %v131
  %498 = vmatprep.subr.mxu0 %v135
  %499 = vmatpush1.xpose.msra.mxu0 %v134
  %500 = vmatprep.subr.mxu0 %v138
  %501 = vmatpush1.xpose.msra.mxu0 %v137
  %502 = vmatprep.subr.mxu0 %v141
  %503 = vmatpush1.xpose.msra.mxu0 %v140
  %504 = vmatprep.subr.mxu0 %v144
  %505 = vmatpush1.xpose.msra.mxu0 %v143
  %506 = vmatprep.subr.mxu0 %v147
  %507 = vmatpush1.xpose.msra.mxu0 %v146
  %508 = vmatprep.subr.mxu0 %v150
  %509 = vmatpush1.xpose.msra.mxu0 %v149
  %510 = vmatprep.subr.mxu0 %v153
  %511 = vmatpush1.xpose.msra.mxu0 %v152
  %512 = vmatprep.subr.mxu0 %v156
  %513 = vmatpush1.xpose.msra.mxu0 %v155
  %514 = vmatprep.subr.mxu0 %v159
  %515 = vmatpush1.xpose.msra.mxu0 %v158
  %516 = vmatprep.subr.mxu0 %v162
  %517 = vmatpush1.xpose.msra.mxu0 %v161
  %518 = vmatprep.subr.mxu0 0.0
  %519 = vmatpush1.xpose.msra.mxu0 0.0
  %520 = vmatprep.subr.mxu0 0.0
  %521 = vmatpush1.xpose.msra.mxu0 0.0
  %522 = vmatprep.subr.mxu0 0.0
  %523 = vmatpush1.xpose.msra.mxu0 0.0
  %524 = vmatprep.subr.mxu0 0.0
  %525 = vmatpush1.xpose.msra.mxu0 0.0
  %526 = vmatprep.subr.mxu0 0.0
  %527 = vmatpush1.xpose.msra.mxu0 0.0
  %528 = vmatprep.subr.mxu0 0.0
  %529 = vmatpush1.xpose.msra.mxu0 0.0
  %530 = vmatprep.subr.mxu0 0.0
  %531 = vmatpush1.xpose.msra.mxu0 0.0
  %532 = vmatprep.subr.mxu0 0.0
  %533 = vmatpush1.xpose.msra.mxu0 0.0
  %534 = vmatprep.subr.mxu0 0.0
  %535 = vmatpush1.xpose.msra.mxu0 0.0
  %536 = vmatprep.subr.mxu0 0.0
  %537 = vmatpush1.xpose.msra.mxu0 0.0
  %538 = vmatprep.subr.mxu0 0.0
  %539 = vmatpush1.xpose.msra.mxu0 0.0
  %540 = vmatprep.subr.mxu0 0.0
  %541 = vmatpush1.xpose.msra.mxu0 0.0
  %542 = vmatprep.subr.mxu0 0.0
  %543 = vmatpush1.xpose.msra.mxu0 0.0
  %544 = vmatprep.subr.mxu0 0.0
  %545 = vmatpush1.xpose.msra.mxu0 0.0
  %546 = vmatprep.subr.mxu0 0.0
  %547 = vmatpush1.xpose.msra.mxu0 0.0
  %548 = vmatprep.subr.mxu0 0.0
  %549 = vmatpush1.xpose.msra.mxu0 0.0
  %550 = vmatprep.mubr.f32.mxu0 %v15
  %551 = vmatmul.mubr.f32.gmra.mrb[0].mxu0 %v14
  %v552 = vpop.f32.mrb[0].mxu0
  %v553 = vadd.f32 %v177, %v552
  %v554 = vpop.f32.mrb[0].mxu0
  %555 = vmatprep.mubr.f32.mxu0 %v18
  %556 = vmatmul.mubr.f32.gmra.mrb[0].mxu0 %v17
  %v557 = vpop.f32.mrb[0].mxu0
  %v558 = vadd.f32 %v177, %v557
  %v559 = vpop.f32.mrb[0].mxu0
  %560 = vdwg.mxu0
  %561 = vmatprep.subr.mxu0 0.0
  %562 = vmatpush1.xpose.msra.mxu0 %v285
  %563 = vmatprep.subr.mxu0 0.0
  %564 = vmatpush1.xpose.msra.mxu0 %v288
  %565 = vmatprep.subr.mxu0 0.0
  %566 = vmatpush1.xpose.msra.mxu0 %v291
  %567 = vmatprep.subr.mxu0 0.0
  %568 = vmatpush1.xpose.msra.mxu0 %v294
  %569 = vmatprep.subr.mxu0 0.0
  %570 = vmatpush1.xpose.msra.mxu0 %v297
  %571 = vmatprep.subr.mxu0 0.0
  %572 = vmatpush1.xpose.msra.mxu0 %v300
  %573 = vmatprep.subr.mxu0 0.0
  %574 = vmatpush1.xpose.msra.mxu0 %v303
  %575 = vmatprep.subr.mxu0 0.0
  %576 = vmatpush1.xpose.msra.mxu0 %v306
  %577 = vmatprep.subr.mxu0 0.0
  %578 = vmatpush1.xpose.msra.mxu0 %v309
  %579 = vmatprep.subr.mxu0 0.0
  %580 = vmatpush1.xpose.msra.mxu0 %v312
  %581 = vmatprep.subr.mxu0 0.0
  %582 = vmatpush1.xpose.msra.mxu0 %v315
  %583 = vmatprep.subr.mxu0 0.0
  %584 = vmatpush1.xpose.msra.mxu0 %v318
  %585 = vmatprep.subr.mxu0 0.0
  %586 = vmatpush1.xpose.msra.mxu0 %v321
  %587 = vmatprep.subr.mxu0 0.0
  %588 = vmatpush1.xpose.msra.mxu0 %v324
  %589 = vmatprep.subr.mxu0 0.0
  %590 = vmatpush1.xpose.msra.mxu0 %v327
  %591 = vmatprep.subr.mxu0 0.0
  %592 = vmatpush1.xpose.msra.mxu0 %v330
  %593 = vmatprep.subr.mxu0 0.0
  %594 = vmatpush1.xpose.msra.mxu0 0.0
  %595 = vmatprep.subr.mxu0 0.0
  %596 = vmatpush1.xpose.msra.mxu0 0.0
  %597 = vmatprep.subr.mxu0 0.0
  %598 = vmatpush1.xpose.msra.mxu0 0.0
  %599 = vmatprep.subr.mxu0 0.0
  %600 = vmatpush1.xpose.msra.mxu0 0.0
  %601 = vmatprep.subr.mxu0 0.0
  %602 = vmatpush1.xpose.msra.mxu0 0.0
  %603 = vmatprep.subr.mxu0 0.0
  %604 = vmatpush1.xpose.msra.mxu0 0.0
  %605 = vmatprep.subr.mxu0 0.0
  %606 = vmatpush1.xpose.msra.mxu0 0.0
  %607 = vmatprep.subr.mxu0 0.0
  %608 = vmatpush1.xpose.msra.mxu0 0.0
  %609 = vmatprep.subr.mxu0 0.0
  %610 = vmatpush1.xpose.msra.mxu0 0.0
  %611 = vmatprep.subr.mxu0 0.0
  %612 = vmatpush1.xpose.msra.mxu0 0.0
  %613 = vmatprep.subr.mxu0 0.0
  %614 = vmatpush1.xpose.msra.mxu0 0.0
  %615 = vmatprep.subr.mxu0 0.0
  %616 = vmatpush1.xpose.msra.mxu0 0.0
  %617 = vmatprep.subr.mxu0 0.0
  %618 = vmatpush1.xpose.msra.mxu0 0.0
  %619 = vmatprep.subr.mxu0 0.0
  %620 = vmatpush1.xpose.msra.mxu0 0.0
  %621 = vmatprep.subr.mxu0 0.0
  %622 = vmatpush1.xpose.msra.mxu0 0.0
  %623 = vmatprep.subr.mxu0 0.0
  %624 = vmatpush1.xpose.msra.mxu0 0.0
  %625 = vmatprep.mubr.f32.mxu0 0.0
  %626 = vmatmul.mubr.f32.gmra.mrb[0].mxu0 %v183
  %v627 = vpop.f32.mrb[0].mxu0
  %v628 = vadd.f32 %v553, %v627
  %v629 = vpop.f32.mrb[0].mxu0
  %630 = vmatprep.mubr.f32.mxu0 0.0
  %631 = vmatmul.mubr.f32.gmra.mrb[0].mxu0 %v186
  %v632 = vpop.f32.mrb[0].mxu0
  %v633 = vadd.f32 %v558, %v632
  %v634 = vpop.f32.mrb[0].mxu0
  %635 = vdwg.mxu0
  %636 = vmatprep.subr.mxu0 0.0
  %637 = vmatpush1.xpose.msra.mxu0 %v478
  %638 = vmatprep.subr.mxu0 0.0
  %639 = vmatpush1.xpose.msra.mxu0 0.0
  %640 = vmatprep.subr.mxu0 0.0
  %641 = vmatpush1.xpose.msra.mxu0 0.0
  %642 = vmatprep.subr.mxu0 0.0
  %643 = vmatpush1.xpose.msra.mxu0 0.0
  %644 = vmatprep.subr.mxu0 0.0
  %645 = vmatpush1.xpose.msra.mxu0 0.0
  %646 = vmatprep.subr.mxu0 0.0
  %647 = vmatpush1.xpose.msra.mxu0 0.0
  %648 = vmatprep.subr.mxu0 0.0
  %649 = vmatpush1.xpose.msra.mxu0 0.0
  %650 = vmatprep.subr.mxu0 0.0
  %651 = vmatpush1.xpose.msra.mxu0 0.0
  %652 = vmatprep.subr.mxu0 0.0
  %653 = vmatpush1.xpose.msra.mxu0 0.0
  %654 = vmatprep.subr.mxu0 0.0
  %655 = vmatpush1.xpose.msra.mxu0 0.0
  %656 = vmatprep.subr.mxu0 0.0
  %657 = vmatpush1.xpose.msra.mxu0 0.0
  %658 = vmatprep.subr.mxu0 0.0
  %659 = vmatpush1.xpose.msra.mxu0 0.0
  %660 = vmatprep.subr.mxu0 0.0
  %661 = vmatpush1.xpose.msra.mxu0 0.0
  %662 = vmatprep.subr.mxu0 0.0
  %663 = vmatpush1.xpose.msra.mxu0 0.0
  %664 = vmatprep.subr.mxu0 0.0
  %665 = vmatpush1.xpose.msra.mxu0 0.0
  %666 = vmatprep.subr.mxu0 0.0
  %667 = vmatpush1.xpose.msra.mxu0 0.0
  %668 = vmatprep.subr.mxu0 0.0
  %669 = vmatpush1.xpose.msra.mxu0 0.0
  %670 = vmatprep.subr.mxu0 0.0
  %671 = vmatpush1.xpose.msra.mxu0 0.0
  %672 = vmatprep.subr.mxu0 0.0
  %673 = vmatpush1.xpose.msra.mxu0 0.0
  %674 = vmatprep.subr.mxu0 0.0
  %675 = vmatpush1.xpose.msra.mxu0 0.0
  %676 = vmatprep.subr.mxu0 0.0
  %677 = vmatpush1.xpose.msra.mxu0 0.0
  %678 = vmatprep.subr.mxu0 0.0
  %679 = vmatpush1.xpose.msra.mxu0 0.0
  %680 = vmatprep.subr.mxu0 0.0
  %681 = vmatpush1.xpose.msra.mxu0 0.0
  %682 = vmatprep.subr.mxu0 0.0
  %683 = vmatpush1.xpose.msra.mxu0 0.0
  %684 = vmatprep.subr.mxu0 0.0
  %685 = vmatpush1.xpose.msra.mxu0 0.0
  %686 = vmatprep.subr.mxu0 0.0
  %687 = vmatpush1.xpose.msra.mxu0 0.0
  %688 = vmatprep.subr.mxu0 0.0
  %689 = vmatpush1.xpose.msra.mxu0 0.0
  %690 = vmatprep.subr.mxu0 0.0
  %691 = vmatpush1.xpose.msra.mxu0 0.0
  %692 = vmatprep.subr.mxu0 0.0
  %693 = vmatpush1.xpose.msra.mxu0 0.0
  %694 = vmatprep.subr.mxu0 0.0
  %695 = vmatpush1.xpose.msra.mxu0 0.0
  %696 = vmatprep.subr.mxu0 0.0
  %697 = vmatpush1.xpose.msra.mxu0 0.0
  %698 = vmatprep.subr.mxu0 0.0
  %699 = vmatpush1.xpose.msra.mxu0 0.0
  %700 = vmatprep.mubr.f32.mxu0 0.0
  %701 = vmatmul.mubr.f32.gmra.mrb[0].mxu0 %v476
  %v702 = vpop.f32.mrb[0].mxu0
  %v703 = vadd.f32 0.0, %v702
  %v704 = vpop.f32.mrb[0].mxu0
  %705 = vdwg.mxu0
  %v706 = vmul.f32 %v703, 0.088388346
  %vm707 = vcmask 64512
  %v708 = vsel %vm707, %v706, -inf
  %709 = vmax.xlane.f32.xlu0 %v708
  %v710 = vpop.xlane.xlu0 %709
  %v711 = vsub.f32 %v706, %v710
  %v712 = vmul.f32 %v711, 1.442695
  %v713 = vpow.pop %v712
  %v714 = vsel %vm707, %v713, 0.0
  %715 = vadd.xlane.f32.xlu0 %v714
  %v716 = vpop.xlane.xlu0 %715
  %v717 = vrcp.pop %v716
  %v718 = vmul.f32 %v713, %v717
  %v720 = vsel %vm707, %v718, 0
  %722 = vmatprep.subr.mxu0 0.0
  %723 = vmatpush1.msra.mxu0 %v628
  %724 = vmatprep.subr.mxu0 0.0
  %725 = vmatpush1.msra.mxu0 0.0
  %726 = vmatprep.subr.mxu0 0.0
  %727 = vmatpush1.msra.mxu0 0.0
  %728 = vmatprep.subr.mxu0 0.0
  %729 = vmatpush1.msra.mxu0 0.0
  %730 = vmatprep.subr.mxu0 0.0
  %731 = vmatpush1.msra.mxu0 0.0
  %732 = vmatprep.subr.mxu0 0.0
  %733 = vmatpush1.msra.mxu0 0.0
  %734 = vmatprep.subr.mxu0 0.0
  %735 = vmatpush1.msra.mxu0 0.0
  %736 = vmatprep.subr.mxu0 0.0
  %737 = vmatpush1.msra.mxu0 0.0
  %738 = vmatprep.subr.mxu0 0.0
  %739 = vmatpush1.msra.mxu0 0.0
  %740 = vmatprep.subr.mxu0 0.0
  %741 = vmatpush1.msra.mxu0 0.0
  %742 = vmatprep.subr.mxu0 0.0
  %743 = vmatpush1.msra.mxu0 0.0
  %744 = vmatprep.subr.mxu0 0.0
  %745 = vmatpush1.msra.mxu0 0.0
  %746 = vmatprep.subr.mxu0 0.0
  %747 = vmatpush1.msra.mxu0 0.0
  %748 = vmatprep.subr.mxu0 0.0
  %749 = vmatpush1.msra.mxu0 0.0
  %750 = vmatprep.subr.mxu0 0.0
  %751 = vmatpush1.msra.mxu0 0.0
  %752 = vmatprep.subr.mxu0 0.0
  %753 = vmatpush1.msra.mxu0 0.0
  %754 = vmatprep.subr.mxu0 0.0
  %755 = vmatpush1.msra.mxu0 0.0
  %756 = vmatprep.subr.mxu0 0.0
  %757 = vmatpush1.msra.mxu0 0.0
  %758 = vmatprep.subr.mxu0 0.0
  %759 = vmatpush1.msra.mxu0 0.0
  %760 = vmatprep.subr.mxu0 0.0
  %761 = vmatpush1.msra.mxu0 0.0
  %762 = vmatprep.subr.mxu0 0.0
  %763 = vmatpush1.msra.mxu0 0.0
  %764 = vmatprep.subr.mxu0 0.0
  %765 = vmatpush1.msra.mxu0 0.0
  %766 = vmatprep.subr.mxu0 0.0
  %767 = vmatpush1.msra.mxu0 0.0
  %768 = vmatprep.subr.mxu0 0.0
  %769 = vmatpush1.msra.mxu0 0.0
  %770 = vmatprep.subr.mxu0 0.0
  %771 = vmatpush1.msra.mxu0 0.0
  %772 = vmatprep.subr.mxu0 0.0
  %773 = vmatpush1.msra.mxu0 0.0
  %774 = vmatprep.subr.mxu0 0.0
  %775 = vmatpush1.msra.mxu0 0.0
  %776 = vmatprep.subr.mxu0 0.0
  %777 = vmatpush1.msra.mxu0 0.0
  %778 = vmatprep.subr.mxu0 0.0
  %779 = vmatpush1.msra.mxu0 0.0
  %780 = vmatprep.subr.mxu0 0.0
  %781 = vmatpush1.msra.mxu0 0.0
  %782 = vmatprep.subr.mxu0 0.0
  %783 = vmatpush1.msra.mxu0 0.0
  %784 = vmatprep.subr.mxu0 0.0
  %785 = vmatpush1.msra.mxu0 0.0
  %786 = vmatprep.mubr.f32.mxu0 0.0
  %787 = vmatmul.mubr.f32.gmra.mrb[0].mxu0 %v720
  %v788 = vpop.f32.mrb[0].mxu0
  %v789 = vadd.f32 0.0, %v788
  %v790 = vpop.f32.mrb[0].mxu0
  %791 = vdwg.mxu0
  %792 = vst [vmem:[%s3] sm:$0xff] %v789
  %793 = vmatprep.subr.mxu0 0.0
  %794 = vmatpush1.xpose.msra.mxu0 %v484
  %795 = vmatprep.subr.mxu0 0.0
  %796 = vmatpush1.xpose.msra.mxu0 0.0
  %797 = vmatprep.subr.mxu0 0.0
  %798 = vmatpush1.xpose.msra.mxu0 0.0
  %799 = vmatprep.subr.mxu0 0.0
  %800 = vmatpush1.xpose.msra.mxu0 0.0
  %801 = vmatprep.subr.mxu0 0.0
  %802 = vmatpush1.xpose.msra.mxu0 0.0
  %803 = vmatprep.subr.mxu0 0.0
  %804 = vmatpush1.xpose.msra.mxu0 0.0
  %805 = vmatprep.subr.mxu0 0.0
  %806 = vmatpush1.xpose.msra.mxu0 0.0
  %807 = vmatprep.subr.mxu0 0.0
  %808 = vmatpush1.xpose.msra.mxu0 0.0
  %809 = vmatprep.subr.mxu0 0.0
  %810 = vmatpush1.xpose.msra.mxu0 0.0
  %811 = vmatprep.subr.mxu0 0.0
  %812 = vmatpush1.xpose.msra.mxu0 0.0
  %813 = vmatprep.subr.mxu0 0.0
  %814 = vmatpush1.xpose.msra.mxu0 0.0
  %815 = vmatprep.subr.mxu0 0.0
  %816 = vmatpush1.xpose.msra.mxu0 0.0
  %817 = vmatprep.subr.mxu0 0.0
  %818 = vmatpush1.xpose.msra.mxu0 0.0
  %819 = vmatprep.subr.mxu0 0.0
  %820 = vmatpush1.xpose.msra.mxu0 0.0
  %821 = vmatprep.subr.mxu0 0.0
  %822 = vmatpush1.xpose.msra.mxu0 0.0
  %823 = vmatprep.subr.mxu0 0.0
  %824 = vmatpush1.xpose.msra.mxu0 0.0
  %825 = vmatprep.subr.mxu0 0.0
  %826 = vmatpush1.xpose.msra.mxu0 0.0
  %827 = vmatprep.subr.mxu0 0.0
  %828 = vmatpush1.xpose.msra.mxu0 0.0
  %829 = vmatprep.subr.mxu0 0.0
  %830 = vmatpush1.xpose.msra.mxu0 0.0
  %831 = vmatprep.subr.mxu0 0.0
  %832 = vmatpush1.xpose.msra.mxu0 0.0
  %833 = vmatprep.subr.mxu0 0.0
  %834 = vmatpush1.xpose.msra.mxu0 0.0
  %835 = vmatprep.subr.mxu0 0.0
  %836 = vmatpush1.xpose.msra.mxu0 0.0
  %837 = vmatprep.subr.mxu0 0.0
  %838 = vmatpush1.xpose.msra.mxu0 0.0
  %839 = vmatprep.subr.mxu0 0.0
  %840 = vmatpush1.xpose.msra.mxu0 0.0
  %841 = vmatprep.subr.mxu0 0.0
  %842 = vmatpush1.xpose.msra.mxu0 0.0
  %843 = vmatprep.subr.mxu0 0.0
  %844 = vmatpush1.xpose.msra.mxu0 0.0
  %845 = vmatprep.subr.mxu0 0.0
  %846 = vmatpush1.xpose.msra.mxu0 0.0
  %847 = vmatprep.subr.mxu0 0.0
  %848 = vmatpush1.xpose.msra.mxu0 0.0
  %849 = vmatprep.subr.mxu0 0.0
  %850 = vmatpush1.xpose.msra.mxu0 0.0
  %851 = vmatprep.subr.mxu0 0.0
  %852 = vmatpush1.xpose.msra.mxu0 0.0
  %853 = vmatprep.subr.mxu0 0.0
  %854 = vmatpush1.xpose.msra.mxu0 0.0
  %855 = vmatprep.subr.mxu0 0.0
  %856 = vmatpush1.xpose.msra.mxu0 0.0
  %857 = vmatprep.mubr.f32.mxu0 0.0
  %858 = vmatmul.mubr.f32.gmra.mrb[0].mxu0 %v482
  %v859 = vpop.f32.mrb[0].mxu0
  %v860 = vadd.f32 0.0, %v859
  %v861 = vpop.f32.mrb[0].mxu0
  %862 = vdwg.mxu0
  %v863 = vmul.f32 %v860, 0.088388346
  %v864 = vsel %vm707, %v863, -inf
  %865 = vmax.xlane.f32.xlu0 %v864
  %v866 = vpop.xlane.xlu0 %865
  %v867 = vsub.f32 %v863, %v866
  %v868 = vmul.f32 %v867, 1.442695
  %v869 = vpow.pop %v868
  %v870 = vsel %vm707, %v869, 0.0
  %871 = vadd.xlane.f32.xlu0 %v870
  %v872 = vpop.xlane.xlu0 %871
  %v873 = vrcp.pop %v872
  %v874 = vmul.f32 %v869, %v873
  %v876 = vsel %vm707, %v874, 0
  %878 = vmatprep.subr.mxu0 0.0
  %879 = vmatpush1.msra.mxu0 %v633
  %880 = vmatprep.subr.mxu0 0.0
  %881 = vmatpush1.msra.mxu0 0.0
  %882 = vmatprep.subr.mxu0 0.0
  %883 = vmatpush1.msra.mxu0 0.0
  %884 = vmatprep.subr.mxu0 0.0
  %885 = vmatpush1.msra.mxu0 0.0
  %886 = vmatprep.subr.mxu0 0.0
  %887 = vmatpush1.msra.mxu0 0.0
  %888 = vmatprep.subr.mxu0 0.0
  %889 = vmatpush1.msra.mxu0 0.0
  %890 = vmatprep.subr.mxu0 0.0
  %891 = vmatpush1.msra.mxu0 0.0
  %892 = vmatprep.subr.mxu0 0.0
  %893 = vmatpush1.msra.mxu0 0.0
  %894 = vmatprep.subr.mxu0 0.0
  %895 = vmatpush1.msra.mxu0 0.0
  %896 = vmatprep.subr.mxu0 0.0
  %897 = vmatpush1.msra.mxu0 0.0
  %898 = vmatprep.subr.mxu0 0.0
  %899 = vmatpush1.msra.mxu0 0.0
  %900 = vmatprep.subr.mxu0 0.0
  %901 = vmatpush1.msra.mxu0 0.0
  %902 = vmatprep.subr.mxu0 0.0
  %903 = vmatpush1.msra.mxu0 0.0
  %904 = vmatprep.subr.mxu0 0.0
  %905 = vmatpush1.msra.mxu0 0.0
  %906 = vmatprep.subr.mxu0 0.0
  %907 = vmatpush1.msra.mxu0 0.0
  %908 = vmatprep.subr.mxu0 0.0
  %909 = vmatpush1.msra.mxu0 0.0
  %910 = vmatprep.subr.mxu0 0.0
  %911 = vmatpush1.msra.mxu0 0.0
  %912 = vmatprep.subr.mxu0 0.0
  %913 = vmatpush1.msra.mxu0 0.0
  %914 = vmatprep.subr.mxu0 0.0
  %915 = vmatpush1.msra.mxu0 0.0
  %916 = vmatprep.subr.mxu0 0.0
  %917 = vmatpush1.msra.mxu0 0.0
  %918 = vmatprep.subr.mxu0 0.0
  %919 = vmatpush1.msra.mxu0 0.0
  %920 = vmatprep.subr.mxu0 0.0
  %921 = vmatpush1.msra.mxu0 0.0
  %922 = vmatprep.subr.mxu0 0.0
  %923 = vmatpush1.msra.mxu0 0.0
  %924 = vmatprep.subr.mxu0 0.0
  %925 = vmatpush1.msra.mxu0 0.0
  %926 = vmatprep.subr.mxu0 0.0
  %927 = vmatpush1.msra.mxu0 0.0
  %928 = vmatprep.subr.mxu0 0.0
  %929 = vmatpush1.msra.mxu0 0.0
  %930 = vmatprep.subr.mxu0 0.0
  %931 = vmatpush1.msra.mxu0 0.0
  %932 = vmatprep.subr.mxu0 0.0
  %933 = vmatpush1.msra.mxu0 0.0
  %934 = vmatprep.subr.mxu0 0.0
  %935 = vmatpush1.msra.mxu0 0.0
  %936 = vmatprep.subr.mxu0 0.0
  %937 = vmatpush1.msra.mxu0 0.0
  %938 = vmatprep.subr.mxu0 0.0
  %939 = vmatpush1.msra.mxu0 0.0
  %940 = vmatprep.subr.mxu0 0.0
  %941 = vmatpush1.msra.mxu0 0.0
  %942 = vmatprep.mubr.f32.mxu0 0.0
  %943 = vmatmul.mubr.f32.gmra.mrb[0].mxu0 %v876
  %v944 = vpop.f32.mrb[0].mxu0
  %v945 = vadd.f32 0.0, %v944
  %v946 = vpop.f32.mrb[0].mxu0
  %947 = vdwg.mxu0
  %948 = vst [vmem:[%s3 + $0x8] sm:$0xff] %v945
  // Predicated region
  $region14: #{stsgcn_forward.5} parent=0 // pred_check
    _
  $region15: #{stsgcn_forward.5} parent=0 // pred_check_branch
    %950 = sbr.rel (0) target = $region17
  $region16: #{stsgcn_forward.5} parent=0 // pred_region
    _
  $region17: #{stsgcn_forward.5} parent=0 // pred_fallthru
    _
  // Predicated region
  $region18: #{stsgcn_forward.5} parent=0 // pred_check
    _
  $region19: #{stsgcn_forward.5} parent=0 // pred_check_branch
    %952 = sbr.rel (0) target = $region21
  $region20: #{stsgcn_forward.5} parent=0 // pred_region
    _
  $region21: #{stsgcn_forward.5} parent=0 // pred_fallthru
    _

</llo_original>
